<compile_context>
chip_gen: v7x
topology: tpu7x:2x2x1
jax: 0.10.0
libtpu: 0.0.40
codegen_flags: <defaults>
</compile_context>

<pallas_src>
import functools
import math

import jax
import jax.numpy as jnp
from jax.experimental import pallas as pl
from jax.experimental.pallas import tpu as pltpu

_LANE = 128
_SUBLANE = 8


def _round_up(v, m):
    return ((v + m - 1) // m) * m


def _full_spec(shape):
    nd = len(shape)
    return pl.BlockSpec(shape, lambda i, _nd=nd: (0,) * _nd)


# ----------------------------------------------------------------------------
# Fused kernel: GRU (all layers, full sequence) + Linear, grid=(1,).
# ----------------------------------------------------------------------------
def _pvred_fused_kernel(*refs, num_layers, seq_len, batch_p, hidden_p):
    T, Bp, Hp = seq_len, batch_p, hidden_p

    x_ref = refs[0]                               # (T*Bp, Ip)   bf16
    gru_refs = refs[1:1 + 4 * num_layers]         # per layer: w_ih, w_hh, b_gi, b_hn
    wlin_ref = refs[1 + 4 * num_layers]           # (Hp, Op)     bf16
    blin_ref = refs[2 + 4 * num_layers]           # (1, Op)      f32
    h0_ref = refs[3 + 4 * num_layers]             # (L, Bp, Hp)  f32
    y_ref = refs[4 + 4 * num_layers]              # (T*Bp, Op)   f32 output
    hT_ref = refs[5 + 4 * num_layers]             # (L, Bp, Hp)  f32 output
    seq_ref = refs[6 + 4 * num_layers]            # (T*Bp, Hp)   f32 scratch

    for layer in range(num_layers):
        wih_ref, whh_ref, bgi_ref, bhn_ref = gru_refs[4 * layer:4 * layer + 4]

        # Hoisted, gate-fused input projection for the whole sequence: ONE
        # (T*Bp, in_p) x (in_p, 3*Hp) bf16 matmul per layer, f32 accumulation.
        # b_ih (all gates) + b_hh[r], b_hh[z] are pre-folded into bgi.
        if layer == 0:
            inp_bf16 = x_ref[...]                                   # already bf16
        else:
            inp_bf16 = seq_ref[...].astype(jnp.bfloat16)
        gi = (jnp.dot(inp_bf16, wih_ref[...],
                      preferred_element_type=jnp.float32)
              + bgi_ref[...])                                       # (T*Bp, 3*Hp) f32

        whh = whh_ref[...]                                          # (Hp, 3*Hp) bf16
        bhn = jnp.broadcast_to(bhn_ref[...], (Bp, Hp))              # hoisted broadcast

        h = h0_ref[layer]                                           # (Bp, Hp) f32
        for t in range(T):                 # fully unrolled (T is small/static)
            r0 = t * Bp                    # Bp multiple of 8 -> sublane-aligned
            # Single fused recurrent matmul for all three gates (serial path).
            gh = jnp.dot(h.astype(jnp.bfloat16), whh,
                         preferred_element_type=jnp.float32)        # (Bp, 3*Hp)
            gi_t = gi[r0:r0 + Bp, :]
            r = jax.nn.sigmoid(gi_t[:, 0:Hp] + gh[:, 0:Hp])
            z = jax.nn.sigmoid(gi_t[:, Hp:2 * Hp] + gh[:, Hp:2 * Hp])
            n = jnp.tanh(gi_t[:, 2 * Hp:3 * Hp]
                         + r * (gh[:, 2 * Hp:3 * Hp] + bhn))
            h = n + z * (h - n)            # == (1 - z) * n + z * h
            seq_ref[r0:r0 + Bp, :] = h     # lane-dense (Bp, 128) f32 store
        hT_ref[layer] = h                  # written once per layer only

    # Dropout: eval-mode identity.
    # TODO(synk): training-mode dropout (prng_random_bits mask + 1/(1-p) scaling).

    # Final Linear fused in the same kernel: one (T*Bp, Hp) x (Hp, Op) matmul.
    y = (jnp.dot(seq_ref[...].astype(jnp.bfloat16), wlin_ref[...],
                 preferred_element_type=jnp.float32)
         + blin_ref[...])
    y_ref[...] = y.astype(y_ref.dtype)


# ----------------------------------------------------------------------------
# Parameters (PyTorch-compatible shapes / init).
# ----------------------------------------------------------------------------
def init_pvred_params(key, input_size, hidden_size, output_size, num_layers):
    """nn.GRU / nn.Linear layout: uniform(-k, k), k = 1/sqrt(H)."""
    params = {"gru": [], "linear": {}}
    H = hidden_size
    k = 1.0 / math.sqrt(float(hidden_size))
    for layer in range(num_layers):
        in_sz = input_size if layer == 0 else hidden_size
        key, k1, k2, k3, k4 = jax.random.split(key, 5)
        params["gru"].append({
            "w_ih": jax.random.uniform(k1, (3 * H, in_sz), jnp.float32, -k, k),
            "w_hh": jax.random.uniform(k2, (3 * H, H), jnp.float32, -k, k),
            "b_ih": jax.random.uniform(k3, (3 * H,), jnp.float32, -k, k),
            "b_hh": jax.random.uniform(k4, (3 * H,), jnp.float32, -k, k),
        })
    key, k5, k6 = jax.random.split(key, 3)
    params["linear"] = {
        "w": jax.random.uniform(k5, (output_size, hidden_size), jnp.float32, -k, k),
        "b": jax.random.uniform(k6, (output_size,), jnp.float32, -k, k),
    }
    return params


# ----------------------------------------------------------------------------
# Weight packing: gate-fused, lane-padded, bf16 matmul operands.
# ----------------------------------------------------------------------------
def _pack_gate_matrix(w, in_sz, in_p, H, Hp):
    """(3H, in_sz) PyTorch gate-stacked weights -> (in_p, 3*Hp) bf16; gate g
    occupies lane block [g*Hp, g*Hp + H), zero padding elsewhere."""
    out = jnp.zeros((in_p, 3 * Hp), jnp.float32)
    for g in range(3):
        out = out.at[:in_sz, g * Hp:g * Hp + H].set(w[g * H:(g + 1) * H, :].T)
    return out.astype(jnp.bfloat16)


def _pack_gate_bias(b, H, Hp):
    out = jnp.zeros((1, 3 * Hp), jnp.float32)
    for g in range(3):
        out = out.at[0, g * Hp:g * Hp + H].set(b[g * H:(g + 1) * H])
    return out


# ----------------------------------------------------------------------------
# PvredNetwork forward (single fused pallas_call).
# ----------------------------------------------------------------------------
def pvred_forward(params, x, hidden=None):
    """x: (T, B, I). hidden: (L, B, H) or None. Returns (output (T,B,O), hidden (L,B,H))."""
    T, B, I = x.shape
    L = len(params["gru"])
    H = params["gru"][0]["w_hh"].shape[1]
    O = params["linear"]["w"].shape[0]

    # Lane-dense padding: lane dims to multiples of 128, batch to multiple of 8.
    Bp = _round_up(B, _SUBLANE)
    Ip = _round_up(I, _LANE)
    Hp = _round_up(H, _LANE)
    Op = _round_up(O, _LANE)

    x_p = jnp.pad(x.astype(jnp.float32), ((0, 0), (0, Bp - B), (0, Ip - I)))
    x2d = x_p.reshape(T * Bp, Ip).astype(jnp.bfloat16)

    if hidden is None:
        h0 = jnp.zeros((L, Bp, Hp), jnp.float32)
    else:
        h0 = jnp.pad(hidden.astype(jnp.float32),
                     ((0, 0), (0, Bp - B), (0, Hp - H)))

    args = [x2d]
    in_specs = [_full_spec((T * Bp, Ip))]
    for layer, p in enumerate(params["gru"]):
        in_sz = I if layer == 0 else H
        in_p = Ip if layer == 0 else Hp
        w_ih = _pack_gate_matrix(p["w_ih"], in_sz, in_p, H, Hp)   # (in_p, 3Hp) bf16
        w_hh = _pack_gate_matrix(p["w_hh"], H, Hp, H, Hp)         # (Hp, 3Hp) bf16
        b_ih = _pack_gate_bias(p["b_ih"], H, Hp)                  # (1, 3Hp) f32
        b_hh = _pack_gate_bias(p["b_hh"], H, Hp)                  # (1, 3Hp) f32
        # Fold b_hh for the r/z gates into the hoisted projection bias; only
        # b_hh[n] stays on the serial path (it sits inside r * (...)).
        b_gi = b_ih + b_hh.at[0, 2 * Hp:].set(0.0)                # (1, 3Hp) f32
        b_hn = b_hh[:, 2 * Hp:3 * Hp]                             # (1, Hp) f32
        args += [w_ih, w_hh, b_gi, b_hn]
        in_specs += [_full_spec((in_p, 3 * Hp)), _full_spec((Hp, 3 * Hp)),
                     _full_spec((1, 3 * Hp)), _full_spec((1, Hp))]

    w_lin = jnp.zeros((Hp, Op), jnp.float32).at[:H, :O].set(
        params["linear"]["w"].T).astype(jnp.bfloat16)
    b_lin = jnp.zeros((1, Op), jnp.float32).at[0, :O].set(params["linear"]["b"])
    args += [w_lin, b_lin, h0]
    in_specs += [_full_spec((Hp, Op)), _full_spec((1, Op)),
                 _full_spec((L, Bp, Hp))]

    kernel = functools.partial(_pvred_fused_kernel, num_layers=L,
                               seq_len=T, batch_p=Bp, hidden_p=Hp)

    y2d, hT = pl.pallas_call(
        kernel,
        out_shape=(
            jax.ShapeDtypeStruct((T * Bp, Op), jnp.float32),
            jax.ShapeDtypeStruct((L, Bp, Hp), jnp.float32),
        ),
        grid_spec=pltpu.PrefetchScalarGridSpec(
            num_scalar_prefetch=0,
            grid=(1,),
            in_specs=in_specs,
            out_specs=[_full_spec((T * Bp, Op)), _full_spec((L, Bp, Hp))],
            scratch_shapes=[
                pltpu.VMEM((T * Bp, Hp), jnp.float32),   # layer-output sequence
            ],
        ),
        compiler_params=pltpu.CompilerParams(
            dimension_semantics=("arbitrary",),
            vmem_limit_bytes=32 * 1024 * 1024,
        ),
    )(*args)

    y = y2d.reshape(T, Bp, Op)[:, :B, :O]
    h_out = hT[:, :B, :H]
    return y, h_out


# ----------------------------------------------------------------------------
# Pure-JAX reference (matmul_dtype lets us mirror the kernel's bf16 MXU operands).
# ----------------------------------------------------------------------------
def _pvred_reference(params, x, hidden, matmul_dtype=jnp.float32):
    T, B, _ = x.shape
    L = len(params["gru"])
    H = params["gru"][0]["w_hh"].shape[1]

    def mm(a, w):
        return jnp.dot(a.astype(matmul_dtype), w.astype(matmul_dtype),
                       preferred_element_type=jnp.float32)

    if hidden is None:
        hidden = jnp.zeros((L, B, H), jnp.float32)
    layer_in = x.astype(jnp.float32)
    h_finals = []
    for l in range(L):
        p = params["gru"][l]
        h = hidden[l].astype(jnp.float32)
        outs = []
        for t in range(T):
            gi = mm(layer_in[t], p["w_ih"].T) + p["b_ih"]
            gh = mm(h, p["w_hh"].T) + p["b_hh"]
            r = jax.nn.sigmoid(gi[:, :H] + gh[:, :H])
            z = jax.nn.sigmoid(gi[:, H:2 * H] + gh[:, H:2 * H])
            n = jnp.tanh(gi[:, 2 * H:] + r * gh[:, 2 * H:])
            h = (1.0 - z) * n + z * h
            outs.append(h)
        layer_in = jnp.stack(outs, 0)
        h_finals.append(h)
    y = mm(layer_in, params["linear"]["w"].T) + params["linear"]["b"]
    return y, jnp.stack(h_finals, 0)


if __name__ == "__main__":
    # GRU(input=16, hidden=32, layers=2), Linear(32 -> 16), seq len 8, batch 2.
    INPUT, HIDDEN, OUTPUT, LAYERS = 16, 32, 16, 2
    T, B = 8, 2

    key = jax.random.PRNGKey(0)
    key, pkey, xkey, hkey = jax.random.split(key, 4)

    params = init_pvred_params(pkey, INPUT, HIDDEN, OUTPUT, LAYERS)
    x = jax.random.normal(xkey, (T, B, INPUT), jnp.float32)
    h0 = jax.random.normal(hkey, (LAYERS, B, HIDDEN), jnp.float32)

    # Case 1: explicit initial hidden state. Case 2: hidden=None (zeros inside).
    out, h_final = pvred_forward(params, x, h0)
    out0, h0_final = pvred_forward(params, x, None)
    jax.block_until_ready((out, h_final, out0, h0_final))

    assert out.shape == (T, B, OUTPUT)
    assert h_final.shape == (LAYERS, B, HIDDEN)
    assert out0.shape == (T, B, OUTPUT)
    assert h0_final.shape == (LAYERS, B, HIDDEN)

    # Tight check vs a reference mirroring the kernel's bf16 matmul operands.
    ry, rh = _pvred_reference(params, x, h0, matmul_dtype=jnp.bfloat16)
    ry0, rh0 = _pvred_reference(params, x, None, matmul_dtype=jnp.bfloat16)
    assert jnp.allclose(out, ry, rtol=2e-3, atol=2e-3)
    assert jnp.allclose(h_final, rh, rtol=2e-3, atol=2e-3)
    assert jnp.allclose(out0, ry0, rtol=2e-3, atol=2e-3)
    assert jnp.allclose(h0_final, rh0, rtol=2e-3, atol=2e-3)

    # Looser sanity check vs the pure-f32 reference (bf16 operand rounding).
    fy, fh = _pvred_reference(params, x, h0, matmul_dtype=jnp.float32)
    assert jnp.allclose(out, fy, rtol=5e-2, atol=5e-2)
    assert jnp.allclose(h_final, fh, rtol=5e-2, atol=5e-2)

    print("KERNEL_OK")
</pallas_src>

<mosaic_0001>
module attributes {stable_mosaic.version = 11 : i64} {
  func.func @_pvred_fused_kernel(%arg0: i32, %arg1: memref<64x128xbf16, #tpu.memory_space<vmem>>, %arg2: memref<128x384xbf16, #tpu.memory_space<vmem>>, %arg3: memref<128x384xbf16, #tpu.memory_space<vmem>>, %arg4: memref<1x384xf32, #tpu.memory_space<vmem>>, %arg5: memref<1x128xf32, #tpu.memory_space<vmem>>, %arg6: memref<128x384xbf16, #tpu.memory_space<vmem>>, %arg7: memref<128x384xbf16, #tpu.memory_space<vmem>>, %arg8: memref<1x384xf32, #tpu.memory_space<vmem>>, %arg9: memref<1x128xf32, #tpu.memory_space<vmem>>, %arg10: memref<128x128xbf16, #tpu.memory_space<vmem>>, %arg11: memref<1x128xf32, #tpu.memory_space<vmem>>, %arg12: memref<2x8x128xf32, #tpu.memory_space<vmem>>, %arg13: memref<64x128xf32, #tpu.memory_space<vmem>>, %arg14: memref<2x8x128xf32, #tpu.memory_space<vmem>>, %arg15: memref<64x128xf32, #tpu.memory_space<vmem>>) attributes {dimension_semantics = [#tpu.dimension_semantics<arbitrary>], iteration_bounds = array<i64: 1>, scalar_prefetch = 0 : i64, scratch_operands = 1 : i64, tpu.core_type = #tpu.core_type<tc>, window_params = [{pipeline_mode = #tpu.pipeline_mode<synchronous>, transform_indices = @transform_0, window_bounds = array<i64: 64, 128>}, {pipeline_mode = #tpu.pipeline_mode<synchronous>, transform_indices = @transform_1, window_bounds = array<i64: 128, 384>}, {pipeline_mode = #tpu.pipeline_mode<synchronous>, transform_indices = @transform_2, window_bounds = array<i64: 128, 384>}, {pipeline_mode = #tpu.pipeline_mode<synchronous>, transform_indices = @transform_3, window_bounds = array<i64: 1, 384>}, {pipeline_mode = #tpu.pipeline_mode<synchronous>, transform_indices = @transform_4, window_bounds = array<i64: 1, 128>}, {pipeline_mode = #tpu.pipeline_mode<synchronous>, transform_indices = @transform_5, window_bounds = array<i64: 128, 384>}, {pipeline_mode = #tpu.pipeline_mode<synchronous>, transform_indices = @transform_6, window_bounds = array<i64: 128, 384>}, {pipeline_mode = #tpu.pipeline_mode<synchronous>, transform_indices = @transform_7, window_bounds = array<i64: 1, 384>}, {pipeline_mode = #tpu.pipeline_mode<synchronous>, transform_indices = @transform_8, window_bounds = array<i64: 1, 128>}, {pipeline_mode = #tpu.pipeline_mode<synchronous>, transform_indices = @transform_9, window_bounds = array<i64: 128, 128>}, {pipeline_mode = #tpu.pipeline_mode<synchronous>, transform_indices = @transform_10, window_bounds = array<i64: 1, 128>}, {pipeline_mode = #tpu.pipeline_mode<synchronous>, transform_indices = @transform_11, window_bounds = array<i64: 2, 8, 128>}, {pipeline_mode = #tpu.pipeline_mode<synchronous>, transform_indices = @transform_12, window_bounds = array<i64: 64, 128>}, {pipeline_mode = #tpu.pipeline_mode<synchronous>, transform_indices = @transform_13, window_bounds = array<i64: 2, 8, 128>}]} {
    %c0 = arith.constant 0 : index
    %c0_0 = arith.constant 0 : index
    %0 = vector.load %arg1[%c0, %c0_0] : memref<64x128xbf16, #tpu.memory_space<vmem>>, vector<64x128xbf16>
    %c0_1 = arith.constant 0 : index
    %c0_2 = arith.constant 0 : index
    %1 = vector.load %arg2[%c0_1, %c0_2] : memref<128x384xbf16, #tpu.memory_space<vmem>>, vector<128x384xbf16>
    %cst = arith.constant dense<0.000000e+00> : vector<64x384xf32>
    %2 = tpu.matmul %0, %1, %cst {dimension_numbers = #tpu.dot_dimension_numbers<[1], [0], [0], [1], [0, 0, 1, 1], [], []>} : vector<64x128xbf16>, vector<128x384xbf16>, vector<64x384xf32> -> vector<64x384xf32>
    %c0_3 = arith.constant 0 : index
    %c0_4 = arith.constant 0 : index
    %3 = vector.load %arg4[%c0_3, %c0_4] : memref<1x384xf32, #tpu.memory_space<vmem>>, vector<1x384xf32>
    %4 = vector.broadcast %3 : vector<1x384xf32> to vector<64x384xf32>
    %5 = arith.addf %2, %4 : vector<64x384xf32>
    %c0_5 = arith.constant 0 : index
    %c0_6 = arith.constant 0 : index
    %6 = vector.load %arg3[%c0_5, %c0_6] : memref<128x384xbf16, #tpu.memory_space<vmem>>, vector<128x384xbf16>
    %c0_7 = arith.constant 0 : index
    %c0_8 = arith.constant 0 : index
    %7 = vector.load %arg5[%c0_7, %c0_8] : memref<1x128xf32, #tpu.memory_space<vmem>>, vector<1x128xf32>
    %8 = vector.shape_cast %7 : vector<1x128xf32> to vector<1x128xf32>
    %9 = vector.broadcast %8 : vector<1x128xf32> to vector<8x128xf32>
    %c0_9 = arith.constant 0 : index
    %c0_10 = arith.constant 0 : index
    %c0_11 = arith.constant 0 : index
    %10 = vector.load %arg12[%c0_9, %c0_10, %c0_11] : memref<2x8x128xf32, #tpu.memory_space<vmem>>, vector<1x8x128xf32>
    %11 = vector.shape_cast %10 : vector<1x8x128xf32> to vector<8x128xf32>
    %12 = arith.truncf %11 : vector<8x128xf32> to vector<8x128xbf16>
    %cst_12 = arith.constant dense<0.000000e+00> : vector<8x384xf32>
    %13 = tpu.matmul %12, %6, %cst_12 {dimension_numbers = #tpu.dot_dimension_numbers<[1], [0], [0], [1], [0, 0, 1, 1], [], []>} : vector<8x128xbf16>, vector<128x384xbf16>, vector<8x384xf32> -> vector<8x384xf32>
    %14 = vector.extract_strided_slice %5 {offsets = [0, 0], sizes = [8, 384], strides = [1, 1]} : vector<64x384xf32> to vector<8x384xf32>
    %15 = vector.extract_strided_slice %14 {offsets = [0, 0], sizes = [8, 128], strides = [1, 1]} : vector<8x384xf32> to vector<8x128xf32>
    %16 = vector.extract_strided_slice %13 {offsets = [0, 0], sizes = [8, 128], strides = [1, 1]} : vector<8x384xf32> to vector<8x128xf32>
    %17 = arith.addf %15, %16 : vector<8x128xf32>
    %18 = arith.negf %17 : vector<8x128xf32>
    %19 = math.exp %18 : vector<8x128xf32>
    %cst_13 = arith.constant 1.000000e+00 : f32
    %20 = vector.broadcast %cst_13 : f32 to vector<8x128xf32>
    %21 = arith.addf %20, %19 : vector<8x128xf32>
    %22 = arith.divf %20, %21 : vector<8x128xf32>
    %23 = vector.extract_strided_slice %14 {offsets = [0, 128], sizes = [8, 128], strides = [1, 1]} : vector<8x384xf32> to vector<8x128xf32>
    %24 = vector.extract_strided_slice %13 {offsets = [0, 128], sizes = [8, 128], strides = [1, 1]} : vector<8x384xf32> to vector<8x128xf32>
    %25 = arith.addf %23, %24 : vector<8x128xf32>
    %26 = arith.negf %25 : vector<8x128xf32>
    %27 = math.exp %26 : vector<8x128xf32>
    %cst_14 = arith.constant 1.000000e+00 : f32
    %28 = vector.broadcast %cst_14 : f32 to vector<8x128xf32>
    %29 = arith.addf %28, %27 : vector<8x128xf32>
    %30 = arith.divf %28, %29 : vector<8x128xf32>
    %31 = vector.extract_strided_slice %14 {offsets = [0, 256], sizes = [8, 128], strides = [1, 1]} : vector<8x384xf32> to vector<8x128xf32>
    %32 = vector.extract_strided_slice %13 {offsets = [0, 256], sizes = [8, 128], strides = [1, 1]} : vector<8x384xf32> to vector<8x128xf32>
    %33 = arith.addf %32, %9 : vector<8x128xf32>
    %34 = arith.mulf %22, %33 : vector<8x128xf32>
    %35 = arith.addf %31, %34 : vector<8x128xf32>
    %36 = math.tanh %35 : vector<8x128xf32>
    %37 = arith.subf %11, %36 : vector<8x128xf32>
    %38 = arith.mulf %30, %37 : vector<8x128xf32>
    %39 = arith.addf %36, %38 : vector<8x128xf32>
    %c0_15 = arith.constant 0 : index
    %c0_16 = arith.constant 0 : index
    %40 = vector.load %arg15[%c0_15, %c0_16] : memref<64x128xf32, #tpu.memory_space<vmem>>, vector<8x128xf32>
    tpu.vector_store %arg15[%c0_15, %c0_16], %39 {strides = array<i32>} : memref<64x128xf32, #tpu.memory_space<vmem>>, vector<8x128xf32>,
    %41 = arith.truncf %39 : vector<8x128xf32> to vector<8x128xbf16>
    %cst_17 = arith.constant dense<0.000000e+00> : vector<8x384xf32>
    %42 = tpu.matmul %41, %6, %cst_17 {dimension_numbers = #tpu.dot_dimension_numbers<[1], [0], [0], [1], [0, 0, 1, 1], [], []>} : vector<8x128xbf16>, vector<128x384xbf16>, vector<8x384xf32> -> vector<8x384xf32>
    %43 = vector.extract_strided_slice %5 {offsets = [8, 0], sizes = [8, 384], strides = [1, 1]} : vector<64x384xf32> to vector<8x384xf32>
    %44 = vector.extract_strided_slice %43 {offsets = [0, 0], sizes = [8, 128], strides = [1, 1]} : vector<8x384xf32> to vector<8x128xf32>
    %45 = vector.extract_strided_slice %42 {offsets = [0, 0], sizes = [8, 128], strides = [1, 1]} : vector<8x384xf32> to vector<8x128xf32>
    %46 = arith.addf %44, %45 : vector<8x128xf32>
    %47 = arith.negf %46 : vector<8x128xf32>
    %48 = math.exp %47 : vector<8x128xf32>
    %cst_18 = arith.constant 1.000000e+00 : f32
    %49 = vector.broadcast %cst_18 : f32 to vector<8x128xf32>
    %50 = arith.addf %49, %48 : vector<8x128xf32>
    %51 = arith.divf %49, %50 : vector<8x128xf32>
    %52 = vector.extract_strided_slice %43 {offsets = [0, 128], sizes = [8, 128], strides = [1, 1]} : vector<8x384xf32> to vector<8x128xf32>
    %53 = vector.extract_strided_slice %42 {offsets = [0, 128], sizes = [8, 128], strides = [1, 1]} : vector<8x384xf32> to vector<8x128xf32>
    %54 = arith.addf %52, %53 : vector<8x128xf32>
    %55 = arith.negf %54 : vector<8x128xf32>
    %56 = math.exp %55 : vector<8x128xf32>
    %cst_19 = arith.constant 1.000000e+00 : f32
    %57 = vector.broadcast %cst_19 : f32 to vector<8x128xf32>
    %58 = arith.addf %57, %56 : vector<8x128xf32>
    %59 = arith.divf %57, %58 : vector<8x128xf32>
    %60 = vector.extract_strided_slice %43 {offsets = [0, 256], sizes = [8, 128], strides = [1, 1]} : vector<8x384xf32> to vector<8x128xf32>
    %61 = vector.extract_strided_slice %42 {offsets = [0, 256], sizes = [8, 128], strides = [1, 1]} : vector<8x384xf32> to vector<8x128xf32>
    %62 = arith.addf %61, %9 : vector<8x128xf32>
    %63 = arith.mulf %51, %62 : vector<8x128xf32>
    %64 = arith.addf %60, %63 : vector<8x128xf32>
    %65 = math.tanh %64 : vector<8x128xf32>
    %66 = arith.subf %39, %65 : vector<8x128xf32>
    %67 = arith.mulf %59, %66 : vector<8x128xf32>
    %68 = arith.addf %65, %67 : vector<8x128xf32>
    %c8 = arith.constant 8 : index
    %c0_20 = arith.constant 0 : index
    %69 = vector.load %arg15[%c8, %c0_20] : memref<64x128xf32, #tpu.memory_space<vmem>>, vector<8x128xf32>
    tpu.vector_store %arg15[%c8, %c0_20], %68 {strides = array<i32>} : memref<64x128xf32, #tpu.memory_space<vmem>>, vector<8x128xf32>,
    %70 = arith.truncf %68 : vector<8x128xf32> to vector<8x128xbf16>
    %cst_21 = arith.constant dense<0.000000e+00> : vector<8x384xf32>
    %71 = tpu.matmul %70, %6, %cst_21 {dimension_numbers = #tpu.dot_dimension_numbers<[1], [0], [0], [1], [0, 0, 1, 1], [], []>} : vector<8x128xbf16>, vector<128x384xbf16>, vector<8x384xf32> -> vector<8x384xf32>
    %72 = vector.extract_strided_slice %5 {offsets = [16, 0], sizes = [8, 384], strides = [1, 1]} : vector<64x384xf32> to vector<8x384xf32>
    %73 = vector.extract_strided_slice %72 {offsets = [0, 0], sizes = [8, 128], strides = [1, 1]} : vector<8x384xf32> to vector<8x128xf32>
    %74 = vector.extract_strided_slice %71 {offsets = [0, 0], sizes = [8, 128], strides = [1, 1]} : vector<8x384xf32> to vector<8x128xf32>
    %75 = arith.addf %73, %74 : vector<8x128xf32>
    %76 = arith.negf %75 : vector<8x128xf32>
    %77 = math.exp %76 : vector<8x128xf32>
    %cst_22 = arith.constant 1.000000e+00 : f32
    %78 = vector.broadcast %cst_22 : f32 to vector<8x128xf32>
    %79 = arith.addf %78, %77 : vector<8x128xf32>
    %80 = arith.divf %78, %79 : vector<8x128xf32>
    %81 = vector.extract_strided_slice %72 {offsets = [0, 128], sizes = [8, 128], strides = [1, 1]} : vector<8x384xf32> to vector<8x128xf32>
    %82 = vector.extract_strided_slice %71 {offsets = [0, 128], sizes = [8, 128], strides = [1, 1]} : vector<8x384xf32> to vector<8x128xf32>
    %83 = arith.addf %81, %82 : vector<8x128xf32>
    %84 = arith.negf %83 : vector<8x128xf32>
    %85 = math.exp %84 : vector<8x128xf32>
    %cst_23 = arith.constant 1.000000e+00 : f32
    %86 = vector.broadcast %cst_23 : f32 to vector<8x128xf32>
    %87 = arith.addf %86, %85 : vector<8x128xf32>
    %88 = arith.divf %86, %87 : vector<8x128xf32>
    %89 = vector.extract_strided_slice %72 {offsets = [0, 256], sizes = [8, 128], strides = [1, 1]} : vector<8x384xf32> to vector<8x128xf32>
    %90 = vector.extract_strided_slice %71 {offsets = [0, 256], sizes = [8, 128], strides = [1, 1]} : vector<8x384xf32> to vector<8x128xf32>
    %91 = arith.addf %90, %9 : vector<8x128xf32>
    %92 = arith.mulf %80, %91 : vector<8x128xf32>
    %93 = arith.addf %89, %92 : vector<8x128xf32>
    %94 = math.tanh %93 : vector<8x128xf32>
    %95 = arith.subf %68, %94 : vector<8x128xf32>
    %96 = arith.mulf %88, %95 : vector<8x128xf32>
    %97 = arith.addf %94, %96 : vector<8x128xf32>
    %c16 = arith.constant 16 : index
    %c0_24 = arith.constant 0 : index
    %98 = vector.load %arg15[%c16, %c0_24] : memref<64x128xf32, #tpu.memory_space<vmem>>, vector<8x128xf32>
    tpu.vector_store %arg15[%c16, %c0_24], %97 {strides = array<i32>} : memref<64x128xf32, #tpu.memory_space<vmem>>, vector<8x128xf32>,
    %99 = arith.truncf %97 : vector<8x128xf32> to vector<8x128xbf16>
    %cst_25 = arith.constant dense<0.000000e+00> : vector<8x384xf32>
    %100 = tpu.matmul %99, %6, %cst_25 {dimension_numbers = #tpu.dot_dimension_numbers<[1], [0], [0], [1], [0, 0, 1, 1], [], []>} : vector<8x128xbf16>, vector<128x384xbf16>, vector<8x384xf32> -> vector<8x384xf32>
    %101 = vector.extract_strided_slice %5 {offsets = [24, 0], sizes = [8, 384], strides = [1, 1]} : vector<64x384xf32> to vector<8x384xf32>
    %102 = vector.extract_strided_slice %101 {offsets = [0, 0], sizes = [8, 128], strides = [1, 1]} : vector<8x384xf32> to vector<8x128xf32>
    %103 = vector.extract_strided_slice %100 {offsets = [0, 0], sizes = [8, 128], strides = [1, 1]} : vector<8x384xf32> to vector<8x128xf32>
    %104 = arith.addf %102, %103 : vector<8x128xf32>
    %105 = arith.negf %104 : vector<8x128xf32>
    %106 = math.exp %105 : vector<8x128xf32>
    %cst_26 = arith.constant 1.000000e+00 : f32
    %107 = vector.broadcast %cst_26 : f32 to vector<8x128xf32>
    %108 = arith.addf %107, %106 : vector<8x128xf32>
    %109 = arith.divf %107, %108 : vector<8x128xf32>
    %110 = vector.extract_strided_slice %101 {offsets = [0, 128], sizes = [8, 128], strides = [1, 1]} : vector<8x384xf32> to vector<8x128xf32>
    %111 = vector.extract_strided_slice %100 {offsets = [0, 128], sizes = [8, 128], strides = [1, 1]} : vector<8x384xf32> to vector<8x128xf32>
    %112 = arith.addf %110, %111 : vector<8x128xf32>
    %113 = arith.negf %112 : vector<8x128xf32>
    %114 = math.exp %113 : vector<8x128xf32>
    %cst_27 = arith.constant 1.000000e+00 : f32
    %115 = vector.broadcast %cst_27 : f32 to vector<8x128xf32>
    %116 = arith.addf %115, %114 : vector<8x128xf32>
    %117 = arith.divf %115, %116 : vector<8x128xf32>
    %118 = vector.extract_strided_slice %101 {offsets = [0, 256], sizes = [8, 128], strides = [1, 1]} : vector<8x384xf32> to vector<8x128xf32>
    %119 = vector.extract_strided_slice %100 {offsets = [0, 256], sizes = [8, 128], strides = [1, 1]} : vector<8x384xf32> to vector<8x128xf32>
    %120 = arith.addf %119, %9 : vector<8x128xf32>
    %121 = arith.mulf %109, %120 : vector<8x128xf32>
    %122 = arith.addf %118, %121 : vector<8x128xf32>
    %123 = math.tanh %122 : vector<8x128xf32>
    %124 = arith.subf %97, %123 : vector<8x128xf32>
    %125 = arith.mulf %117, %124 : vector<8x128xf32>
    %126 = arith.addf %123, %125 : vector<8x128xf32>
    %c24 = arith.constant 24 : index
    %c0_28 = arith.constant 0 : index
    %127 = vector.load %arg15[%c24, %c0_28] : memref<64x128xf32, #tpu.memory_space<vmem>>, vector<8x128xf32>
    tpu.vector_store %arg15[%c24, %c0_28], %126 {strides = array<i32>} : memref<64x128xf32, #tpu.memory_space<vmem>>, vector<8x128xf32>,
    %128 = arith.truncf %126 : vector<8x128xf32> to vector<8x128xbf16>
    %cst_29 = arith.constant dense<0.000000e+00> : vector<8x384xf32>
    %129 = tpu.matmul %128, %6, %cst_29 {dimension_numbers = #tpu.dot_dimension_numbers<[1], [0], [0], [1], [0, 0, 1, 1], [], []>} : vector<8x128xbf16>, vector<128x384xbf16>, vector<8x384xf32> -> vector<8x384xf32>
    %130 = vector.extract_strided_slice %5 {offsets = [32, 0], sizes = [8, 384], strides = [1, 1]} : vector<64x384xf32> to vector<8x384xf32>
    %131 = vector.extract_strided_slice %130 {offsets = [0, 0], sizes = [8, 128], strides = [1, 1]} : vector<8x384xf32> to vector<8x128xf32>
    %132 = vector.extract_strided_slice %129 {offsets = [0, 0], sizes = [8, 128], strides = [1, 1]} : vector<8x384xf32> to vector<8x128xf32>
    %133 = arith.addf %131, %132 : vector<8x128xf32>
    %134 = arith.negf %133 : vector<8x128xf32>
    %135 = math.exp %134 : vector<8x128xf32>
    %cst_30 = arith.constant 1.000000e+00 : f32
    %136 = vector.broadcast %cst_30 : f32 to vector<8x128xf32>
    %137 = arith.addf %136, %135 : vector<8x128xf32>
    %138 = arith.divf %136, %137 : vector<8x128xf32>
    %139 = vector.extract_strided_slice %130 {offsets = [0, 128], sizes = [8, 128], strides = [1, 1]} : vector<8x384xf32> to vector<8x128xf32>
    %140 = vector.extract_strided_slice %129 {offsets = [0, 128], sizes = [8, 128], strides = [1, 1]} : vector<8x384xf32> to vector<8x128xf32>
    %141 = arith.addf %139, %140 : vector<8x128xf32>
    %142 = arith.negf %141 : vector<8x128xf32>
    %143 = math.exp %142 : vector<8x128xf32>
    %cst_31 = arith.constant 1.000000e+00 : f32
    %144 = vector.broadcast %cst_31 : f32 to vector<8x128xf32>
    %145 = arith.addf %144, %143 : vector<8x128xf32>
    %146 = arith.divf %144, %145 : vector<8x128xf32>
    %147 = vector.extract_strided_slice %130 {offsets = [0, 256], sizes = [8, 128], strides = [1, 1]} : vector<8x384xf32> to vector<8x128xf32>
    %148 = vector.extract_strided_slice %129 {offsets = [0, 256], sizes = [8, 128], strides = [1, 1]} : vector<8x384xf32> to vector<8x128xf32>
    %149 = arith.addf %148, %9 : vector<8x128xf32>
    %150 = arith.mulf %138, %149 : vector<8x128xf32>
    %151 = arith.addf %147, %150 : vector<8x128xf32>
    %152 = math.tanh %151 : vector<8x128xf32>
    %153 = arith.subf %126, %152 : vector<8x128xf32>
    %154 = arith.mulf %146, %153 : vector<8x128xf32>
    %155 = arith.addf %152, %154 : vector<8x128xf32>
    %c32 = arith.constant 32 : index
    %c0_32 = arith.constant 0 : index
    %156 = vector.load %arg15[%c32, %c0_32] : memref<64x128xf32, #tpu.memory_space<vmem>>, vector<8x128xf32>
    tpu.vector_store %arg15[%c32, %c0_32], %155 {strides = array<i32>} : memref<64x128xf32, #tpu.memory_space<vmem>>, vector<8x128xf32>,
    %157 = arith.truncf %155 : vector<8x128xf32> to vector<8x128xbf16>
    %cst_33 = arith.constant dense<0.000000e+00> : vector<8x384xf32>
    %158 = tpu.matmul %157, %6, %cst_33 {dimension_numbers = #tpu.dot_dimension_numbers<[1], [0], [0], [1], [0, 0, 1, 1], [], []>} : vector<8x128xbf16>, vector<128x384xbf16>, vector<8x384xf32> -> vector<8x384xf32>
    %159 = vector.extract_strided_slice %5 {offsets = [40, 0], sizes = [8, 384], strides = [1, 1]} : vector<64x384xf32> to vector<8x384xf32>
    %160 = vector.extract_strided_slice %159 {offsets = [0, 0], sizes = [8, 128], strides = [1, 1]} : vector<8x384xf32> to vector<8x128xf32>
    %161 = vector.extract_strided_slice %158 {offsets = [0, 0], sizes = [8, 128], strides = [1, 1]} : vector<8x384xf32> to vector<8x128xf32>
    %162 = arith.addf %160, %161 : vector<8x128xf32>
    %163 = arith.negf %162 : vector<8x128xf32>
    %164 = math.exp %163 : vector<8x128xf32>
    %cst_34 = arith.constant 1.000000e+00 : f32
    %165 = vector.broadcast %cst_34 : f32 to vector<8x128xf32>
    %166 = arith.addf %165, %164 : vector<8x128xf32>
    %167 = arith.divf %165, %166 : vector<8x128xf32>
    %168 = vector.extract_strided_slice %159 {offsets = [0, 128], sizes = [8, 128], strides = [1, 1]} : vector<8x384xf32> to vector<8x128xf32>
    %169 = vector.extract_strided_slice %158 {offsets = [0, 128], sizes = [8, 128], strides = [1, 1]} : vector<8x384xf32> to vector<8x128xf32>
    %170 = arith.addf %168, %169 : vector<8x128xf32>
    %171 = arith.negf %170 : vector<8x128xf32>
    %172 = math.exp %171 : vector<8x128xf32>
    %cst_35 = arith.constant 1.000000e+00 : f32
    %173 = vector.broadcast %cst_35 : f32 to vector<8x128xf32>
    %174 = arith.addf %173, %172 : vector<8x128xf32>
    %175 = arith.divf %173, %174 : vector<8x128xf32>
    %176 = vector.extract_strided_slice %159 {offsets = [0, 256], sizes = [8, 128], strides = [1, 1]} : vector<8x384xf32> to vector<8x128xf32>
    %177 = vector.extract_strided_slice %158 {offsets = [0, 256], sizes = [8, 128], strides = [1, 1]} : vector<8x384xf32> to vector<8x128xf32>
    %178 = arith.addf %177, %9 : vector<8x128xf32>
    %179 = arith.mulf %167, %178 : vector<8x128xf32>
    %180 = arith.addf %176, %179 : vector<8x128xf32>
    %181 = math.tanh %180 : vector<8x128xf32>
    %182 = arith.subf %155, %181 : vector<8x128xf32>
    %183 = arith.mulf %175, %182 : vector<8x128xf32>
    %184 = arith.addf %181, %183 : vector<8x128xf32>
    %c40 = arith.constant 40 : index
    %c0_36 = arith.constant 0 : index
    %185 = vector.load %arg15[%c40, %c0_36] : memref<64x128xf32, #tpu.memory_space<vmem>>, vector<8x128xf32>
    tpu.vector_store %arg15[%c40, %c0_36], %184 {strides = array<i32>} : memref<64x128xf32, #tpu.memory_space<vmem>>, vector<8x128xf32>,
    %186 = arith.truncf %184 : vector<8x128xf32> to vector<8x128xbf16>
    %cst_37 = arith.constant dense<0.000000e+00> : vector<8x384xf32>
    %187 = tpu.matmul %186, %6, %cst_37 {dimension_numbers = #tpu.dot_dimension_numbers<[1], [0], [0], [1], [0, 0, 1, 1], [], []>} : vector<8x128xbf16>, vector<128x384xbf16>, vector<8x384xf32> -> vector<8x384xf32>
    %188 = vector.extract_strided_slice %5 {offsets = [48, 0], sizes = [8, 384], strides = [1, 1]} : vector<64x384xf32> to vector<8x384xf32>
    %189 = vector.extract_strided_slice %188 {offsets = [0, 0], sizes = [8, 128], strides = [1, 1]} : vector<8x384xf32> to vector<8x128xf32>
    %190 = vector.extract_strided_slice %187 {offsets = [0, 0], sizes = [8, 128], strides = [1, 1]} : vector<8x384xf32> to vector<8x128xf32>
    %191 = arith.addf %189, %190 : vector<8x128xf32>
    %192 = arith.negf %191 : vector<8x128xf32>
    %193 = math.exp %192 : vector<8x128xf32>
    %cst_38 = arith.constant 1.000000e+00 : f32
    %194 = vector.broadcast %cst_38 : f32 to vector<8x128xf32>
    %195 = arith.addf %194, %193 : vector<8x128xf32>
    %196 = arith.divf %194, %195 : vector<8x128xf32>
    %197 = vector.extract_strided_slice %188 {offsets = [0, 128], sizes = [8, 128], strides = [1, 1]} : vector<8x384xf32> to vector<8x128xf32>
    %198 = vector.extract_strided_slice %187 {offsets = [0, 128], sizes = [8, 128], strides = [1, 1]} : vector<8x384xf32> to vector<8x128xf32>
    %199 = arith.addf %197, %198 : vector<8x128xf32>
    %200 = arith.negf %199 : vector<8x128xf32>
    %201 = math.exp %200 : vector<8x128xf32>
    %cst_39 = arith.constant 1.000000e+00 : f32
    %202 = vector.broadcast %cst_39 : f32 to vector<8x128xf32>
    %203 = arith.addf %202, %201 : vector<8x128xf32>
    %204 = arith.divf %202, %203 : vector<8x128xf32>
    %205 = vector.extract_strided_slice %188 {offsets = [0, 256], sizes = [8, 128], strides = [1, 1]} : vector<8x384xf32> to vector<8x128xf32>
    %206 = vector.extract_strided_slice %187 {offsets = [0, 256], sizes = [8, 128], strides = [1, 1]} : vector<8x384xf32> to vector<8x128xf32>
    %207 = arith.addf %206, %9 : vector<8x128xf32>
    %208 = arith.mulf %196, %207 : vector<8x128xf32>
    %209 = arith.addf %205, %208 : vector<8x128xf32>
    %210 = math.tanh %209 : vector<8x128xf32>
    %211 = arith.subf %184, %210 : vector<8x128xf32>
    %212 = arith.mulf %204, %211 : vector<8x128xf32>
    %213 = arith.addf %210, %212 : vector<8x128xf32>
    %c48 = arith.constant 48 : index
    %c0_40 = arith.constant 0 : index
    %214 = vector.load %arg15[%c48, %c0_40] : memref<64x128xf32, #tpu.memory_space<vmem>>, vector<8x128xf32>
    tpu.vector_store %arg15[%c48, %c0_40], %213 {strides = array<i32>} : memref<64x128xf32, #tpu.memory_space<vmem>>, vector<8x128xf32>,
    %215 = arith.truncf %213 : vector<8x128xf32> to vector<8x128xbf16>
    %cst_41 = arith.constant dense<0.000000e+00> : vector<8x384xf32>
    %216 = tpu.matmul %215, %6, %cst_41 {dimension_numbers = #tpu.dot_dimension_numbers<[1], [0], [0], [1], [0, 0, 1, 1], [], []>} : vector<8x128xbf16>, vector<128x384xbf16>, vector<8x384xf32> -> vector<8x384xf32>
    %217 = vector.extract_strided_slice %5 {offsets = [56, 0], sizes = [8, 384], strides = [1, 1]} : vector<64x384xf32> to vector<8x384xf32>
    %218 = vector.extract_strided_slice %217 {offsets = [0, 0], sizes = [8, 128], strides = [1, 1]} : vector<8x384xf32> to vector<8x128xf32>
    %219 = vector.extract_strided_slice %216 {offsets = [0, 0], sizes = [8, 128], strides = [1, 1]} : vector<8x384xf32> to vector<8x128xf32>
    %220 = arith.addf %218, %219 : vector<8x128xf32>
    %221 = arith.negf %220 : vector<8x128xf32>
    %222 = math.exp %221 : vector<8x128xf32>
    %cst_42 = arith.constant 1.000000e+00 : f32
    %223 = vector.broadcast %cst_42 : f32 to vector<8x128xf32>
    %224 = arith.addf %223, %222 : vector<8x128xf32>
    %225 = arith.divf %223, %224 : vector<8x128xf32>
    %226 = vector.extract_strided_slice %217 {offsets = [0, 128], sizes = [8, 128], strides = [1, 1]} : vector<8x384xf32> to vector<8x128xf32>
    %227 = vector.extract_strided_slice %216 {offsets = [0, 128], sizes = [8, 128], strides = [1, 1]} : vector<8x384xf32> to vector<8x128xf32>
    %228 = arith.addf %226, %227 : vector<8x128xf32>
    %229 = arith.negf %228 : vector<8x128xf32>
    %230 = math.exp %229 : vector<8x128xf32>
    %cst_43 = arith.constant 1.000000e+00 : f32
    %231 = vector.broadcast %cst_43 : f32 to vector<8x128xf32>
    %232 = arith.addf %231, %230 : vector<8x128xf32>
    %233 = arith.divf %231, %232 : vector<8x128xf32>
    %234 = vector.extract_strided_slice %217 {offsets = [0, 256], sizes = [8, 128], strides = [1, 1]} : vector<8x384xf32> to vector<8x128xf32>
    %235 = vector.extract_strided_slice %216 {offsets = [0, 256], sizes = [8, 128], strides = [1, 1]} : vector<8x384xf32> to vector<8x128xf32>
    %236 = arith.addf %235, %9 : vector<8x128xf32>
    %237 = arith.mulf %225, %236 : vector<8x128xf32>
    %238 = arith.addf %234, %237 : vector<8x128xf32>
    %239 = math.tanh %238 : vector<8x128xf32>
    %240 = arith.subf %213, %239 : vector<8x128xf32>
    %241 = arith.mulf %233, %240 : vector<8x128xf32>
    %242 = arith.addf %239, %241 : vector<8x128xf32>
    %c56 = arith.constant 56 : index
    %c0_44 = arith.constant 0 : index
    %243 = vector.load %arg15[%c56, %c0_44] : memref<64x128xf32, #tpu.memory_space<vmem>>, vector<8x128xf32>
    tpu.vector_store %arg15[%c56, %c0_44], %242 {strides = array<i32>} : memref<64x128xf32, #tpu.memory_space<vmem>>, vector<8x128xf32>,
    %c0_45 = arith.constant 0 : index
    %c0_46 = arith.constant 0 : index
    %c0_47 = arith.constant 0 : index
    %244 = vector.load %arg14[%c0_45, %c0_46, %c0_47] : memref<2x8x128xf32, #tpu.memory_space<vmem>>, vector<1x8x128xf32>
    %245 = vector.shape_cast %244 : vector<1x8x128xf32> to vector<8x128xf32>
    %246 = vector.shape_cast %242 : vector<8x128xf32> to vector<1x8x128xf32>
    tpu.vector_store %arg14[%c0_45, %c0_46, %c0_47], %246 {strides = array<i32>} : memref<2x8x128xf32, #tpu.memory_space<vmem>>, vector<1x8x128xf32>,
    %c0_48 = arith.constant 0 : index
    %c0_49 = arith.constant 0 : index
    %247 = vector.load %arg15[%c0_48, %c0_49] : memref<64x128xf32, #tpu.memory_space<vmem>>, vector<64x128xf32>
    %248 = arith.truncf %247 : vector<64x128xf32> to vector<64x128xbf16>
    %c0_50 = arith.constant 0 : index
    %c0_51 = arith.constant 0 : index
    %249 = vector.load %arg6[%c0_50, %c0_51] : memref<128x384xbf16, #tpu.memory_space<vmem>>, vector<128x384xbf16>
    %cst_52 = arith.constant dense<0.000000e+00> : vector<64x384xf32>
    %250 = tpu.matmul %248, %249, %cst_52 {dimension_numbers = #tpu.dot_dimension_numbers<[1], [0], [0], [1], [0, 0, 1, 1], [], []>} : vector<64x128xbf16>, vector<128x384xbf16>, vector<64x384xf32> -> vector<64x384xf32>
    %c0_53 = arith.constant 0 : index
    %c0_54 = arith.constant 0 : index
    %251 = vector.load %arg8[%c0_53, %c0_54] : memref<1x384xf32, #tpu.memory_space<vmem>>, vector<1x384xf32>
    %252 = vector.broadcast %251 : vector<1x384xf32> to vector<64x384xf32>
    %253 = arith.addf %250, %252 : vector<64x384xf32>
    %c0_55 = arith.constant 0 : index
    %c0_56 = arith.constant 0 : index
    %254 = vector.load %arg7[%c0_55, %c0_56] : memref<128x384xbf16, #tpu.memory_space<vmem>>, vector<128x384xbf16>
    %c0_57 = arith.constant 0 : index
    %c0_58 = arith.constant 0 : index
    %255 = vector.load %arg9[%c0_57, %c0_58] : memref<1x128xf32, #tpu.memory_space<vmem>>, vector<1x128xf32>
    %256 = vector.shape_cast %255 : vector<1x128xf32> to vector<1x128xf32>
    %257 = vector.broadcast %256 : vector<1x128xf32> to vector<8x128xf32>
    %c1 = arith.constant 1 : index
    %c0_59 = arith.constant 0 : index
    %c0_60 = arith.constant 0 : index
    %258 = vector.load %arg12[%c1, %c0_59, %c0_60] : memref<2x8x128xf32, #tpu.memory_space<vmem>>, vector<1x8x128xf32>
    %259 = vector.shape_cast %258 : vector<1x8x128xf32> to vector<8x128xf32>
    %260 = arith.truncf %259 : vector<8x128xf32> to vector<8x128xbf16>
    %cst_61 = arith.constant dense<0.000000e+00> : vector<8x384xf32>
    %261 = tpu.matmul %260, %254, %cst_61 {dimension_numbers = #tpu.dot_dimension_numbers<[1], [0], [0], [1], [0, 0, 1, 1], [], []>} : vector<8x128xbf16>, vector<128x384xbf16>, vector<8x384xf32> -> vector<8x384xf32>
    %262 = vector.extract_strided_slice %253 {offsets = [0, 0], sizes = [8, 384], strides = [1, 1]} : vector<64x384xf32> to vector<8x384xf32>
    %263 = vector.extract_strided_slice %262 {offsets = [0, 0], sizes = [8, 128], strides = [1, 1]} : vector<8x384xf32> to vector<8x128xf32>
    %264 = vector.extract_strided_slice %261 {offsets = [0, 0], sizes = [8, 128], strides = [1, 1]} : vector<8x384xf32> to vector<8x128xf32>
    %265 = arith.addf %263, %264 : vector<8x128xf32>
    %266 = arith.negf %265 : vector<8x128xf32>
    %267 = math.exp %266 : vector<8x128xf32>
    %cst_62 = arith.constant 1.000000e+00 : f32
    %268 = vector.broadcast %cst_62 : f32 to vector<8x128xf32>
    %269 = arith.addf %268, %267 : vector<8x128xf32>
    %270 = arith.divf %268, %269 : vector<8x128xf32>
    %271 = vector.extract_strided_slice %262 {offsets = [0, 128], sizes = [8, 128], strides = [1, 1]} : vector<8x384xf32> to vector<8x128xf32>
    %272 = vector.extract_strided_slice %261 {offsets = [0, 128], sizes = [8, 128], strides = [1, 1]} : vector<8x384xf32> to vector<8x128xf32>
    %273 = arith.addf %271, %272 : vector<8x128xf32>
    %274 = arith.negf %273 : vector<8x128xf32>
    %275 = math.exp %274 : vector<8x128xf32>
    %cst_63 = arith.constant 1.000000e+00 : f32
    %276 = vector.broadcast %cst_63 : f32 to vector<8x128xf32>
    %277 = arith.addf %276, %275 : vector<8x128xf32>
    %278 = arith.divf %276, %277 : vector<8x128xf32>
    %279 = vector.extract_strided_slice %262 {offsets = [0, 256], sizes = [8, 128], strides = [1, 1]} : vector<8x384xf32> to vector<8x128xf32>
    %280 = vector.extract_strided_slice %261 {offsets = [0, 256], sizes = [8, 128], strides = [1, 1]} : vector<8x384xf32> to vector<8x128xf32>
    %281 = arith.addf %280, %257 : vector<8x128xf32>
    %282 = arith.mulf %270, %281 : vector<8x128xf32>
    %283 = arith.addf %279, %282 : vector<8x128xf32>
    %284 = math.tanh %283 : vector<8x128xf32>
    %285 = arith.subf %259, %284 : vector<8x128xf32>
    %286 = arith.mulf %278, %285 : vector<8x128xf32>
    %287 = arith.addf %284, %286 : vector<8x128xf32>
    %c0_64 = arith.constant 0 : index
    %c0_65 = arith.constant 0 : index
    %288 = vector.load %arg15[%c0_64, %c0_65] : memref<64x128xf32, #tpu.memory_space<vmem>>, vector<8x128xf32>
    tpu.vector_store %arg15[%c0_64, %c0_65], %287 {strides = array<i32>} : memref<64x128xf32, #tpu.memory_space<vmem>>, vector<8x128xf32>,
    %289 = arith.truncf %287 : vector<8x128xf32> to vector<8x128xbf16>
    %cst_66 = arith.constant dense<0.000000e+00> : vector<8x384xf32>
    %290 = tpu.matmul %289, %254, %cst_66 {dimension_numbers = #tpu.dot_dimension_numbers<[1], [0], [0], [1], [0, 0, 1, 1], [], []>} : vector<8x128xbf16>, vector<128x384xbf16>, vector<8x384xf32> -> vector<8x384xf32>
    %291 = vector.extract_strided_slice %253 {offsets = [8, 0], sizes = [8, 384], strides = [1, 1]} : vector<64x384xf32> to vector<8x384xf32>
    %292 = vector.extract_strided_slice %291 {offsets = [0, 0], sizes = [8, 128], strides = [1, 1]} : vector<8x384xf32> to vector<8x128xf32>
    %293 = vector.extract_strided_slice %290 {offsets = [0, 0], sizes = [8, 128], strides = [1, 1]} : vector<8x384xf32> to vector<8x128xf32>
    %294 = arith.addf %292, %293 : vector<8x128xf32>
    %295 = arith.negf %294 : vector<8x128xf32>
    %296 = math.exp %295 : vector<8x128xf32>
    %cst_67 = arith.constant 1.000000e+00 : f32
    %297 = vector.broadcast %cst_67 : f32 to vector<8x128xf32>
    %298 = arith.addf %297, %296 : vector<8x128xf32>
    %299 = arith.divf %297, %298 : vector<8x128xf32>
    %300 = vector.extract_strided_slice %291 {offsets = [0, 128], sizes = [8, 128], strides = [1, 1]} : vector<8x384xf32> to vector<8x128xf32>
    %301 = vector.extract_strided_slice %290 {offsets = [0, 128], sizes = [8, 128], strides = [1, 1]} : vector<8x384xf32> to vector<8x128xf32>
    %302 = arith.addf %300, %301 : vector<8x128xf32>
    %303 = arith.negf %302 : vector<8x128xf32>
    %304 = math.exp %303 : vector<8x128xf32>
    %cst_68 = arith.constant 1.000000e+00 : f32
    %305 = vector.broadcast %cst_68 : f32 to vector<8x128xf32>
    %306 = arith.addf %305, %304 : vector<8x128xf32>
    %307 = arith.divf %305, %306 : vector<8x128xf32>
    %308 = vector.extract_strided_slice %291 {offsets = [0, 256], sizes = [8, 128], strides = [1, 1]} : vector<8x384xf32> to vector<8x128xf32>
    %309 = vector.extract_strided_slice %290 {offsets = [0, 256], sizes = [8, 128], strides = [1, 1]} : vector<8x384xf32> to vector<8x128xf32>
    %310 = arith.addf %309, %257 : vector<8x128xf32>
    %311 = arith.mulf %299, %310 : vector<8x128xf32>
    %312 = arith.addf %308, %311 : vector<8x128xf32>
    %313 = math.tanh %312 : vector<8x128xf32>
    %314 = arith.subf %287, %313 : vector<8x128xf32>
    %315 = arith.mulf %307, %314 : vector<8x128xf32>
    %316 = arith.addf %313, %315 : vector<8x128xf32>
    %c8_69 = arith.constant 8 : index
    %c0_70 = arith.constant 0 : index
    %317 = vector.load %arg15[%c8_69, %c0_70] : memref<64x128xf32, #tpu.memory_space<vmem>>, vector<8x128xf32>
    tpu.vector_store %arg15[%c8_69, %c0_70], %316 {strides = array<i32>} : memref<64x128xf32, #tpu.memory_space<vmem>>, vector<8x128xf32>,
    %318 = arith.truncf %316 : vector<8x128xf32> to vector<8x128xbf16>
    %cst_71 = arith.constant dense<0.000000e+00> : vector<8x384xf32>
    %319 = tpu.matmul %318, %254, %cst_71 {dimension_numbers = #tpu.dot_dimension_numbers<[1], [0], [0], [1], [0, 0, 1, 1], [], []>} : vector<8x128xbf16>, vector<128x384xbf16>, vector<8x384xf32> -> vector<8x384xf32>
    %320 = vector.extract_strided_slice %253 {offsets = [16, 0], sizes = [8, 384], strides = [1, 1]} : vector<64x384xf32> to vector<8x384xf32>
    %321 = vector.extract_strided_slice %320 {offsets = [0, 0], sizes = [8, 128], strides = [1, 1]} : vector<8x384xf32> to vector<8x128xf32>
    %322 = vector.extract_strided_slice %319 {offsets = [0, 0], sizes = [8, 128], strides = [1, 1]} : vector<8x384xf32> to vector<8x128xf32>
    %323 = arith.addf %321, %322 : vector<8x128xf32>
    %324 = arith.negf %323 : vector<8x128xf32>
    %325 = math.exp %324 : vector<8x128xf32>
    %cst_72 = arith.constant 1.000000e+00 : f32
    %326 = vector.broadcast %cst_72 : f32 to vector<8x128xf32>
    %327 = arith.addf %326, %325 : vector<8x128xf32>
    %328 = arith.divf %326, %327 : vector<8x128xf32>
    %329 = vector.extract_strided_slice %320 {offsets = [0, 128], sizes = [8, 128], strides = [1, 1]} : vector<8x384xf32> to vector<8x128xf32>
    %330 = vector.extract_strided_slice %319 {offsets = [0, 128], sizes = [8, 128], strides = [1, 1]} : vector<8x384xf32> to vector<8x128xf32>
    %331 = arith.addf %329, %330 : vector<8x128xf32>
    %332 = arith.negf %331 : vector<8x128xf32>
    %333 = math.exp %332 : vector<8x128xf32>
    %cst_73 = arith.constant 1.000000e+00 : f32
    %334 = vector.broadcast %cst_73 : f32 to vector<8x128xf32>
    %335 = arith.addf %334, %333 : vector<8x128xf32>
    %336 = arith.divf %334, %335 : vector<8x128xf32>
    %337 = vector.extract_strided_slice %320 {offsets = [0, 256], sizes = [8, 128], strides = [1, 1]} : vector<8x384xf32> to vector<8x128xf32>
    %338 = vector.extract_strided_slice %319 {offsets = [0, 256], sizes = [8, 128], strides = [1, 1]} : vector<8x384xf32> to vector<8x128xf32>
    %339 = arith.addf %338, %257 : vector<8x128xf32>
    %340 = arith.mulf %328, %339 : vector<8x128xf32>
    %341 = arith.addf %337, %340 : vector<8x128xf32>
    %342 = math.tanh %341 : vector<8x128xf32>
    %343 = arith.subf %316, %342 : vector<8x128xf32>
    %344 = arith.mulf %336, %343 : vector<8x128xf32>
    %345 = arith.addf %342, %344 : vector<8x128xf32>
    %c16_74 = arith.constant 16 : index
    %c0_75 = arith.constant 0 : index
    %346 = vector.load %arg15[%c16_74, %c0_75] : memref<64x128xf32, #tpu.memory_space<vmem>>, vector<8x128xf32>
    tpu.vector_store %arg15[%c16_74, %c0_75], %345 {strides = array<i32>} : memref<64x128xf32, #tpu.memory_space<vmem>>, vector<8x128xf32>,
    %347 = arith.truncf %345 : vector<8x128xf32> to vector<8x128xbf16>
    %cst_76 = arith.constant dense<0.000000e+00> : vector<8x384xf32>
    %348 = tpu.matmul %347, %254, %cst_76 {dimension_numbers = #tpu.dot_dimension_numbers<[1], [0], [0], [1], [0, 0, 1, 1], [], []>} : vector<8x128xbf16>, vector<128x384xbf16>, vector<8x384xf32> -> vector<8x384xf32>
    %349 = vector.extract_strided_slice %253 {offsets = [24, 0], sizes = [8, 384], strides = [1, 1]} : vector<64x384xf32> to vector<8x384xf32>
    %350 = vector.extract_strided_slice %349 {offsets = [0, 0], sizes = [8, 128], strides = [1, 1]} : vector<8x384xf32> to vector<8x128xf32>
    %351 = vector.extract_strided_slice %348 {offsets = [0, 0], sizes = [8, 128], strides = [1, 1]} : vector<8x384xf32> to vector<8x128xf32>
    %352 = arith.addf %350, %351 : vector<8x128xf32>
    %353 = arith.negf %352 : vector<8x128xf32>
    %354 = math.exp %353 : vector<8x128xf32>
    %cst_77 = arith.constant 1.000000e+00 : f32
    %355 = vector.broadcast %cst_77 : f32 to vector<8x128xf32>
    %356 = arith.addf %355, %354 : vector<8x128xf32>
    %357 = arith.divf %355, %356 : vector<8x128xf32>
    %358 = vector.extract_strided_slice %349 {offsets = [0, 128], sizes = [8, 128], strides = [1, 1]} : vector<8x384xf32> to vector<8x128xf32>
    %359 = vector.extract_strided_slice %348 {offsets = [0, 128], sizes = [8, 128], strides = [1, 1]} : vector<8x384xf32> to vector<8x128xf32>
    %360 = arith.addf %358, %359 : vector<8x128xf32>
    %361 = arith.negf %360 : vector<8x128xf32>
    %362 = math.exp %361 : vector<8x128xf32>
    %cst_78 = arith.constant 1.000000e+00 : f32
    %363 = vector.broadcast %cst_78 : f32 to vector<8x128xf32>
    %364 = arith.addf %363, %362 : vector<8x128xf32>
    %365 = arith.divf %363, %364 : vector<8x128xf32>
    %366 = vector.extract_strided_slice %349 {offsets = [0, 256], sizes = [8, 128], strides = [1, 1]} : vector<8x384xf32> to vector<8x128xf32>
    %367 = vector.extract_strided_slice %348 {offsets = [0, 256], sizes = [8, 128], strides = [1, 1]} : vector<8x384xf32> to vector<8x128xf32>
    %368 = arith.addf %367, %257 : vector<8x128xf32>
    %369 = arith.mulf %357, %368 : vector<8x128xf32>
    %370 = arith.addf %366, %369 : vector<8x128xf32>
    %371 = math.tanh %370 : vector<8x128xf32>
    %372 = arith.subf %345, %371 : vector<8x128xf32>
    %373 = arith.mulf %365, %372 : vector<8x128xf32>
    %374 = arith.addf %371, %373 : vector<8x128xf32>
    %c24_79 = arith.constant 24 : index
    %c0_80 = arith.constant 0 : index
    %375 = vector.load %arg15[%c24_79, %c0_80] : memref<64x128xf32, #tpu.memory_space<vmem>>, vector<8x128xf32>
    tpu.vector_store %arg15[%c24_79, %c0_80], %374 {strides = array<i32>} : memref<64x128xf32, #tpu.memory_space<vmem>>, vector<8x128xf32>,
    %376 = arith.truncf %374 : vector<8x128xf32> to vector<8x128xbf16>
    %cst_81 = arith.constant dense<0.000000e+00> : vector<8x384xf32>
    %377 = tpu.matmul %376, %254, %cst_81 {dimension_numbers = #tpu.dot_dimension_numbers<[1], [0], [0], [1], [0, 0, 1, 1], [], []>} : vector<8x128xbf16>, vector<128x384xbf16>, vector<8x384xf32> -> vector<8x384xf32>
    %378 = vector.extract_strided_slice %253 {offsets = [32, 0], sizes = [8, 384], strides = [1, 1]} : vector<64x384xf32> to vector<8x384xf32>
    %379 = vector.extract_strided_slice %378 {offsets = [0, 0], sizes = [8, 128], strides = [1, 1]} : vector<8x384xf32> to vector<8x128xf32>
    %380 = vector.extract_strided_slice %377 {offsets = [0, 0], sizes = [8, 128], strides = [1, 1]} : vector<8x384xf32> to vector<8x128xf32>
    %381 = arith.addf %379, %380 : vector<8x128xf32>
    %382 = arith.negf %381 : vector<8x128xf32>
    %383 = math.exp %382 : vector<8x128xf32>
    %cst_82 = arith.constant 1.000000e+00 : f32
    %384 = vector.broadcast %cst_82 : f32 to vector<8x128xf32>
    %385 = arith.addf %384, %383 : vector<8x128xf32>
    %386 = arith.divf %384, %385 : vector<8x128xf32>
    %387 = vector.extract_strided_slice %378 {offsets = [0, 128], sizes = [8, 128], strides = [1, 1]} : vector<8x384xf32> to vector<8x128xf32>
    %388 = vector.extract_strided_slice %377 {offsets = [0, 128], sizes = [8, 128], strides = [1, 1]} : vector<8x384xf32> to vector<8x128xf32>
    %389 = arith.addf %387, %388 : vector<8x128xf32>
    %390 = arith.negf %389 : vector<8x128xf32>
    %391 = math.exp %390 : vector<8x128xf32>
    %cst_83 = arith.constant 1.000000e+00 : f32
    %392 = vector.broadcast %cst_83 : f32 to vector<8x128xf32>
    %393 = arith.addf %392, %391 : vector<8x128xf32>
    %394 = arith.divf %392, %393 : vector<8x128xf32>
    %395 = vector.extract_strided_slice %378 {offsets = [0, 256], sizes = [8, 128], strides = [1, 1]} : vector<8x384xf32> to vector<8x128xf32>
    %396 = vector.extract_strided_slice %377 {offsets = [0, 256], sizes = [8, 128], strides = [1, 1]} : vector<8x384xf32> to vector<8x128xf32>
    %397 = arith.addf %396, %257 : vector<8x128xf32>
    %398 = arith.mulf %386, %397 : vector<8x128xf32>
    %399 = arith.addf %395, %398 : vector<8x128xf32>
    %400 = math.tanh %399 : vector<8x128xf32>
    %401 = arith.subf %374, %400 : vector<8x128xf32>
    %402 = arith.mulf %394, %401 : vector<8x128xf32>
    %403 = arith.addf %400, %402 : vector<8x128xf32>
    %c32_84 = arith.constant 32 : index
    %c0_85 = arith.constant 0 : index
    %404 = vector.load %arg15[%c32_84, %c0_85] : memref<64x128xf32, #tpu.memory_space<vmem>>, vector<8x128xf32>
    tpu.vector_store %arg15[%c32_84, %c0_85], %403 {strides = array<i32>} : memref<64x128xf32, #tpu.memory_space<vmem>>, vector<8x128xf32>,
    %405 = arith.truncf %403 : vector<8x128xf32> to vector<8x128xbf16>
    %cst_86 = arith.constant dense<0.000000e+00> : vector<8x384xf32>
    %406 = tpu.matmul %405, %254, %cst_86 {dimension_numbers = #tpu.dot_dimension_numbers<[1], [0], [0], [1], [0, 0, 1, 1], [], []>} : vector<8x128xbf16>, vector<128x384xbf16>, vector<8x384xf32> -> vector<8x384xf32>
    %407 = vector.extract_strided_slice %253 {offsets = [40, 0], sizes = [8, 384], strides = [1, 1]} : vector<64x384xf32> to vector<8x384xf32>
    %408 = vector.extract_strided_slice %407 {offsets = [0, 0], sizes = [8, 128], strides = [1, 1]} : vector<8x384xf32> to vector<8x128xf32>
    %409 = vector.extract_strided_slice %406 {offsets = [0, 0], sizes = [8, 128], strides = [1, 1]} : vector<8x384xf32> to vector<8x128xf32>
    %410 = arith.addf %408, %409 : vector<8x128xf32>
    %411 = arith.negf %410 : vector<8x128xf32>
    %412 = math.exp %411 : vector<8x128xf32>
    %cst_87 = arith.constant 1.000000e+00 : f32
    %413 = vector.broadcast %cst_87 : f32 to vector<8x128xf32>
    %414 = arith.addf %413, %412 : vector<8x128xf32>
    %415 = arith.divf %413, %414 : vector<8x128xf32>
    %416 = vector.extract_strided_slice %407 {offsets = [0, 128], sizes = [8, 128], strides = [1, 1]} : vector<8x384xf32> to vector<8x128xf32>
    %417 = vector.extract_strided_slice %406 {offsets = [0, 128], sizes = [8, 128], strides = [1, 1]} : vector<8x384xf32> to vector<8x128xf32>
    %418 = arith.addf %416, %417 : vector<8x128xf32>
    %419 = arith.negf %418 : vector<8x128xf32>
    %420 = math.exp %419 : vector<8x128xf32>
    %cst_88 = arith.constant 1.000000e+00 : f32
    %421 = vector.broadcast %cst_88 : f32 to vector<8x128xf32>
    %422 = arith.addf %421, %420 : vector<8x128xf32>
    %423 = arith.divf %421, %422 : vector<8x128xf32>
    %424 = vector.extract_strided_slice %407 {offsets = [0, 256], sizes = [8, 128], strides = [1, 1]} : vector<8x384xf32> to vector<8x128xf32>
    %425 = vector.extract_strided_slice %406 {offsets = [0, 256], sizes = [8, 128], strides = [1, 1]} : vector<8x384xf32> to vector<8x128xf32>
    %426 = arith.addf %425, %257 : vector<8x128xf32>
    %427 = arith.mulf %415, %426 : vector<8x128xf32>
    %428 = arith.addf %424, %427 : vector<8x128xf32>
    %429 = math.tanh %428 : vector<8x128xf32>
    %430 = arith.subf %403, %429 : vector<8x128xf32>
    %431 = arith.mulf %423, %430 : vector<8x128xf32>
    %432 = arith.addf %429, %431 : vector<8x128xf32>
    %c40_89 = arith.constant 40 : index
    %c0_90 = arith.constant 0 : index
    %433 = vector.load %arg15[%c40_89, %c0_90] : memref<64x128xf32, #tpu.memory_space<vmem>>, vector<8x128xf32>
    tpu.vector_store %arg15[%c40_89, %c0_90], %432 {strides = array<i32>} : memref<64x128xf32, #tpu.memory_space<vmem>>, vector<8x128xf32>,
    %434 = arith.truncf %432 : vector<8x128xf32> to vector<8x128xbf16>
    %cst_91 = arith.constant dense<0.000000e+00> : vector<8x384xf32>
    %435 = tpu.matmul %434, %254, %cst_91 {dimension_numbers = #tpu.dot_dimension_numbers<[1], [0], [0], [1], [0, 0, 1, 1], [], []>} : vector<8x128xbf16>, vector<128x384xbf16>, vector<8x384xf32> -> vector<8x384xf32>
    %436 = vector.extract_strided_slice %253 {offsets = [48, 0], sizes = [8, 384], strides = [1, 1]} : vector<64x384xf32> to vector<8x384xf32>
    %437 = vector.extract_strided_slice %436 {offsets = [0, 0], sizes = [8, 128], strides = [1, 1]} : vector<8x384xf32> to vector<8x128xf32>
    %438 = vector.extract_strided_slice %435 {offsets = [0, 0], sizes = [8, 128], strides = [1, 1]} : vector<8x384xf32> to vector<8x128xf32>
    %439 = arith.addf %437, %438 : vector<8x128xf32>
    %440 = arith.negf %439 : vector<8x128xf32>
    %441 = math.exp %440 : vector<8x128xf32>
    %cst_92 = arith.constant 1.000000e+00 : f32
    %442 = vector.broadcast %cst_92 : f32 to vector<8x128xf32>
    %443 = arith.addf %442, %441 : vector<8x128xf32>
    %444 = arith.divf %442, %443 : vector<8x128xf32>
    %445 = vector.extract_strided_slice %436 {offsets = [0, 128], sizes = [8, 128], strides = [1, 1]} : vector<8x384xf32> to vector<8x128xf32>
    %446 = vector.extract_strided_slice %435 {offsets = [0, 128], sizes = [8, 128], strides = [1, 1]} : vector<8x384xf32> to vector<8x128xf32>
    %447 = arith.addf %445, %446 : vector<8x128xf32>
    %448 = arith.negf %447 : vector<8x128xf32>
    %449 = math.exp %448 : vector<8x128xf32>
    %cst_93 = arith.constant 1.000000e+00 : f32
    %450 = vector.broadcast %cst_93 : f32 to vector<8x128xf32>
    %451 = arith.addf %450, %449 : vector<8x128xf32>
    %452 = arith.divf %450, %451 : vector<8x128xf32>
    %453 = vector.extract_strided_slice %436 {offsets = [0, 256], sizes = [8, 128], strides = [1, 1]} : vector<8x384xf32> to vector<8x128xf32>
    %454 = vector.extract_strided_slice %435 {offsets = [0, 256], sizes = [8, 128], strides = [1, 1]} : vector<8x384xf32> to vector<8x128xf32>
    %455 = arith.addf %454, %257 : vector<8x128xf32>
    %456 = arith.mulf %444, %455 : vector<8x128xf32>
    %457 = arith.addf %453, %456 : vector<8x128xf32>
    %458 = math.tanh %457 : vector<8x128xf32>
    %459 = arith.subf %432, %458 : vector<8x128xf32>
    %460 = arith.mulf %452, %459 : vector<8x128xf32>
    %461 = arith.addf %458, %460 : vector<8x128xf32>
    %c48_94 = arith.constant 48 : index
    %c0_95 = arith.constant 0 : index
    %462 = vector.load %arg15[%c48_94, %c0_95] : memref<64x128xf32, #tpu.memory_space<vmem>>, vector<8x128xf32>
    tpu.vector_store %arg15[%c48_94, %c0_95], %461 {strides = array<i32>} : memref<64x128xf32, #tpu.memory_space<vmem>>, vector<8x128xf32>,
    %463 = arith.truncf %461 : vector<8x128xf32> to vector<8x128xbf16>
    %cst_96 = arith.constant dense<0.000000e+00> : vector<8x384xf32>
    %464 = tpu.matmul %463, %254, %cst_96 {dimension_numbers = #tpu.dot_dimension_numbers<[1], [0], [0], [1], [0, 0, 1, 1], [], []>} : vector<8x128xbf16>, vector<128x384xbf16>, vector<8x384xf32> -> vector<8x384xf32>
    %465 = vector.extract_strided_slice %253 {offsets = [56, 0], sizes = [8, 384], strides = [1, 1]} : vector<64x384xf32> to vector<8x384xf32>
    %466 = vector.extract_strided_slice %465 {offsets = [0, 0], sizes = [8, 128], strides = [1, 1]} : vector<8x384xf32> to vector<8x128xf32>
    %467 = vector.extract_strided_slice %464 {offsets = [0, 0], sizes = [8, 128], strides = [1, 1]} : vector<8x384xf32> to vector<8x128xf32>
    %468 = arith.addf %466, %467 : vector<8x128xf32>
    %469 = arith.negf %468 : vector<8x128xf32>
    %470 = math.exp %469 : vector<8x128xf32>
    %cst_97 = arith.constant 1.000000e+00 : f32
    %471 = vector.broadcast %cst_97 : f32 to vector<8x128xf32>
    %472 = arith.addf %471, %470 : vector<8x128xf32>
    %473 = arith.divf %471, %472 : vector<8x128xf32>
    %474 = vector.extract_strided_slice %465 {offsets = [0, 128], sizes = [8, 128], strides = [1, 1]} : vector<8x384xf32> to vector<8x128xf32>
    %475 = vector.extract_strided_slice %464 {offsets = [0, 128], sizes = [8, 128], strides = [1, 1]} : vector<8x384xf32> to vector<8x128xf32>
    %476 = arith.addf %474, %475 : vector<8x128xf32>
    %477 = arith.negf %476 : vector<8x128xf32>
    %478 = math.exp %477 : vector<8x128xf32>
    %cst_98 = arith.constant 1.000000e+00 : f32
    %479 = vector.broadcast %cst_98 : f32 to vector<8x128xf32>
    %480 = arith.addf %479, %478 : vector<8x128xf32>
    %481 = arith.divf %479, %480 : vector<8x128xf32>
    %482 = vector.extract_strided_slice %465 {offsets = [0, 256], sizes = [8, 128], strides = [1, 1]} : vector<8x384xf32> to vector<8x128xf32>
    %483 = vector.extract_strided_slice %464 {offsets = [0, 256], sizes = [8, 128], strides = [1, 1]} : vector<8x384xf32> to vector<8x128xf32>
    %484 = arith.addf %483, %257 : vector<8x128xf32>
    %485 = arith.mulf %473, %484 : vector<8x128xf32>
    %486 = arith.addf %482, %485 : vector<8x128xf32>
    %487 = math.tanh %486 : vector<8x128xf32>
    %488 = arith.subf %461, %487 : vector<8x128xf32>
    %489 = arith.mulf %481, %488 : vector<8x128xf32>
    %490 = arith.addf %487, %489 : vector<8x128xf32>
    %c56_99 = arith.constant 56 : index
    %c0_100 = arith.constant 0 : index
    %491 = vector.load %arg15[%c56_99, %c0_100] : memref<64x128xf32, #tpu.memory_space<vmem>>, vector<8x128xf32>
    tpu.vector_store %arg15[%c56_99, %c0_100], %490 {strides = array<i32>} : memref<64x128xf32, #tpu.memory_space<vmem>>, vector<8x128xf32>,
    %c1_101 = arith.constant 1 : index
    %c0_102 = arith.constant 0 : index
    %c0_103 = arith.constant 0 : index
    %492 = vector.load %arg14[%c1_101, %c0_102, %c0_103] : memref<2x8x128xf32, #tpu.memory_space<vmem>>, vector<1x8x128xf32>
    %493 = vector.shape_cast %492 : vector<1x8x128xf32> to vector<8x128xf32>
    %494 = vector.shape_cast %490 : vector<8x128xf32> to vector<1x8x128xf32>
    tpu.vector_store %arg14[%c1_101, %c0_102, %c0_103], %494 {strides = array<i32>} : memref<2x8x128xf32, #tpu.memory_space<vmem>>, vector<1x8x128xf32>,
    %c0_104 = arith.constant 0 : index
    %c0_105 = arith.constant 0 : index
    %495 = vector.load %arg15[%c0_104, %c0_105] : memref<64x128xf32, #tpu.memory_space<vmem>>, vector<64x128xf32>
    %496 = arith.truncf %495 : vector<64x128xf32> to vector<64x128xbf16>
    %c0_106 = arith.constant 0 : index
    %c0_107 = arith.constant 0 : index
    %497 = vector.load %arg10[%c0_106, %c0_107] : memref<128x128xbf16, #tpu.memory_space<vmem>>, vector<128x128xbf16>
    %cst_108 = arith.constant dense<0.000000e+00> : vector<64x128xf32>
    %498 = tpu.matmul %496, %497, %cst_108 {dimension_numbers = #tpu.dot_dimension_numbers<[1], [0], [0], [1], [0, 0, 1, 1], [], []>} : vector<64x128xbf16>, vector<128x128xbf16>, vector<64x128xf32> -> vector<64x128xf32>
    %c0_109 = arith.constant 0 : index
    %c0_110 = arith.constant 0 : index
    %499 = vector.load %arg11[%c0_109, %c0_110] : memref<1x128xf32, #tpu.memory_space<vmem>>, vector<1x128xf32>
    %500 = vector.broadcast %499 : vector<1x128xf32> to vector<64x128xf32>
    %501 = arith.addf %498, %500 : vector<64x128xf32>
    %c0_111 = arith.constant 0 : index
    %c0_112 = arith.constant 0 : index
    %502 = vector.load %arg13[%c0_111, %c0_112] : memref<64x128xf32, #tpu.memory_space<vmem>>, vector<64x128xf32>
    tpu.vector_store %arg13[%c0_111, %c0_112], %501 {strides = array<i32>} : memref<64x128xf32, #tpu.memory_space<vmem>>, vector<64x128xf32>,
    return
  }
  func.func @transform_0(%arg0: i32) -> (i32, i32) {
    %c0_i32 = arith.constant 0 : i32
    %c0_i32_0 = arith.constant 0 : i32
    %c0_i32_1 = arith.constant 0 : i32
    return %c0_i32, %c0_i32_0 : i32, i32
  }
  func.func @transform_1(%arg0: i32) -> (i32, i32) {
    %c0_i32 = arith.constant 0 : i32
    %c0_i32_0 = arith.constant 0 : i32
    %c0_i32_1 = arith.constant 0 : i32
    return %c0_i32, %c0_i32_0 : i32, i32
  }
  func.func @transform_2(%arg0: i32) -> (i32, i32) {
    %c0_i32 = arith.constant 0 : i32
    %c0_i32_0 = arith.constant 0 : i32
    %c0_i32_1 = arith.constant 0 : i32
    return %c0_i32, %c0_i32_0 : i32, i32
  }
  func.func @transform_3(%arg0: i32) -> (i32, i32) {
    %c0_i32 = arith.constant 0 : i32
    %c0_i32_0 = arith.constant 0 : i32
    %c0_i32_1 = arith.constant 0 : i32
    return %c0_i32, %c0_i32_0 : i32, i32
  }
  func.func @transform_4(%arg0: i32) -> (i32, i32) {
    %c0_i32 = arith.constant 0 : i32
    %c0_i32_0 = arith.constant 0 : i32
    %c0_i32_1 = arith.constant 0 : i32
    return %c0_i32, %c0_i32_0 : i32, i32
  }
  func.func @transform_5(%arg0: i32) -> (i32, i32) {
    %c0_i32 = arith.constant 0 : i32
    %c0_i32_0 = arith.constant 0 : i32
    %c0_i32_1 = arith.constant 0 : i32
    return %c0_i32, %c0_i32_0 : i32, i32
  }
  func.func @transform_6(%arg0: i32) -> (i32, i32) {
    %c0_i32 = arith.constant 0 : i32
    %c0_i32_0 = arith.constant 0 : i32
    %c0_i32_1 = arith.constant 0 : i32
    return %c0_i32, %c0_i32_0 : i32, i32
  }
  func.func @transform_7(%arg0: i32) -> (i32, i32) {
    %c0_i32 = arith.constant 0 : i32
    %c0_i32_0 = arith.constant 0 : i32
    %c0_i32_1 = arith.constant 0 : i32
    return %c0_i32, %c0_i32_0 : i32, i32
  }
  func.func @transform_8(%arg0: i32) -> (i32, i32) {
    %c0_i32 = arith.constant 0 : i32
    %c0_i32_0 = arith.constant 0 : i32
    %c0_i32_1 = arith.constant 0 : i32
    return %c0_i32, %c0_i32_0 : i32, i32
  }
  func.func @transform_9(%arg0: i32) -> (i32, i32) {
    %c0_i32 = arith.constant 0 : i32
    %c0_i32_0 = arith.constant 0 : i32
    %c0_i32_1 = arith.constant 0 : i32
    return %c0_i32, %c0_i32_0 : i32, i32
  }
  func.func @transform_10(%arg0: i32) -> (i32, i32) {
    %c0_i32 = arith.constant 0 : i32
    %c0_i32_0 = arith.constant 0 : i32
    %c0_i32_1 = arith.constant 0 : i32
    return %c0_i32, %c0_i32_0 : i32, i32
  }
  func.func @transform_11(%arg0: i32) -> (i32, i32, i32) {
    %c0_i32 = arith.constant 0 : i32
    %c0_i32_0 = arith.constant 0 : i32
    %c0_i32_1 = arith.constant 0 : i32
    %c0_i32_2 = arith.constant 0 : i32
    return %c0_i32, %c0_i32_0, %c0_i32_1 : i32, i32, i32
  }
  func.func @transform_12(%arg0: i32) -> (i32, i32) {
    %c0_i32 = arith.constant 0 : i32
    %c0_i32_0 = arith.constant 0 : i32
    %c0_i32_1 = arith.constant 0 : i32
    return %c0_i32, %c0_i32_0 : i32, i32
  }
  func.func @transform_13(%arg0: i32) -> (i32, i32, i32) {
    %c0_i32 = arith.constant 0 : i32
    %c0_i32_0 = arith.constant 0 : i32
    %c0_i32_1 = arith.constant 0 : i32
    %c0_i32_2 = arith.constant 0 : i32
    return %c0_i32, %c0_i32_0, %c0_i32_1 : i32, i32, i32
  }
}

</mosaic_0001>

<llo_original>
// kernel: tpu_custom_call.1
$region0: #{tpu_custom_call.1}
  #allocation0 [shape = 'u32[]', space=smem, size = 0x4, offset = 0x4, fixed_abs, tag = 'smem constant byte address 0x4 - core index']
  #allocation1 [shape = 'u32[144,128]{1,0:T(1,128)}', space=vmem, size = 0x12000, scoped, tag = 'internal scratch']
  #allocation2 [shape = 'f32[64,128]{1,0:T(8,128)}', space=vmem, size = 0x8000, scoped, tag = 'scratch operand']
  %s0 = inlined_call_operand.hbm [shape: bf16[64,128], index: 0, kind: input, shape index: {}]
  %s1 = inlined_call_operand.hbm [shape: bf16[128,384], index: 1, kind: input, shape index: {}]
  %s2 = inlined_call_operand.hbm [shape: bf16[128,384], index: 2, kind: input, shape index: {}]
  %s3 = inlined_call_operand.vmem [shape: f32[1,384], index: 3, kind: input, shape index: {}]
  %s4 = inlined_call_operand.vmem [shape: f32[1,128], index: 4, kind: input, shape index: {}]
  %s5 = inlined_call_operand.hbm [shape: bf16[128,384], index: 5, kind: input, shape index: {}]
  %s6 = inlined_call_operand.hbm [shape: bf16[128,384], index: 6, kind: input, shape index: {}]
  %s7 = inlined_call_operand.vmem [shape: f32[1,384], index: 7, kind: input, shape index: {}]
  %s8 = inlined_call_operand.vmem [shape: f32[1,128], index: 8, kind: input, shape index: {}]
  %s9 = inlined_call_operand.hbm [shape: bf16[128,128], index: 9, kind: input, shape index: {}]
  %s10 = inlined_call_operand.vmem [shape: f32[1,128], index: 10, kind: input, shape index: {}]
  %s11 = inlined_call_operand.vmem [shape: f32[2,8,128], index: 11, kind: input, shape index: {}]
  %s12 = inlined_call_operand.hbm [shape: f32[64,128], index: 12, kind: output, shape index: {0}]
  %s13 = inlined_call_operand.hbm [shape: f32[2,8,128], index: 13, kind: output, shape index: {1}]
  %14 = xla_tuple %s12, %s13
  %s15 = sld [smem:[#allocation0]]
  $region90: #{tpu_custom_call.1} parent=0
    _
  %s17 = ssub.s32 1, %s15
  %s18 = scalar_select 0, %s17, %s15
  $region1: #{tpu_custom_call.1} parent=0
    #allocation3 [shape = 'u8[16384]{0}', space=vmem, size = 0x4000, scoped, tag = 'input window, operand 0, single buffered']
    #allocation4 [shape = 's32[1]{0}', space=sflag, size = 0x4, scoped, tag = 'scoped memory for tpu_custom_call.1']
    #allocation5 [shape = 's32[1]{0}', space=sflag, size = 0x4, scoped, tag = 'scoped memory for tpu_custom_call.1']
    #allocation6 [shape = 'u8[98304]{0}', space=vmem, size = 0x18000, scoped, tag = 'input window, operand 1, single buffered']
    #allocation7 [shape = 's32[1]{0}', space=sflag, size = 0x4, scoped, tag = 'scoped memory for tpu_custom_call.1']
    #allocation8 [shape = 'u8[98304]{0}', space=vmem, size = 0x18000, scoped, tag = 'input window, operand 2, single buffered']
    #allocation9 [shape = 'u8[98304]{0}', space=vmem, size = 0x18000, scoped, tag = 'input window, operand 5, single buffered']
    #allocation10 [shape = 's32[1]{0}', space=sflag, size = 0x4, scoped, tag = 'scoped memory for tpu_custom_call.1']
    #allocation11 [shape = 'u8[98304]{0}', space=vmem, size = 0x18000, scoped, tag = 'input window, operand 6, single buffered']
    #allocation12 [shape = 'u8[32768]{0}', space=vmem, size = 0x8000, scoped, tag = 'input window, operand 9, single buffered']
    #allocation13 [shape = 's32[1]{0}', space=sflag, size = 0x4, scoped, tag = 'scoped memory for tpu_custom_call.1']
    #allocation14 [shape = 'u8[32768]{0}', space=vmem, size = 0x8000, scoped, tag = 'output window, operand 0, single buffered']
    #allocation15 [shape = 'u8[8192]{0}', space=vmem, size = 0x2000, scoped, tag = 'output window, operand 1, single buffered']
    #allocation16 [shape = 's32[1]{0}', space=sflag, size = 0x4, scoped, tag = 'scoped memory for tpu_custom_call.1']
    %19 = vsyncpa [#allocation4], 0
    %20 = vsyncpa [#allocation7], 0
    %21 = vsyncpa [#allocation10], 0
    %22 = vsyncpa [#allocation13], 0
    %23 = vsyncpa [#allocation5], 0
    %24 = vsyncpa [#allocation16], 0
    // Predicated region
    $region2: #{tpu_custom_call.1} parent=1 // pred_check
      _
    $region3: #{tpu_custom_call.1} parent=1 // pred_check_branch
      %26 = sbr.rel (0) target = $region5
    $region4: #{tpu_custom_call.1} parent=1 // pred_region
      %s28 = ssub.s32 512, 512
      %29 = vsyncadd [#allocation4], %s28
      %s30 = sshll.u32 [#allocation3], 4
      %s31 = int_to_ptr.vmem [resolvable:$true] %s30
      %36 = dma.hbm_to_vmem [thread:$0]  %s0, 512, %s31, [#allocation4], 64, 64, 4
    $region5: #{tpu_custom_call.1} parent=1 // pred_fallthru
      _
    // Predicated region
    $region6: #{tpu_custom_call.1} parent=1 // pred_check
      _
    $region7: #{tpu_custom_call.1} parent=1 // pred_check_branch
      %38 = sbr.rel (0) target = $region9
    $region8: #{tpu_custom_call.1} parent=1 // pred_region
      %s40 = ssub.s32 3072, 3072
      %41 = vsyncadd [#allocation7], %s40
      %s42 = sshll.u32 [#allocation6], 4
      %s43 = int_to_ptr.vmem [resolvable:$true] %s42
      %48 = dma.hbm_to_vmem [thread:$0]  %s1, 3072, %s43, [#allocation7], 192, 192, 12
    $region9: #{tpu_custom_call.1} parent=1 // pred_fallthru
      _
    // Predicated region
    $region10: #{tpu_custom_call.1} parent=1 // pred_check
      _
    $region11: #{tpu_custom_call.1} parent=1 // pred_check_branch
      %50 = sbr.rel (0) target = $region13
    $region12: #{tpu_custom_call.1} parent=1 // pred_region
      %s52 = ssub.s32 3072, 3072
      %53 = vsyncadd [#allocation7], %s52
      %s54 = sshll.u32 [#allocation8], 4
      %s55 = int_to_ptr.vmem [resolvable:$true] %s54
      %60 = dma.hbm_to_vmem [thread:$0]  %s2, 3072, %s55, [#allocation7], 192, 192, 12
    $region13: #{tpu_custom_call.1} parent=1 // pred_fallthru
      _
    // Predicated region
    $region14: #{tpu_custom_call.1} parent=1 // pred_check
      _
    $region15: #{tpu_custom_call.1} parent=1 // pred_check_branch
      %62 = sbr.rel (0) target = $region17
    $region16: #{tpu_custom_call.1} parent=1 // pred_region
      _
    $region17: #{tpu_custom_call.1} parent=1 // pred_fallthru
      _
    // Predicated region
    $region18: #{tpu_custom_call.1} parent=1 // pred_check
      _
    $region19: #{tpu_custom_call.1} parent=1 // pred_check_branch
      %64 = sbr.rel (0) target = $region21
    $region20: #{tpu_custom_call.1} parent=1 // pred_region
      _
    $region21: #{tpu_custom_call.1} parent=1 // pred_fallthru
      _
    // Predicated region
    $region22: #{tpu_custom_call.1} parent=1 // pred_check
      _
    $region23: #{tpu_custom_call.1} parent=1 // pred_check_branch
      %66 = sbr.rel (0) target = $region25
    $region24: #{tpu_custom_call.1} parent=1 // pred_region
      %s68 = ssub.s32 3072, 3072
      %69 = vsyncadd [#allocation10], %s68
      %s70 = sshll.u32 [#allocation9], 4
      %s71 = int_to_ptr.vmem [resolvable:$true] %s70
      %76 = dma.hbm_to_vmem [thread:$0]  %s5, 3072, %s71, [#allocation10], 192, 192, 12
    $region25: #{tpu_custom_call.1} parent=1 // pred_fallthru
      _
    // Predicated region
    $region26: #{tpu_custom_call.1} parent=1 // pred_check
      _
    $region27: #{tpu_custom_call.1} parent=1 // pred_check_branch
      %78 = sbr.rel (0) target = $region29
    $region28: #{tpu_custom_call.1} parent=1 // pred_region
      %s80 = ssub.s32 3072, 3072
      %81 = vsyncadd [#allocation10], %s80
      %s82 = sshll.u32 [#allocation11], 4
      %s83 = int_to_ptr.vmem [resolvable:$true] %s82
      %88 = dma.hbm_to_vmem [thread:$0]  %s6, 3072, %s83, [#allocation10], 192, 192, 12
    $region29: #{tpu_custom_call.1} parent=1 // pred_fallthru
      _
    // Predicated region
    $region30: #{tpu_custom_call.1} parent=1 // pred_check
      _
    $region31: #{tpu_custom_call.1} parent=1 // pred_check_branch
      %90 = sbr.rel (0) target = $region33
    $region32: #{tpu_custom_call.1} parent=1 // pred_region
      _
    $region33: #{tpu_custom_call.1} parent=1 // pred_fallthru
      _
    // Predicated region
    $region34: #{tpu_custom_call.1} parent=1 // pred_check
      _
    $region35: #{tpu_custom_call.1} parent=1 // pred_check_branch
      %92 = sbr.rel (0) target = $region37
    $region36: #{tpu_custom_call.1} parent=1 // pred_region
      _
    $region37: #{tpu_custom_call.1} parent=1 // pred_fallthru
      _
    // Predicated region
    $region38: #{tpu_custom_call.1} parent=1 // pred_check
      _
    $region39: #{tpu_custom_call.1} parent=1 // pred_check_branch
      %94 = sbr.rel (0) target = $region41
    $region40: #{tpu_custom_call.1} parent=1 // pred_region
      %s96 = ssub.s32 1024, 1024
      %97 = vsyncadd [#allocation13], %s96
      %s98 = sshll.u32 [#allocation12], 4
      %s99 = int_to_ptr.vmem [resolvable:$true] %s98
      %104 = dma.hbm_to_vmem [thread:$0]  %s9, 1024, %s99, [#allocation13], 64, 64, 4
    $region41: #{tpu_custom_call.1} parent=1 // pred_fallthru
      _
    // Predicated region
    $region42: #{tpu_custom_call.1} parent=1 // pred_check
      _
    $region43: #{tpu_custom_call.1} parent=1 // pred_check_branch
      %106 = sbr.rel (0) target = $region45
    $region44: #{tpu_custom_call.1} parent=1 // pred_region
      _
    $region45: #{tpu_custom_call.1} parent=1 // pred_fallthru
      _
    // Predicated region
    $region46: #{tpu_custom_call.1} parent=1 // pred_check
      _
    $region47: #{tpu_custom_call.1} parent=1 // pred_check_branch
      %108 = sbr.rel (0) target = $region49
    $region48: #{tpu_custom_call.1} parent=1 // pred_region
      _
    $region49: #{tpu_custom_call.1} parent=1 // pred_fallthru
      _
    // Predicated region
    $region50: #{tpu_custom_call.1} parent=1 // pred_check
      _
    $region51: #{tpu_custom_call.1} parent=1 // pred_check_branch
      %110 = sbr.rel (0) target = $region53
    $region52: #{tpu_custom_call.1} parent=1 // pred_region
      %111 = dma.done [#allocation4], 512
    $region53: #{tpu_custom_call.1} parent=1 // pred_fallthru
      _
    // Predicated region
    $region54: #{tpu_custom_call.1} parent=1 // pred_check
      _
    $region55: #{tpu_custom_call.1} parent=1 // pred_check_branch
      %113 = sbr.rel (0) target = $region57
    $region56: #{tpu_custom_call.1} parent=1 // pred_region
      %114 = dma.done [#allocation7], 3072
    $region57: #{tpu_custom_call.1} parent=1 // pred_fallthru
      _
    // Predicated region
    $region58: #{tpu_custom_call.1} parent=1 // pred_check
      _
    $region59: #{tpu_custom_call.1} parent=1 // pred_check_branch
      %116 = sbr.rel (0) target = $region61
    $region60: #{tpu_custom_call.1} parent=1 // pred_region
      %117 = dma.done [#allocation7], 3072
    $region61: #{tpu_custom_call.1} parent=1 // pred_fallthru
      _
    // Predicated region
    $region62: #{tpu_custom_call.1} parent=1 // pred_check
      _
    $region63: #{tpu_custom_call.1} parent=1 // pred_check_branch
      %119 = sbr.rel (0) target = $region65
    $region64: #{tpu_custom_call.1} parent=1 // pred_region
      %120 = dma.done [#allocation10], 3072
    $region65: #{tpu_custom_call.1} parent=1 // pred_fallthru
      _
    // Predicated region
    $region66: #{tpu_custom_call.1} parent=1 // pred_check
      _
    $region67: #{tpu_custom_call.1} parent=1 // pred_check_branch
      %122 = sbr.rel (0) target = $region69
    $region68: #{tpu_custom_call.1} parent=1 // pred_region
      %123 = dma.done [#allocation10], 3072
    $region69: #{tpu_custom_call.1} parent=1 // pred_fallthru
      _
    // Predicated region
    $region70: #{tpu_custom_call.1} parent=1 // pred_check
      _
    $region71: #{tpu_custom_call.1} parent=1 // pred_check_branch
      %125 = sbr.rel (0) target = $region73
    $region72: #{tpu_custom_call.1} parent=1 // pred_region
      %126 = dma.done [#allocation13], 1024
    $region73: #{tpu_custom_call.1} parent=1 // pred_fallthru
      _
    %v128 = vld [vmem:[#allocation3] sm:$0xf]
    %v129 = vld [vmem:[#allocation3 + $0x4] sm:$0xf]
    %v130 = vld [vmem:[#allocation3 + $0x8] sm:$0xf]
    %v131 = vld [vmem:[#allocation3 + $0xc] sm:$0xf]
    %v132 = vld [vmem:[#allocation3 + $0x10] sm:$0xf]
    %v133 = vld [vmem:[#allocation3 + $0x14] sm:$0xf]
    %v134 = vld [vmem:[#allocation3 + $0x18] sm:$0xf]
    %v135 = vld [vmem:[#allocation3 + $0x1c] sm:$0xf]
    %v136 = vld [vmem:[#allocation6] sm:$0xff]
    %v137 = vld [vmem:[#allocation6 + $0x8] sm:$0xf]
    %v138 = vld [vmem:[#allocation6 + $0xc] sm:$0xff]
    %v139 = vld [vmem:[#allocation6 + $0x14] sm:$0xf]
    %v140 = vld [vmem:[#allocation6 + $0x18] sm:$0xff]
    %v141 = vld [vmem:[#allocation6 + $0x20] sm:$0xf]
    %v142 = vld [vmem:[#allocation6 + $0x24] sm:$0xff]
    %v143 = vld [vmem:[#allocation6 + $0x2c] sm:$0xf]
    %v144 = vld [vmem:[#allocation6 + $0x30] sm:$0xff]
    %v145 = vld [vmem:[#allocation6 + $0x38] sm:$0xf]
    %v146 = vld [vmem:[#allocation6 + $0x3c] sm:$0xff]
    %v147 = vld [vmem:[#allocation6 + $0x44] sm:$0xf]
    %v148 = vld [vmem:[#allocation6 + $0x48] sm:$0xff]
    %v149 = vld [vmem:[#allocation6 + $0x50] sm:$0xf]
    %v150 = vld [vmem:[#allocation6 + $0x54] sm:$0xff]
    %v151 = vld [vmem:[#allocation6 + $0x5c] sm:$0xf]
    %v152 = vld [vmem:[#allocation6 + $0x60] sm:$0xff]
    %v153 = vld [vmem:[#allocation6 + $0x68] sm:$0xf]
    %v154 = vld [vmem:[#allocation6 + $0x6c] sm:$0xff]
    %v155 = vld [vmem:[#allocation6 + $0x74] sm:$0xf]
    %v156 = vld [vmem:[#allocation6 + $0x78] sm:$0xff]
    %v157 = vld [vmem:[#allocation6 + $0x80] sm:$0xf]
    %v158 = vld [vmem:[#allocation6 + $0x84] sm:$0xff]
    %v159 = vld [vmem:[#allocation6 + $0x8c] sm:$0xf]
    %v160 = vld [vmem:[#allocation6 + $0x90] sm:$0xff]
    %v161 = vld [vmem:[#allocation6 + $0x98] sm:$0xf]
    %v162 = vld [vmem:[#allocation6 + $0x9c] sm:$0xff]
    %v163 = vld [vmem:[#allocation6 + $0xa4] sm:$0xf]
    %v164 = vld [vmem:[#allocation6 + $0xa8] sm:$0xff]
    %v165 = vld [vmem:[#allocation6 + $0xb0] sm:$0xf]
    %v166 = vld [vmem:[#allocation6 + $0xb4] sm:$0xff]
    %v167 = vld [vmem:[#allocation6 + $0xbc] sm:$0xf]
    %v168 = vld [vmem:[%s3] sm:$0x7]
    %v170 = vlaneseq
    %v171 = vshrl.u32 %v170, 7
    %v172 = vsub.s32 0, %v171
    %v173 = vrot.slane %v168, %v172
    %v174 = vlaneseq
    %v175 = vshrl.u32 %v174, 7
    %v176 = vsub.s32 1, %v175
    %v177 = vrot.slane %v168, %v176
    %v178 = vlaneseq
    %v179 = vshrl.u32 %v178, 7
    %v180 = vsub.s32 2, %v179
    %v181 = vrot.slane %v168, %v180
    %v193 = vunpack.c.l.b16 %v128
    %v194 = vunpack.c.l.b16 %v129
    %v195 = vunpack.c.l.b16 %v130
    %v196 = vunpack.c.l.b16 %v131
    %v197 = vunpack.c.l.b16 %v132
    %v198 = vunpack.c.l.b16 %v133
    %v199 = vunpack.c.l.b16 %v134
    %v200 = vunpack.c.l.b16 %v135
    %v201 = vpack.c.b16 %v194, %v193
    %v202 = vpack.c.b16 %v196, %v195
    %v203 = vpack.c.b16 %v198, %v197
    %v204 = vpack.c.b16 %v200, %v199
    %v241 = vunpack.c.l.b16 %v136
    %v242 = vunpack.c.h.b16 %v136
    %v243 = vunpack.c.l.b16 %v137
    %v244 = vunpack.c.l.b16 %v138
    %v245 = vunpack.c.h.b16 %v138
    %v246 = vunpack.c.l.b16 %v139
    %v247 = vunpack.c.l.b16 %v140
    %v248 = vunpack.c.h.b16 %v140
    %v249 = vunpack.c.l.b16 %v141
    %v250 = vunpack.c.l.b16 %v142
    %v251 = vunpack.c.h.b16 %v142
    %v252 = vunpack.c.l.b16 %v143
    %v253 = vunpack.c.l.b16 %v144
    %v254 = vunpack.c.h.b16 %v144
    %v255 = vunpack.c.l.b16 %v145
    %v256 = vunpack.c.l.b16 %v146
    %v257 = vunpack.c.h.b16 %v146
    %v258 = vunpack.c.l.b16 %v147
    %v259 = vunpack.c.l.b16 %v148
    %v260 = vunpack.c.h.b16 %v148
    %v261 = vunpack.c.l.b16 %v149
    %v262 = vunpack.c.l.b16 %v150
    %v263 = vunpack.c.h.b16 %v150
    %v264 = vunpack.c.l.b16 %v151
    %v265 = vunpack.c.l.b16 %v152
    %v266 = vunpack.c.h.b16 %v152
    %v267 = vunpack.c.l.b16 %v153
    %v268 = vunpack.c.l.b16 %v154
    %v269 = vunpack.c.h.b16 %v154
    %v270 = vunpack.c.l.b16 %v155
    %v271 = vunpack.c.l.b16 %v156
    %v272 = vunpack.c.h.b16 %v156
    %v273 = vunpack.c.l.b16 %v157
    %v274 = vunpack.c.l.b16 %v158
    %v275 = vunpack.c.h.b16 %v158
    %v276 = vunpack.c.l.b16 %v159
    %v277 = vunpack.c.l.b16 %v160
    %v278 = vunpack.c.h.b16 %v160
    %v279 = vunpack.c.l.b16 %v161
    %v280 = vunpack.c.l.b16 %v162
    %v281 = vunpack.c.h.b16 %v162
    %v282 = vunpack.c.l.b16 %v163
    %v283 = vunpack.c.l.b16 %v164
    %v284 = vunpack.c.h.b16 %v164
    %v285 = vunpack.c.l.b16 %v165
    %v286 = vunpack.c.l.b16 %v166
    %v287 = vunpack.c.h.b16 %v166
    %v288 = vunpack.c.l.b16 %v167
    %v289 = vpack.c.b16 %v244, %v241
    %v290 = vpack.c.b16 %v245, %v242
    %v291 = vpack.c.b16 %v246, %v243
    %v292 = vpack.c.b16 %v250, %v247
    %v293 = vpack.c.b16 %v251, %v248
    %v294 = vpack.c.b16 %v252, %v249
    %v295 = vpack.c.b16 %v256, %v253
    %v296 = vpack.c.b16 %v257, %v254
    %v297 = vpack.c.b16 %v258, %v255
    %v298 = vpack.c.b16 %v262, %v259
    %v299 = vpack.c.b16 %v263, %v260
    %v300 = vpack.c.b16 %v264, %v261
    %v301 = vpack.c.b16 %v268, %v265
    %v302 = vpack.c.b16 %v269, %v266
    %v303 = vpack.c.b16 %v270, %v267
    %v304 = vpack.c.b16 %v274, %v271
    %v305 = vpack.c.b16 %v275, %v272
    %v306 = vpack.c.b16 %v276, %v273
    %v307 = vpack.c.b16 %v280, %v277
    %v308 = vpack.c.b16 %v281, %v278
    %v309 = vpack.c.b16 %v282, %v279
    %v310 = vpack.c.b16 %v286, %v283
    %v311 = vpack.c.b16 %v287, %v284
    %v312 = vpack.c.b16 %v288, %v285
    %337 = vmatprep.subr.bf16.mxu0 %v290
    %338 = vmatpush1.bf16.msra.mxu0 %v289
    %339 = vmatprep.subr.bf16.mxu0 %v293
    %340 = vmatpush1.bf16.msra.mxu0 %v292
    %341 = vmatprep.subr.bf16.mxu0 %v296
    %342 = vmatpush1.bf16.msra.mxu0 %v295
    %343 = vmatprep.subr.bf16.mxu0 %v299
    %344 = vmatpush1.bf16.msra.mxu0 %v298
    %345 = vmatprep.subr.bf16.mxu0 %v302
    %346 = vmatpush1.bf16.msra.mxu0 %v301
    %347 = vmatprep.subr.bf16.mxu0 %v305
    %348 = vmatpush1.bf16.msra.mxu0 %v304
    %349 = vmatprep.subr.bf16.mxu0 %v308
    %350 = vmatpush1.bf16.msra.mxu0 %v307
    %351 = vmatprep.subr.bf16.mxu0 %v311
    %352 = vmatpush1.bf16.msra.mxu0 %v310
    %353 = vmatprep.subr.bf16.mxu0 0
    %354 = vmatpush1.bf16.msra.mxu0 0
    %355 = vmatprep.subr.bf16.mxu0 0
    %356 = vmatpush1.bf16.msra.mxu0 0
    %357 = vmatprep.subr.bf16.mxu0 0
    %358 = vmatpush1.bf16.msra.mxu0 0
    %359 = vmatprep.subr.bf16.mxu0 0
    %360 = vmatpush1.bf16.msra.mxu0 0
    %361 = vmatprep.subr.bf16.mxu0 0
    %362 = vmatpush1.bf16.msra.mxu0 0
    %363 = vmatprep.subr.bf16.mxu0 0
    %364 = vmatpush1.bf16.msra.mxu0 0
    %365 = vmatprep.subr.bf16.mxu0 0
    %366 = vmatpush1.bf16.msra.mxu0 0
    %367 = vmatprep.subr.bf16.mxu0 0
    %368 = vmatpush1.bf16.msra.mxu0 0
    %369 = vmatprep.mubr.bf16.mxu0 0
    %370 = vmatmul.mubr.bf16.gmra.mrb[0].mxu0 %v201
    %v371 = vpop.f32.mrb[0].mxu0
    %v372 = vadd.f32 %v173, %v371
    %v373 = vpop.f32.mrb[0].mxu0
    %v374 = vadd.f32 %v177, %v373
    %v375 = vpop.f32.mrb[0].mxu0
    %v376 = vadd.f32 %v173, %v375
    %v377 = vpop.f32.mrb[0].mxu0
    %v378 = vadd.f32 %v177, %v377
    %379 = vmatprep.mubr.bf16.mxu0 0
    %380 = vmatmul.mubr.bf16.gmra.mrb[0].mxu0 %v202
    %v381 = vpop.f32.mrb[0].mxu0
    %v382 = vadd.f32 %v173, %v381
    %v383 = vpop.f32.mrb[0].mxu0
    %v384 = vadd.f32 %v177, %v383
    %v385 = vpop.f32.mrb[0].mxu0
    %v386 = vadd.f32 %v173, %v385
    %v387 = vpop.f32.mrb[0].mxu0
    %v388 = vadd.f32 %v177, %v387
    %389 = vmatprep.mubr.bf16.mxu0 0
    %390 = vmatmul.mubr.bf16.gmra.mrb[0].mxu0 %v203
    %v391 = vpop.f32.mrb[0].mxu0
    %v392 = vadd.f32 %v173, %v391
    %v393 = vpop.f32.mrb[0].mxu0
    %v394 = vadd.f32 %v177, %v393
    %v395 = vpop.f32.mrb[0].mxu0
    %v396 = vadd.f32 %v173, %v395
    %v397 = vpop.f32.mrb[0].mxu0
    %v398 = vadd.f32 %v177, %v397
    %399 = vmatprep.mubr.bf16.mxu0 0
    %400 = vmatmul.mubr.bf16.gmra.mrb[0].mxu0 %v204
    %v401 = vpop.f32.mrb[0].mxu0
    %v402 = vadd.f32 %v173, %v401
    %v403 = vpop.f32.mrb[0].mxu0
    %v404 = vadd.f32 %v177, %v403
    %v405 = vpop.f32.mrb[0].mxu0
    %v406 = vadd.f32 %v173, %v405
    %v407 = vpop.f32.mrb[0].mxu0
    %v408 = vadd.f32 %v177, %v407
    %409 = vdwg.mxu0
    %410 = vmatprep.subr.bf16.mxu0 0
    %411 = vmatpush1.bf16.msra.mxu0 %v291
    %412 = vmatprep.subr.bf16.mxu0 0
    %413 = vmatpush1.bf16.msra.mxu0 %v294
    %414 = vmatprep.subr.bf16.mxu0 0
    %415 = vmatpush1.bf16.msra.mxu0 %v297
    %416 = vmatprep.subr.bf16.mxu0 0
    %417 = vmatpush1.bf16.msra.mxu0 %v300
    %418 = vmatprep.subr.bf16.mxu0 0
    %419 = vmatpush1.bf16.msra.mxu0 %v303
    %420 = vmatprep.subr.bf16.mxu0 0
    %421 = vmatpush1.bf16.msra.mxu0 %v306
    %422 = vmatprep.subr.bf16.mxu0 0
    %423 = vmatpush1.bf16.msra.mxu0 %v309
    %424 = vmatprep.subr.bf16.mxu0 0
    %425 = vmatpush1.bf16.msra.mxu0 %v312
    %426 = vmatprep.subr.bf16.mxu0 0
    %427 = vmatpush1.bf16.msra.mxu0 0
    %428 = vmatprep.subr.bf16.mxu0 0
    %429 = vmatpush1.bf16.msra.mxu0 0
    %430 = vmatprep.subr.bf16.mxu0 0
    %431 = vmatpush1.bf16.msra.mxu0 0
    %432 = vmatprep.subr.bf16.mxu0 0
    %433 = vmatpush1.bf16.msra.mxu0 0
    %434 = vmatprep.subr.bf16.mxu0 0
    %435 = vmatpush1.bf16.msra.mxu0 0
    %436 = vmatprep.subr.bf16.mxu0 0
    %437 = vmatpush1.bf16.msra.mxu0 0
    %438 = vmatprep.subr.bf16.mxu0 0
    %439 = vmatpush1.bf16.msra.mxu0 0
    %440 = vmatprep.subr.bf16.mxu0 0
    %441 = vmatpush1.bf16.msra.mxu0 0
    %442 = vmatprep.mubr.bf16.mxu0 0
    %443 = vmatmul.mubr.bf16.gmra.mrb[0].mxu0 %v201
    %v444 = vpop.f32.mrb[0].mxu0
    %v445 = vadd.f32 %v181, %v444
    %v446 = vpop.f32.mrb[0].mxu0
    %v447 = vpop.f32.mrb[0].mxu0
    %v448 = vadd.f32 %v181, %v447
    %v449 = vpop.f32.mrb[0].mxu0
    %450 = vmatprep.mubr.bf16.mxu0 0
    %451 = vmatmul.mubr.bf16.gmra.mrb[0].mxu0 %v202
    %v452 = vpop.f32.mrb[0].mxu0
    %v453 = vadd.f32 %v181, %v452
    %v454 = vpop.f32.mrb[0].mxu0
    %v455 = vpop.f32.mrb[0].mxu0
    %v456 = vadd.f32 %v181, %v455
    %v457 = vpop.f32.mrb[0].mxu0
    %458 = vmatprep.mubr.bf16.mxu0 0
    %459 = vmatmul.mubr.bf16.gmra.mrb[0].mxu0 %v203
    %v460 = vpop.f32.mrb[0].mxu0
    %v461 = vadd.f32 %v181, %v460
    %v462 = vpop.f32.mrb[0].mxu0
    %v463 = vpop.f32.mrb[0].mxu0
    %v464 = vadd.f32 %v181, %v463
    %v465 = vpop.f32.mrb[0].mxu0
    %466 = vmatprep.mubr.bf16.mxu0 0
    %467 = vmatmul.mubr.bf16.gmra.mrb[0].mxu0 %v204
    %v468 = vpop.f32.mrb[0].mxu0
    %v469 = vadd.f32 %v181, %v468
    %v470 = vpop.f32.mrb[0].mxu0
    %v471 = vpop.f32.mrb[0].mxu0
    %v472 = vadd.f32 %v181, %v471
    %v473 = vpop.f32.mrb[0].mxu0
    %474 = vdwg.mxu0
    %v475 = vld [vmem:[#allocation8] sm:$0xff]
    %v476 = vld [vmem:[#allocation8 + $0x8] sm:$0xf]
    %v477 = vld [vmem:[#allocation8 + $0xc] sm:$0xff]
    %v478 = vld [vmem:[#allocation8 + $0x14] sm:$0xf]
    %v479 = vld [vmem:[#allocation8 + $0x18] sm:$0xff]
    %v480 = vld [vmem:[#allocation8 + $0x20] sm:$0xf]
    %v481 = vld [vmem:[#allocation8 + $0x24] sm:$0xff]
    %v482 = vld [vmem:[#allocation8 + $0x2c] sm:$0xf]
    %v483 = vld [vmem:[#allocation8 + $0x30] sm:$0xff]
    %v484 = vld [vmem:[#allocation8 + $0x38] sm:$0xf]
    %v485 = vld [vmem:[#allocation8 + $0x3c] sm:$0xff]
    %v486 = vld [vmem:[#allocation8 + $0x44] sm:$0xf]
    %v487 = vld [vmem:[#allocation8 + $0x48] sm:$0xff]
    %v488 = vld [vmem:[#allocation8 + $0x50] sm:$0xf]
    %v489 = vld [vmem:[#allocation8 + $0x54] sm:$0xff]
    %v490 = vld [vmem:[#allocation8 + $0x5c] sm:$0xf]
    %v491 = vld [vmem:[#allocation8 + $0x60] sm:$0xff]
    %v492 = vld [vmem:[#allocation8 + $0x68] sm:$0xf]
    %v493 = vld [vmem:[#allocation8 + $0x6c] sm:$0xff]
    %v494 = vld [vmem:[#allocation8 + $0x74] sm:$0xf]
    %v495 = vld [vmem:[#allocation8 + $0x78] sm:$0xff]
    %v496 = vld [vmem:[#allocation8 + $0x80] sm:$0xf]
    %v497 = vld [vmem:[#allocation8 + $0x84] sm:$0xff]
    %v498 = vld [vmem:[#allocation8 + $0x8c] sm:$0xf]
    %v499 = vld [vmem:[#allocation8 + $0x90] sm:$0xff]
    %v500 = vld [vmem:[#allocation8 + $0x98] sm:$0xf]
    %v501 = vld [vmem:[#allocation8 + $0x9c] sm:$0xff]
    %v502 = vld [vmem:[#allocation8 + $0xa4] sm:$0xf]
    %v503 = vld [vmem:[#allocation8 + $0xa8] sm:$0xff]
    %v504 = vld [vmem:[#allocation8 + $0xb0] sm:$0xf]
    %v505 = vld [vmem:[#allocation8 + $0xb4] sm:$0xff]
    %v506 = vld [vmem:[#allocation8 + $0xbc] sm:$0xf]
    %v507 = vld [vmem:[%s4] sm:$0x1]
    %v509 = vlaneseq
    %v510 = vshrl.u32 %v509, 7
    %v511 = vsub.s32 0, %v510
    %v512 = vrot.slane %v507, %v511
    %v514 = vld [vmem:[%s11] sm:$0xff]
    %v515 = vpack.c.bf16 %v514, %v514
    %v548 = vunpack.c.l.b16 %v475
    %v549 = vunpack.c.h.b16 %v475
    %v550 = vunpack.c.l.b16 %v476
    %v551 = vunpack.c.l.b16 %v477
    %v552 = vunpack.c.h.b16 %v477
    %v553 = vunpack.c.l.b16 %v478
    %v554 = vunpack.c.l.b16 %v479
    %v555 = vunpack.c.h.b16 %v479
    %v556 = vunpack.c.l.b16 %v480
    %v557 = vunpack.c.l.b16 %v481
    %v558 = vunpack.c.h.b16 %v481
    %v559 = vunpack.c.l.b16 %v482
    %v560 = vunpack.c.l.b16 %v483
    %v561 = vunpack.c.h.b16 %v483
    %v562 = vunpack.c.l.b16 %v484
    %v563 = vunpack.c.l.b16 %v485
    %v564 = vunpack.c.h.b16 %v485
    %v565 = vunpack.c.l.b16 %v486
    %v566 = vunpack.c.l.b16 %v487
    %v567 = vunpack.c.h.b16 %v487
    %v568 = vunpack.c.l.b16 %v488
    %v569 = vunpack.c.l.b16 %v489
    %v570 = vunpack.c.h.b16 %v489
    %v571 = vunpack.c.l.b16 %v490
    %v572 = vunpack.c.l.b16 %v491
    %v573 = vunpack.c.h.b16 %v491
    %v574 = vunpack.c.l.b16 %v492
    %v575 = vunpack.c.l.b16 %v493
    %v576 = vunpack.c.h.b16 %v493
    %v577 = vunpack.c.l.b16 %v494
    %v578 = vunpack.c.l.b16 %v495
    %v579 = vunpack.c.h.b16 %v495
    %v580 = vunpack.c.l.b16 %v496
    %v581 = vunpack.c.l.b16 %v497
    %v582 = vunpack.c.h.b16 %v497
    %v583 = vunpack.c.l.b16 %v498
    %v584 = vunpack.c.l.b16 %v499
    %v585 = vunpack.c.h.b16 %v499
    %v586 = vunpack.c.l.b16 %v500
    %v587 = vunpack.c.l.b16 %v501
    %v588 = vunpack.c.h.b16 %v501
    %v589 = vunpack.c.l.b16 %v502
    %v590 = vunpack.c.l.b16 %v503
    %v591 = vunpack.c.h.b16 %v503
    %v592 = vunpack.c.l.b16 %v504
    %v593 = vunpack.c.l.b16 %v505
    %v594 = vunpack.c.h.b16 %v505
    %v595 = vunpack.c.l.b16 %v506
    %v596 = vpack.c.b16 %v551, %v548
    %v597 = vpack.c.b16 %v552, %v549
    %v598 = vpack.c.b16 %v553, %v550
    %v599 = vpack.c.b16 %v557, %v554
    %v600 = vpack.c.b16 %v558, %v555
    %v601 = vpack.c.b16 %v559, %v556
    %v602 = vpack.c.b16 %v563, %v560
    %v603 = vpack.c.b16 %v564, %v561
    %v604 = vpack.c.b16 %v565, %v562
    %v605 = vpack.c.b16 %v569, %v566
    %v606 = vpack.c.b16 %v570, %v567
    %v607 = vpack.c.b16 %v571, %v568
    %v608 = vpack.c.b16 %v575, %v572
    %v609 = vpack.c.b16 %v576, %v573
    %v610 = vpack.c.b16 %v577, %v574
    %v611 = vpack.c.b16 %v581, %v578
    %v612 = vpack.c.b16 %v582, %v579
    %v613 = vpack.c.b16 %v583, %v580
    %v614 = vpack.c.b16 %v587, %v584
    %v615 = vpack.c.b16 %v588, %v585
    %v616 = vpack.c.b16 %v589, %v586
    %v617 = vpack.c.b16 %v593, %v590
    %v618 = vpack.c.b16 %v594, %v591
    %v619 = vpack.c.b16 %v595, %v592
    %644 = vmatprep.subr.bf16.mxu0 %v597
    %645 = vmatpush1.bf16.msra.mxu0 %v596
    %646 = vmatprep.subr.bf16.mxu0 %v600
    %647 = vmatpush1.bf16.msra.mxu0 %v599
    %648 = vmatprep.subr.bf16.mxu0 %v603
    %649 = vmatpush1.bf16.msra.mxu0 %v602
    %650 = vmatprep.subr.bf16.mxu0 %v606
    %651 = vmatpush1.bf16.msra.mxu0 %v605
    %652 = vmatprep.subr.bf16.mxu0 %v609
    %653 = vmatpush1.bf16.msra.mxu0 %v608
    %654 = vmatprep.subr.bf16.mxu0 %v612
    %655 = vmatpush1.bf16.msra.mxu0 %v611
    %656 = vmatprep.subr.bf16.mxu0 %v615
    %657 = vmatpush1.bf16.msra.mxu0 %v614
    %658 = vmatprep.subr.bf16.mxu0 %v618
    %659 = vmatpush1.bf16.msra.mxu0 %v617
    %660 = vmatprep.subr.bf16.mxu0 0
    %661 = vmatpush1.bf16.msra.mxu0 0
    %662 = vmatprep.subr.bf16.mxu0 0
    %663 = vmatpush1.bf16.msra.mxu0 0
    %664 = vmatprep.subr.bf16.mxu0 0
    %665 = vmatpush1.bf16.msra.mxu0 0
    %666 = vmatprep.subr.bf16.mxu0 0
    %667 = vmatpush1.bf16.msra.mxu0 0
    %668 = vmatprep.subr.bf16.mxu0 0
    %669 = vmatpush1.bf16.msra.mxu0 0
    %670 = vmatprep.subr.bf16.mxu0 0
    %671 = vmatpush1.bf16.msra.mxu0 0
    %672 = vmatprep.subr.bf16.mxu0 0
    %673 = vmatpush1.bf16.msra.mxu0 0
    %674 = vmatprep.subr.bf16.mxu0 0
    %675 = vmatpush1.bf16.msra.mxu0 0
    %676 = vmatprep.mubr.bf16.mxu0 0
    %677 = vmatmul.mubr.bf16.gmra.mrb[0].mxu0 %v515
    %v678 = vpop.f32.mrb[0].mxu0
    %v679 = vadd.f32 0.0, %v678
    %v680 = vpop.f32.mrb[0].mxu0
    %v681 = vadd.f32 0.0, %v680
    %v682 = vpop.f32.mrb[0].mxu0
    %v683 = vpop.f32.mrb[0].mxu0
    %684 = vdwg.mxu0
    %685 = vmatprep.subr.bf16.mxu0 0
    %686 = vmatpush1.bf16.msra.mxu0 %v598
    %687 = vmatprep.subr.bf16.mxu0 0
    %688 = vmatpush1.bf16.msra.mxu0 %v601
    %689 = vmatprep.subr.bf16.mxu0 0
    %690 = vmatpush1.bf16.msra.mxu0 %v604
    %691 = vmatprep.subr.bf16.mxu0 0
    %692 = vmatpush1.bf16.msra.mxu0 %v607
    %693 = vmatprep.subr.bf16.mxu0 0
    %694 = vmatpush1.bf16.msra.mxu0 %v610
    %695 = vmatprep.subr.bf16.mxu0 0
    %696 = vmatpush1.bf16.msra.mxu0 %v613
    %697 = vmatprep.subr.bf16.mxu0 0
    %698 = vmatpush1.bf16.msra.mxu0 %v616
    %699 = vmatprep.subr.bf16.mxu0 0
    %700 = vmatpush1.bf16.msra.mxu0 %v619
    %701 = vmatprep.subr.bf16.mxu0 0
    %702 = vmatpush1.bf16.msra.mxu0 0
    %703 = vmatprep.subr.bf16.mxu0 0
    %704 = vmatpush1.bf16.msra.mxu0 0
    %705 = vmatprep.subr.bf16.mxu0 0
    %706 = vmatpush1.bf16.msra.mxu0 0
    %707 = vmatprep.subr.bf16.mxu0 0
    %708 = vmatpush1.bf16.msra.mxu0 0
    %709 = vmatprep.subr.bf16.mxu0 0
    %710 = vmatpush1.bf16.msra.mxu0 0
    %711 = vmatprep.subr.bf16.mxu0 0
    %712 = vmatpush1.bf16.msra.mxu0 0
    %713 = vmatprep.subr.bf16.mxu0 0
    %714 = vmatpush1.bf16.msra.mxu0 0
    %715 = vmatprep.subr.bf16.mxu0 0
    %716 = vmatpush1.bf16.msra.mxu0 0
    %717 = vmatprep.mubr.bf16.mxu0 0
    %718 = vmatmul.mubr.bf16.gmra.mrb[0].mxu0 %v515
    %v719 = vpop.f32.mrb[0].mxu0
    %v720 = vadd.f32 0.0, %v719
    %v721 = vpop.f32.mrb[0].mxu0
    %v722 = vpop.f32.mrb[0].mxu0
    %v723 = vpop.f32.mrb[0].mxu0
    %724 = vdwg.mxu0
    %v725 = vadd.f32 %v372, %v679
    %v726 = vxor.u32 %v725, 2147483648
    %v727 = vmul.f32 %v726, 1.442695
    %v728 = vpow.pop %v727
    %v729 = vadd.f32 %v728, 1.0
    %v730 = vrcp.pop %v729
    %v731 = vmul.f32 1.0, %v730
    %v732 = vadd.f32 %v374, %v681
    %v733 = vxor.u32 %v732, 2147483648
    %v734 = vmul.f32 %v733, 1.442695
    %v735 = vpow.pop %v734
    %v736 = vadd.f32 %v735, 1.0
    %v737 = vrcp.pop %v736
    %v738 = vmul.f32 1.0, %v737
    %v739 = vadd.f32 %v720, %v512
    %v740 = vmul.f32 %v731, %v739
    %v741 = vadd.f32 %v445, %v740
    %v742 = vtanh.pop %v741
    %v743 = vsub.f32 %v514, %v742
    %v744 = vmul.f32 %v738, %v743
    %v745 = vadd.f32 %v742, %v744
    %746 = vst [vmem:[#allocation2] sm:$0xff] %v745
    %v747 = vpack.c.bf16 %v745, %v745
    %748 = vmatprep.subr.bf16.mxu0 %v597
    %749 = vmatpush1.bf16.msra.mxu0 %v596
    %750 = vmatprep.subr.bf16.mxu0 %v600
    %751 = vmatpush1.bf16.msra.mxu0 %v599
    %752 = vmatprep.subr.bf16.mxu0 %v603
    %753 = vmatpush1.bf16.msra.mxu0 %v602
    %754 = vmatprep.subr.bf16.mxu0 %v606
    %755 = vmatpush1.bf16.msra.mxu0 %v605
    %756 = vmatprep.subr.bf16.mxu0 %v609
    %757 = vmatpush1.bf16.msra.mxu0 %v608
    %758 = vmatprep.subr.bf16.mxu0 %v612
    %759 = vmatpush1.bf16.msra.mxu0 %v611
    %760 = vmatprep.subr.bf16.mxu0 %v615
    %761 = vmatpush1.bf16.msra.mxu0 %v614
    %762 = vmatprep.subr.bf16.mxu0 %v618
    %763 = vmatpush1.bf16.msra.mxu0 %v617
    %764 = vmatprep.subr.bf16.mxu0 0
    %765 = vmatpush1.bf16.msra.mxu0 0
    %766 = vmatprep.subr.bf16.mxu0 0
    %767 = vmatpush1.bf16.msra.mxu0 0
    %768 = vmatprep.subr.bf16.mxu0 0
    %769 = vmatpush1.bf16.msra.mxu0 0
    %770 = vmatprep.subr.bf16.mxu0 0
    %771 = vmatpush1.bf16.msra.mxu0 0
    %772 = vmatprep.subr.bf16.mxu0 0
    %773 = vmatpush1.bf16.msra.mxu0 0
    %774 = vmatprep.subr.bf16.mxu0 0
    %775 = vmatpush1.bf16.msra.mxu0 0
    %776 = vmatprep.subr.bf16.mxu0 0
    %777 = vmatpush1.bf16.msra.mxu0 0
    %778 = vmatprep.subr.bf16.mxu0 0
    %779 = vmatpush1.bf16.msra.mxu0 0
    %780 = vmatprep.mubr.bf16.mxu0 0
    %781 = vmatmul.mubr.bf16.gmra.mrb[0].mxu0 %v747
    %v782 = vpop.f32.mrb[0].mxu0
    %v783 = vadd.f32 0.0, %v782
    %v784 = vpop.f32.mrb[0].mxu0
    %v785 = vadd.f32 0.0, %v784
    %v786 = vpop.f32.mrb[0].mxu0
    %v787 = vpop.f32.mrb[0].mxu0
    %788 = vdwg.mxu0
    %789 = vmatprep.subr.bf16.mxu0 0
    %790 = vmatpush1.bf16.msra.mxu0 %v598
    %791 = vmatprep.subr.bf16.mxu0 0
    %792 = vmatpush1.bf16.msra.mxu0 %v601
    %793 = vmatprep.subr.bf16.mxu0 0
    %794 = vmatpush1.bf16.msra.mxu0 %v604
    %795 = vmatprep.subr.bf16.mxu0 0
    %796 = vmatpush1.bf16.msra.mxu0 %v607
    %797 = vmatprep.subr.bf16.mxu0 0
    %798 = vmatpush1.bf16.msra.mxu0 %v610
    %799 = vmatprep.subr.bf16.mxu0 0
    %800 = vmatpush1.bf16.msra.mxu0 %v613
    %801 = vmatprep.subr.bf16.mxu0 0
    %802 = vmatpush1.bf16.msra.mxu0 %v616
    %803 = vmatprep.subr.bf16.mxu0 0
    %804 = vmatpush1.bf16.msra.mxu0 %v619
    %805 = vmatprep.subr.bf16.mxu0 0
    %806 = vmatpush1.bf16.msra.mxu0 0
    %807 = vmatprep.subr.bf16.mxu0 0
    %808 = vmatpush1.bf16.msra.mxu0 0
    %809 = vmatprep.subr.bf16.mxu0 0
    %810 = vmatpush1.bf16.msra.mxu0 0
    %811 = vmatprep.subr.bf16.mxu0 0
    %812 = vmatpush1.bf16.msra.mxu0 0
    %813 = vmatprep.subr.bf16.mxu0 0
    %814 = vmatpush1.bf16.msra.mxu0 0
    %815 = vmatprep.subr.bf16.mxu0 0
    %816 = vmatpush1.bf16.msra.mxu0 0
    %817 = vmatprep.subr.bf16.mxu0 0
    %818 = vmatpush1.bf16.msra.mxu0 0
    %819 = vmatprep.subr.bf16.mxu0 0
    %820 = vmatpush1.bf16.msra.mxu0 0
    %821 = vmatprep.mubr.bf16.mxu0 0
    %822 = vmatmul.mubr.bf16.gmra.mrb[0].mxu0 %v747
    %v823 = vpop.f32.mrb[0].mxu0
    %v824 = vadd.f32 0.0, %v823
    %v825 = vpop.f32.mrb[0].mxu0
    %v826 = vpop.f32.mrb[0].mxu0
    %v827 = vpop.f32.mrb[0].mxu0
    %828 = vdwg.mxu0
    %v829 = vadd.f32 %v376, %v783
    %v830 = vxor.u32 %v829, 2147483648
    %v831 = vmul.f32 %v830, 1.442695
    %v832 = vpow.pop %v831
    %v833 = vadd.f32 %v832, 1.0
    %v834 = vrcp.pop %v833
    %v835 = vmul.f32 1.0, %v834
    %v836 = vadd.f32 %v378, %v785
    %v837 = vxor.u32 %v836, 2147483648
    %v838 = vmul.f32 %v837, 1.442695
    %v839 = vpow.pop %v838
    %v840 = vadd.f32 %v839, 1.0
    %v841 = vrcp.pop %v840
    %v842 = vmul.f32 1.0, %v841
    %v843 = vadd.f32 %v824, %v512
    %v844 = vmul.f32 %v835, %v843
    %v845 = vadd.f32 %v448, %v844
    %v846 = vtanh.pop %v845
    %v847 = vsub.f32 %v745, %v846
    %v848 = vmul.f32 %v842, %v847
    %v849 = vadd.f32 %v846, %v848
    %850 = vst [vmem:[#allocation2 + $0x8] sm:$0xff] %v849
    %v851 = vpack.c.bf16 %v849, %v849
    %852 = vmatprep.subr.bf16.mxu0 %v597
    %853 = vmatpush1.bf16.msra.mxu0 %v596
    %854 = vmatprep.subr.bf16.mxu0 %v600
    %855 = vmatpush1.bf16.msra.mxu0 %v599
    %856 = vmatprep.subr.bf16.mxu0 %v603
    %857 = vmatpush1.bf16.msra.mxu0 %v602
    %858 = vmatprep.subr.bf16.mxu0 %v606
    %859 = vmatpush1.bf16.msra.mxu0 %v605
    %860 = vmatprep.subr.bf16.mxu0 %v609
    %861 = vmatpush1.bf16.msra.mxu0 %v608
    %862 = vmatprep.subr.bf16.mxu0 %v612
    %863 = vmatpush1.bf16.msra.mxu0 %v611
    %864 = vmatprep.subr.bf16.mxu0 %v615
    %865 = vmatpush1.bf16.msra.mxu0 %v614
    %866 = vmatprep.subr.bf16.mxu0 %v618
    %867 = vmatpush1.bf16.msra.mxu0 %v617
    %868 = vmatprep.subr.bf16.mxu0 0
    %869 = vmatpush1.bf16.msra.mxu0 0
    %870 = vmatprep.subr.bf16.mxu0 0
    %871 = vmatpush1.bf16.msra.mxu0 0
    %872 = vmatprep.subr.bf16.mxu0 0
    %873 = vmatpush1.bf16.msra.mxu0 0
    %874 = vmatprep.subr.bf16.mxu0 0
    %875 = vmatpush1.bf16.msra.mxu0 0
    %876 = vmatprep.subr.bf16.mxu0 0
    %877 = vmatpush1.bf16.msra.mxu0 0
    %878 = vmatprep.subr.bf16.mxu0 0
    %879 = vmatpush1.bf16.msra.mxu0 0
    %880 = vmatprep.subr.bf16.mxu0 0
    %881 = vmatpush1.bf16.msra.mxu0 0
    %882 = vmatprep.subr.bf16.mxu0 0
    %883 = vmatpush1.bf16.msra.mxu0 0
    %884 = vmatprep.mubr.bf16.mxu0 0
    %885 = vmatmul.mubr.bf16.gmra.mrb[0].mxu0 %v851
    %v886 = vpop.f32.mrb[0].mxu0
    %v887 = vadd.f32 0.0, %v886
    %v888 = vpop.f32.mrb[0].mxu0
    %v889 = vadd.f32 0.0, %v888
    %v890 = vpop.f32.mrb[0].mxu0
    %v891 = vpop.f32.mrb[0].mxu0
    %892 = vdwg.mxu0
    %893 = vmatprep.subr.bf16.mxu0 0
    %894 = vmatpush1.bf16.msra.mxu0 %v598
    %895 = vmatprep.subr.bf16.mxu0 0
    %896 = vmatpush1.bf16.msra.mxu0 %v601
    %897 = vmatprep.subr.bf16.mxu0 0
    %898 = vmatpush1.bf16.msra.mxu0 %v604
    %899 = vmatprep.subr.bf16.mxu0 0
    %900 = vmatpush1.bf16.msra.mxu0 %v607
    %901 = vmatprep.subr.bf16.mxu0 0
    %902 = vmatpush1.bf16.msra.mxu0 %v610
    %903 = vmatprep.subr.bf16.mxu0 0
    %904 = vmatpush1.bf16.msra.mxu0 %v613
    %905 = vmatprep.subr.bf16.mxu0 0
    %906 = vmatpush1.bf16.msra.mxu0 %v616
    %907 = vmatprep.subr.bf16.mxu0 0
    %908 = vmatpush1.bf16.msra.mxu0 %v619
    %909 = vmatprep.subr.bf16.mxu0 0
    %910 = vmatpush1.bf16.msra.mxu0 0
    %911 = vmatprep.subr.bf16.mxu0 0
    %912 = vmatpush1.bf16.msra.mxu0 0
    %913 = vmatprep.subr.bf16.mxu0 0
    %914 = vmatpush1.bf16.msra.mxu0 0
    %915 = vmatprep.subr.bf16.mxu0 0
    %916 = vmatpush1.bf16.msra.mxu0 0
    %917 = vmatprep.subr.bf16.mxu0 0
    %918 = vmatpush1.bf16.msra.mxu0 0
    %919 = vmatprep.subr.bf16.mxu0 0
    %920 = vmatpush1.bf16.msra.mxu0 0
    %921 = vmatprep.subr.bf16.mxu0 0
    %922 = vmatpush1.bf16.msra.mxu0 0
    %923 = vmatprep.subr.bf16.mxu0 0
    %924 = vmatpush1.bf16.msra.mxu0 0
    %925 = vmatprep.mubr.bf16.mxu0 0
    %926 = vmatmul.mubr.bf16.gmra.mrb[0].mxu0 %v851
    %v927 = vpop.f32.mrb[0].mxu0
    %v928 = vadd.f32 0.0, %v927
    %v929 = vpop.f32.mrb[0].mxu0
    %v930 = vpop.f32.mrb[0].mxu0
    %v931 = vpop.f32.mrb[0].mxu0
    %932 = vdwg.mxu0
    %v933 = vadd.f32 %v382, %v887
    %v934 = vxor.u32 %v933, 2147483648
    %v935 = vmul.f32 %v934, 1.442695
    %v936 = vpow.pop %v935
    %v937 = vadd.f32 %v936, 1.0
    %v938 = vrcp.pop %v937
    %v939 = vmul.f32 1.0, %v938
    %v940 = vadd.f32 %v384, %v889
    %v941 = vxor.u32 %v940, 2147483648
    %v942 = vmul.f32 %v941, 1.442695
    %v943 = vpow.pop %v942
    %v944 = vadd.f32 %v943, 1.0
    %v945 = vrcp.pop %v944
    %v946 = vmul.f32 1.0, %v945
    %v947 = vadd.f32 %v928, %v512
    %v948 = vmul.f32 %v939, %v947
    %v949 = vadd.f32 %v453, %v948
    %v950 = vtanh.pop %v949
    %v951 = vsub.f32 %v849, %v950
    %v952 = vmul.f32 %v946, %v951
    %v953 = vadd.f32 %v950, %v952
    %954 = vst [vmem:[#allocation2 + $0x10] sm:$0xff] %v953
    %v955 = vpack.c.bf16 %v953, %v953
    %956 = vmatprep.subr.bf16.mxu0 %v597
    %957 = vmatpush1.bf16.msra.mxu0 %v596
    %958 = vmatprep.subr.bf16.mxu0 %v600
    %959 = vmatpush1.bf16.msra.mxu0 %v599
    %960 = vmatprep.subr.bf16.mxu0 %v603
    %961 = vmatpush1.bf16.msra.mxu0 %v602
    %962 = vmatprep.subr.bf16.mxu0 %v606
    %963 = vmatpush1.bf16.msra.mxu0 %v605
    %964 = vmatprep.subr.bf16.mxu0 %v609
    %965 = vmatpush1.bf16.msra.mxu0 %v608
    %966 = vmatprep.subr.bf16.mxu0 %v612
    %967 = vmatpush1.bf16.msra.mxu0 %v611
    %968 = vmatprep.subr.bf16.mxu0 %v615
    %969 = vmatpush1.bf16.msra.mxu0 %v614
    %970 = vmatprep.subr.bf16.mxu0 %v618
    %971 = vmatpush1.bf16.msra.mxu0 %v617
    %972 = vmatprep.subr.bf16.mxu0 0
    %973 = vmatpush1.bf16.msra.mxu0 0
    %974 = vmatprep.subr.bf16.mxu0 0
    %975 = vmatpush1.bf16.msra.mxu0 0
    %976 = vmatprep.subr.bf16.mxu0 0
    %977 = vmatpush1.bf16.msra.mxu0 0
    %978 = vmatprep.subr.bf16.mxu0 0
    %979 = vmatpush1.bf16.msra.mxu0 0
    %980 = vmatprep.subr.bf16.mxu0 0
    %981 = vmatpush1.bf16.msra.mxu0 0
    %982 = vmatprep.subr.bf16.mxu0 0
    %983 = vmatpush1.bf16.msra.mxu0 0
    %984 = vmatprep.subr.bf16.mxu0 0
    %985 = vmatpush1.bf16.msra.mxu0 0
    %986 = vmatprep.subr.bf16.mxu0 0
    %987 = vmatpush1.bf16.msra.mxu0 0
    %988 = vmatprep.mubr.bf16.mxu0 0
    %989 = vmatmul.mubr.bf16.gmra.mrb[0].mxu0 %v955
    %v990 = vpop.f32.mrb[0].mxu0
    %v991 = vadd.f32 0.0, %v990
    %v992 = vpop.f32.mrb[0].mxu0
    %v993 = vadd.f32 0.0, %v992
    %v994 = vpop.f32.mrb[0].mxu0
    %v995 = vpop.f32.mrb[0].mxu0
    %996 = vdwg.mxu0
    %997 = vmatprep.subr.bf16.mxu0 0
    %998 = vmatpush1.bf16.msra.mxu0 %v598
    %999 = vmatprep.subr.bf16.mxu0 0
    %1000 = vmatpush1.bf16.msra.mxu0 %v601
    %1001 = vmatprep.subr.bf16.mxu0 0
    %1002 = vmatpush1.bf16.msra.mxu0 %v604
    %1003 = vmatprep.subr.bf16.mxu0 0
    %1004 = vmatpush1.bf16.msra.mxu0 %v607
    %1005 = vmatprep.subr.bf16.mxu0 0
    %1006 = vmatpush1.bf16.msra.mxu0 %v610
    %1007 = vmatprep.subr.bf16.mxu0 0
    %1008 = vmatpush1.bf16.msra.mxu0 %v613
    %1009 = vmatprep.subr.bf16.mxu0 0
    %1010 = vmatpush1.bf16.msra.mxu0 %v616
    %1011 = vmatprep.subr.bf16.mxu0 0
    %1012 = vmatpush1.bf16.msra.mxu0 %v619
    %1013 = vmatprep.subr.bf16.mxu0 0
    %1014 = vmatpush1.bf16.msra.mxu0 0
    %1015 = vmatprep.subr.bf16.mxu0 0
    %1016 = vmatpush1.bf16.msra.mxu0 0
    %1017 = vmatprep.subr.bf16.mxu0 0
    %1018 = vmatpush1.bf16.msra.mxu0 0
    %1019 = vmatprep.subr.bf16.mxu0 0
    %1020 = vmatpush1.bf16.msra.mxu0 0
    %1021 = vmatprep.subr.bf16.mxu0 0
    %1022 = vmatpush1.bf16.msra.mxu0 0
    %1023 = vmatprep.subr.bf16.mxu0 0
    %1024 = vmatpush1.bf16.msra.mxu0 0
    %1025 = vmatprep.subr.bf16.mxu0 0
    %1026 = vmatpush1.bf16.msra.mxu0 0
    %1027 = vmatprep.subr.bf16.mxu0 0
    %1028 = vmatpush1.bf16.msra.mxu0 0
    %1029 = vmatprep.mubr.bf16.mxu0 0
    %1030 = vmatmul.mubr.bf16.gmra.mrb[0].mxu0 %v955
    %v1031 = vpop.f32.mrb[0].mxu0
    %v1032 = vadd.f32 0.0, %v1031
    %v1033 = vpop.f32.mrb[0].mxu0
    %v1034 = vpop.f32.mrb[0].mxu0
    %v1035 = vpop.f32.mrb[0].mxu0
    %1036 = vdwg.mxu0
    %v1037 = vadd.f32 %v386, %v991
    %v1038 = vxor.u32 %v1037, 2147483648
    %v1039 = vmul.f32 %v1038, 1.442695
    %v1040 = vpow.pop %v1039
    %v1041 = vadd.f32 %v1040, 1.0
    %v1042 = vrcp.pop %v1041
    %v1043 = vmul.f32 1.0, %v1042
    %v1044 = vadd.f32 %v388, %v993
    %v1045 = vxor.u32 %v1044, 2147483648
    %v1046 = vmul.f32 %v1045, 1.442695
    %v1047 = vpow.pop %v1046
    %v1048 = vadd.f32 %v1047, 1.0
    %v1049 = vrcp.pop %v1048
    %v1050 = vmul.f32 1.0, %v1049
    %v1051 = vadd.f32 %v1032, %v512
    %v1052 = vmul.f32 %v1043, %v1051
    %v1053 = vadd.f32 %v456, %v1052
    %v1054 = vtanh.pop %v1053
    %v1055 = vsub.f32 %v953, %v1054
    %v1056 = vmul.f32 %v1050, %v1055
    %v1057 = vadd.f32 %v1054, %v1056
    %1058 = vst [vmem:[#allocation2 + $0x18] sm:$0xff] %v1057
    %v1059 = vpack.c.bf16 %v1057, %v1057
    %1060 = vmatprep.subr.bf16.mxu0 %v597
    %1061 = vmatpush1.bf16.msra.mxu0 %v596
    %1062 = vmatprep.subr.bf16.mxu0 %v600
    %1063 = vmatpush1.bf16.msra.mxu0 %v599
    %1064 = vmatprep.subr.bf16.mxu0 %v603
    %1065 = vmatpush1.bf16.msra.mxu0 %v602
    %1066 = vmatprep.subr.bf16.mxu0 %v606
    %1067 = vmatpush1.bf16.msra.mxu0 %v605
    %1068 = vmatprep.subr.bf16.mxu0 %v609
    %1069 = vmatpush1.bf16.msra.mxu0 %v608
    %1070 = vmatprep.subr.bf16.mxu0 %v612
    %1071 = vmatpush1.bf16.msra.mxu0 %v611
    %1072 = vmatprep.subr.bf16.mxu0 %v615
    %1073 = vmatpush1.bf16.msra.mxu0 %v614
    %1074 = vmatprep.subr.bf16.mxu0 %v618
    %1075 = vmatpush1.bf16.msra.mxu0 %v617
    %1076 = vmatprep.subr.bf16.mxu0 0
    %1077 = vmatpush1.bf16.msra.mxu0 0
    %1078 = vmatprep.subr.bf16.mxu0 0
    %1079 = vmatpush1.bf16.msra.mxu0 0
    %1080 = vmatprep.subr.bf16.mxu0 0
    %1081 = vmatpush1.bf16.msra.mxu0 0
    %1082 = vmatprep.subr.bf16.mxu0 0
    %1083 = vmatpush1.bf16.msra.mxu0 0
    %1084 = vmatprep.subr.bf16.mxu0 0
    %1085 = vmatpush1.bf16.msra.mxu0 0
    %1086 = vmatprep.subr.bf16.mxu0 0
    %1087 = vmatpush1.bf16.msra.mxu0 0
    %1088 = vmatprep.subr.bf16.mxu0 0
    %1089 = vmatpush1.bf16.msra.mxu0 0
    %1090 = vmatprep.subr.bf16.mxu0 0
    %1091 = vmatpush1.bf16.msra.mxu0 0
    %1092 = vmatprep.mubr.bf16.mxu0 0
    %1093 = vmatmul.mubr.bf16.gmra.mrb[0].mxu0 %v1059
    %v1094 = vpop.f32.mrb[0].mxu0
    %v1095 = vadd.f32 0.0, %v1094
    %v1096 = vpop.f32.mrb[0].mxu0
    %v1097 = vadd.f32 0.0, %v1096
    %v1098 = vpop.f32.mrb[0].mxu0
    %v1099 = vpop.f32.mrb[0].mxu0
    %1100 = vdwg.mxu0
    %1101 = vmatprep.subr.bf16.mxu0 0
    %1102 = vmatpush1.bf16.msra.mxu0 %v598
    %1103 = vmatprep.subr.bf16.mxu0 0
    %1104 = vmatpush1.bf16.msra.mxu0 %v601
    %1105 = vmatprep.subr.bf16.mxu0 0
    %1106 = vmatpush1.bf16.msra.mxu0 %v604
    %1107 = vmatprep.subr.bf16.mxu0 0
    %1108 = vmatpush1.bf16.msra.mxu0 %v607
    %1109 = vmatprep.subr.bf16.mxu0 0
    %1110 = vmatpush1.bf16.msra.mxu0 %v610
    %1111 = vmatprep.subr.bf16.mxu0 0
    %1112 = vmatpush1.bf16.msra.mxu0 %v613
    %1113 = vmatprep.subr.bf16.mxu0 0
    %1114 = vmatpush1.bf16.msra.mxu0 %v616
    %1115 = vmatprep.subr.bf16.mxu0 0
    %1116 = vmatpush1.bf16.msra.mxu0 %v619
    %1117 = vmatprep.subr.bf16.mxu0 0
    %1118 = vmatpush1.bf16.msra.mxu0 0
    %1119 = vmatprep.subr.bf16.mxu0 0
    %1120 = vmatpush1.bf16.msra.mxu0 0
    %1121 = vmatprep.subr.bf16.mxu0 0
    %1122 = vmatpush1.bf16.msra.mxu0 0
    %1123 = vmatprep.subr.bf16.mxu0 0
    %1124 = vmatpush1.bf16.msra.mxu0 0
    %1125 = vmatprep.subr.bf16.mxu0 0
    %1126 = vmatpush1.bf16.msra.mxu0 0
    %1127 = vmatprep.subr.bf16.mxu0 0
    %1128 = vmatpush1.bf16.msra.mxu0 0
    %1129 = vmatprep.subr.bf16.mxu0 0
    %1130 = vmatpush1.bf16.msra.mxu0 0
    %1131 = vmatprep.subr.bf16.mxu0 0
    %1132 = vmatpush1.bf16.msra.mxu0 0
    %1133 = vmatprep.mubr.bf16.mxu0 0
    %1134 = vmatmul.mubr.bf16.gmra.mrb[0].mxu0 %v1059
    %v1135 = vpop.f32.mrb[0].mxu0
    %v1136 = vadd.f32 0.0, %v1135
    %v1137 = vpop.f32.mrb[0].mxu0
    %v1138 = vpop.f32.mrb[0].mxu0
    %v1139 = vpop.f32.mrb[0].mxu0
    %1140 = vdwg.mxu0
    %v1141 = vadd.f32 %v392, %v1095
    %v1142 = vxor.u32 %v1141, 2147483648
    %v1143 = vmul.f32 %v1142, 1.442695
    %v1144 = vpow.pop %v1143
    %v1145 = vadd.f32 %v1144, 1.0
    %v1146 = vrcp.pop %v1145
    %v1147 = vmul.f32 1.0, %v1146
    %v1148 = vadd.f32 %v394, %v1097
    %v1149 = vxor.u32 %v1148, 2147483648
    %v1150 = vmul.f32 %v1149, 1.442695
    %v1151 = vpow.pop %v1150
    %v1152 = vadd.f32 %v1151, 1.0
    %v1153 = vrcp.pop %v1152
    %v1154 = vmul.f32 1.0, %v1153
    %v1155 = vadd.f32 %v1136, %v512
    %v1156 = vmul.f32 %v1147, %v1155
    %v1157 = vadd.f32 %v461, %v1156
    %v1158 = vtanh.pop %v1157
    %v1159 = vsub.f32 %v1057, %v1158
    %v1160 = vmul.f32 %v1154, %v1159
    %v1161 = vadd.f32 %v1158, %v1160
    %1162 = vst [vmem:[#allocation2 + $0x20] sm:$0xff] %v1161
    %v1163 = vpack.c.bf16 %v1161, %v1161
    %1164 = vmatprep.subr.bf16.mxu0 %v597
    %1165 = vmatpush1.bf16.msra.mxu0 %v596
    %1166 = vmatprep.subr.bf16.mxu0 %v600
    %1167 = vmatpush1.bf16.msra.mxu0 %v599
    %1168 = vmatprep.subr.bf16.mxu0 %v603
    %1169 = vmatpush1.bf16.msra.mxu0 %v602
    %1170 = vmatprep.subr.bf16.mxu0 %v606
    %1171 = vmatpush1.bf16.msra.mxu0 %v605
    %1172 = vmatprep.subr.bf16.mxu0 %v609
    %1173 = vmatpush1.bf16.msra.mxu0 %v608
    %1174 = vmatprep.subr.bf16.mxu0 %v612
    %1175 = vmatpush1.bf16.msra.mxu0 %v611
    %1176 = vmatprep.subr.bf16.mxu0 %v615
    %1177 = vmatpush1.bf16.msra.mxu0 %v614
    %1178 = vmatprep.subr.bf16.mxu0 %v618
    %1179 = vmatpush1.bf16.msra.mxu0 %v617
    %1180 = vmatprep.subr.bf16.mxu0 0
    %1181 = vmatpush1.bf16.msra.mxu0 0
    %1182 = vmatprep.subr.bf16.mxu0 0
    %1183 = vmatpush1.bf16.msra.mxu0 0
    %1184 = vmatprep.subr.bf16.mxu0 0
    %1185 = vmatpush1.bf16.msra.mxu0 0
    %1186 = vmatprep.subr.bf16.mxu0 0
    %1187 = vmatpush1.bf16.msra.mxu0 0
    %1188 = vmatprep.subr.bf16.mxu0 0
    %1189 = vmatpush1.bf16.msra.mxu0 0
    %1190 = vmatprep.subr.bf16.mxu0 0
    %1191 = vmatpush1.bf16.msra.mxu0 0
    %1192 = vmatprep.subr.bf16.mxu0 0
    %1193 = vmatpush1.bf16.msra.mxu0 0
    %1194 = vmatprep.subr.bf16.mxu0 0
    %1195 = vmatpush1.bf16.msra.mxu0 0
    %1196 = vmatprep.mubr.bf16.mxu0 0
    %1197 = vmatmul.mubr.bf16.gmra.mrb[0].mxu0 %v1163
    %v1198 = vpop.f32.mrb[0].mxu0
    %v1199 = vadd.f32 0.0, %v1198
    %v1200 = vpop.f32.mrb[0].mxu0
    %v1201 = vadd.f32 0.0, %v1200
    %v1202 = vpop.f32.mrb[0].mxu0
    %v1203 = vpop.f32.mrb[0].mxu0
    %1204 = vdwg.mxu0
    %1205 = vmatprep.subr.bf16.mxu0 0
    %1206 = vmatpush1.bf16.msra.mxu0 %v598
    %1207 = vmatprep.subr.bf16.mxu0 0
    %1208 = vmatpush1.bf16.msra.mxu0 %v601
    %1209 = vmatprep.subr.bf16.mxu0 0
    %1210 = vmatpush1.bf16.msra.mxu0 %v604
    %1211 = vmatprep.subr.bf16.mxu0 0
    %1212 = vmatpush1.bf16.msra.mxu0 %v607
    %1213 = vmatprep.subr.bf16.mxu0 0
    %1214 = vmatpush1.bf16.msra.mxu0 %v610
    %1215 = vmatprep.subr.bf16.mxu0 0
    %1216 = vmatpush1.bf16.msra.mxu0 %v613
    %1217 = vmatprep.subr.bf16.mxu0 0
    %1218 = vmatpush1.bf16.msra.mxu0 %v616
    %1219 = vmatprep.subr.bf16.mxu0 0
    %1220 = vmatpush1.bf16.msra.mxu0 %v619
    %1221 = vmatprep.subr.bf16.mxu0 0
    %1222 = vmatpush1.bf16.msra.mxu0 0
    %1223 = vmatprep.subr.bf16.mxu0 0
    %1224 = vmatpush1.bf16.msra.mxu0 0
    %1225 = vmatprep.subr.bf16.mxu0 0
    %1226 = vmatpush1.bf16.msra.mxu0 0
    %1227 = vmatprep.subr.bf16.mxu0 0
    %1228 = vmatpush1.bf16.msra.mxu0 0
    %1229 = vmatprep.subr.bf16.mxu0 0
    %1230 = vmatpush1.bf16.msra.mxu0 0
    %1231 = vmatprep.subr.bf16.mxu0 0
    %1232 = vmatpush1.bf16.msra.mxu0 0
    %1233 = vmatprep.subr.bf16.mxu0 0
    %1234 = vmatpush1.bf16.msra.mxu0 0
    %1235 = vmatprep.subr.bf16.mxu0 0
    %1236 = vmatpush1.bf16.msra.mxu0 0
    %1237 = vmatprep.mubr.bf16.mxu0 0
    %1238 = vmatmul.mubr.bf16.gmra.mrb[0].mxu0 %v1163
    %v1239 = vpop.f32.mrb[0].mxu0
    %v1240 = vadd.f32 0.0, %v1239
    %v1241 = vpop.f32.mrb[0].mxu0
    %v1242 = vpop.f32.mrb[0].mxu0
    %v1243 = vpop.f32.mrb[0].mxu0
    %1244 = vdwg.mxu0
    %v1245 = vadd.f32 %v396, %v1199
    %v1246 = vxor.u32 %v1245, 2147483648
    %v1247 = vmul.f32 %v1246, 1.442695
    %v1248 = vpow.pop %v1247
    %v1249 = vadd.f32 %v1248, 1.0
    %v1250 = vrcp.pop %v1249
    %v1251 = vmul.f32 1.0, %v1250
    %v1252 = vadd.f32 %v398, %v1201
    %v1253 = vxor.u32 %v1252, 2147483648
    %v1254 = vmul.f32 %v1253, 1.442695
    %v1255 = vpow.pop %v1254
    %v1256 = vadd.f32 %v1255, 1.0
    %v1257 = vrcp.pop %v1256
    %v1258 = vmul.f32 1.0, %v1257
    %v1259 = vadd.f32 %v1240, %v512
    %v1260 = vmul.f32 %v1251, %v1259
    %v1261 = vadd.f32 %v464, %v1260
    %v1262 = vtanh.pop %v1261
    %v1263 = vsub.f32 %v1161, %v1262
    %v1264 = vmul.f32 %v1258, %v1263
    %v1265 = vadd.f32 %v1262, %v1264
    %1266 = vst [vmem:[#allocation2 + $0x28] sm:$0xff] %v1265
    %v1267 = vpack.c.bf16 %v1265, %v1265
    %1268 = vmatprep.subr.bf16.mxu0 %v597
    %1269 = vmatpush1.bf16.msra.mxu0 %v596
    %1270 = vmatprep.subr.bf16.mxu0 %v600
    %1271 = vmatpush1.bf16.msra.mxu0 %v599
    %1272 = vmatprep.subr.bf16.mxu0 %v603
    %1273 = vmatpush1.bf16.msra.mxu0 %v602
    %1274 = vmatprep.subr.bf16.mxu0 %v606
    %1275 = vmatpush1.bf16.msra.mxu0 %v605
    %1276 = vmatprep.subr.bf16.mxu0 %v609
    %1277 = vmatpush1.bf16.msra.mxu0 %v608
    %1278 = vmatprep.subr.bf16.mxu0 %v612
    %1279 = vmatpush1.bf16.msra.mxu0 %v611
    %1280 = vmatprep.subr.bf16.mxu0 %v615
    %1281 = vmatpush1.bf16.msra.mxu0 %v614
    %1282 = vmatprep.subr.bf16.mxu0 %v618
    %1283 = vmatpush1.bf16.msra.mxu0 %v617
    %1284 = vmatprep.subr.bf16.mxu0 0
    %1285 = vmatpush1.bf16.msra.mxu0 0
    %1286 = vmatprep.subr.bf16.mxu0 0
    %1287 = vmatpush1.bf16.msra.mxu0 0
    %1288 = vmatprep.subr.bf16.mxu0 0
    %1289 = vmatpush1.bf16.msra.mxu0 0
    %1290 = vmatprep.subr.bf16.mxu0 0
    %1291 = vmatpush1.bf16.msra.mxu0 0
    %1292 = vmatprep.subr.bf16.mxu0 0
    %1293 = vmatpush1.bf16.msra.mxu0 0
    %1294 = vmatprep.subr.bf16.mxu0 0
    %1295 = vmatpush1.bf16.msra.mxu0 0
    %1296 = vmatprep.subr.bf16.mxu0 0
    %1297 = vmatpush1.bf16.msra.mxu0 0
    %1298 = vmatprep.subr.bf16.mxu0 0
    %1299 = vmatpush1.bf16.msra.mxu0 0
    %1300 = vmatprep.mubr.bf16.mxu0 0
    %1301 = vmatmul.mubr.bf16.gmra.mrb[0].mxu0 %v1267
    %v1302 = vpop.f32.mrb[0].mxu0
    %v1303 = vadd.f32 0.0, %v1302
    %v1304 = vpop.f32.mrb[0].mxu0
    %v1305 = vadd.f32 0.0, %v1304
    %v1306 = vpop.f32.mrb[0].mxu0
    %v1307 = vpop.f32.mrb[0].mxu0
    %1308 = vdwg.mxu0
    %1309 = vmatprep.subr.bf16.mxu0 0
    %1310 = vmatpush1.bf16.msra.mxu0 %v598
    %1311 = vmatprep.subr.bf16.mxu0 0
    %1312 = vmatpush1.bf16.msra.mxu0 %v601
    %1313 = vmatprep.subr.bf16.mxu0 0
    %1314 = vmatpush1.bf16.msra.mxu0 %v604
    %1315 = vmatprep.subr.bf16.mxu0 0
    %1316 = vmatpush1.bf16.msra.mxu0 %v607
    %1317 = vmatprep.subr.bf16.mxu0 0
    %1318 = vmatpush1.bf16.msra.mxu0 %v610
    %1319 = vmatprep.subr.bf16.mxu0 0
    %1320 = vmatpush1.bf16.msra.mxu0 %v613
    %1321 = vmatprep.subr.bf16.mxu0 0
    %1322 = vmatpush1.bf16.msra.mxu0 %v616
    %1323 = vmatprep.subr.bf16.mxu0 0
    %1324 = vmatpush1.bf16.msra.mxu0 %v619
    %1325 = vmatprep.subr.bf16.mxu0 0
    %1326 = vmatpush1.bf16.msra.mxu0 0
    %1327 = vmatprep.subr.bf16.mxu0 0
    %1328 = vmatpush1.bf16.msra.mxu0 0
    %1329 = vmatprep.subr.bf16.mxu0 0
    %1330 = vmatpush1.bf16.msra.mxu0 0
    %1331 = vmatprep.subr.bf16.mxu0 0
    %1332 = vmatpush1.bf16.msra.mxu0 0
    %1333 = vmatprep.subr.bf16.mxu0 0
    %1334 = vmatpush1.bf16.msra.mxu0 0
    %1335 = vmatprep.subr.bf16.mxu0 0
    %1336 = vmatpush1.bf16.msra.mxu0 0
    %1337 = vmatprep.subr.bf16.mxu0 0
    %1338 = vmatpush1.bf16.msra.mxu0 0
    %1339 = vmatprep.subr.bf16.mxu0 0
    %1340 = vmatpush1.bf16.msra.mxu0 0
    %1341 = vmatprep.mubr.bf16.mxu0 0
    %1342 = vmatmul.mubr.bf16.gmra.mrb[0].mxu0 %v1267
    %v1343 = vpop.f32.mrb[0].mxu0
    %v1344 = vadd.f32 0.0, %v1343
    %v1345 = vpop.f32.mrb[0].mxu0
    %v1346 = vpop.f32.mrb[0].mxu0
    %v1347 = vpop.f32.mrb[0].mxu0
    %1348 = vdwg.mxu0
    %v1349 = vadd.f32 %v402, %v1303
    %v1350 = vxor.u32 %v1349, 2147483648
    %v1351 = vmul.f32 %v1350, 1.442695
    %v1352 = vpow.pop %v1351
    %v1353 = vadd.f32 %v1352, 1.0
    %v1354 = vrcp.pop %v1353
    %v1355 = vmul.f32 1.0, %v1354
    %v1356 = vadd.f32 %v404, %v1305
    %v1357 = vxor.u32 %v1356, 2147483648
    %v1358 = vmul.f32 %v1357, 1.442695
    %v1359 = vpow.pop %v1358
    %v1360 = vadd.f32 %v1359, 1.0
    %v1361 = vrcp.pop %v1360
    %v1362 = vmul.f32 1.0, %v1361
    %v1363 = vadd.f32 %v1344, %v512
    %v1364 = vmul.f32 %v1355, %v1363
    %v1365 = vadd.f32 %v469, %v1364
    %v1366 = vtanh.pop %v1365
    %v1367 = vsub.f32 %v1265, %v1366
    %v1368 = vmul.f32 %v1362, %v1367
    %v1369 = vadd.f32 %v1366, %v1368
    %1370 = vst [vmem:[#allocation2 + $0x30] sm:$0xff] %v1369
    %v1371 = vpack.c.bf16 %v1369, %v1369
    %1372 = vmatprep.subr.bf16.mxu0 %v597
    %1373 = vmatpush1.bf16.msra.mxu0 %v596
    %1374 = vmatprep.subr.bf16.mxu0 %v600
    %1375 = vmatpush1.bf16.msra.mxu0 %v599
    %1376 = vmatprep.subr.bf16.mxu0 %v603
    %1377 = vmatpush1.bf16.msra.mxu0 %v602
    %1378 = vmatprep.subr.bf16.mxu0 %v606
    %1379 = vmatpush1.bf16.msra.mxu0 %v605
    %1380 = vmatprep.subr.bf16.mxu0 %v609
    %1381 = vmatpush1.bf16.msra.mxu0 %v608
    %1382 = vmatprep.subr.bf16.mxu0 %v612
    %1383 = vmatpush1.bf16.msra.mxu0 %v611
    %1384 = vmatprep.subr.bf16.mxu0 %v615
    %1385 = vmatpush1.bf16.msra.mxu0 %v614
    %1386 = vmatprep.subr.bf16.mxu0 %v618
    %1387 = vmatpush1.bf16.msra.mxu0 %v617
    %1388 = vmatprep.subr.bf16.mxu0 0
    %1389 = vmatpush1.bf16.msra.mxu0 0
    %1390 = vmatprep.subr.bf16.mxu0 0
    %1391 = vmatpush1.bf16.msra.mxu0 0
    %1392 = vmatprep.subr.bf16.mxu0 0
    %1393 = vmatpush1.bf16.msra.mxu0 0
    %1394 = vmatprep.subr.bf16.mxu0 0
    %1395 = vmatpush1.bf16.msra.mxu0 0
    %1396 = vmatprep.subr.bf16.mxu0 0
    %1397 = vmatpush1.bf16.msra.mxu0 0
    %1398 = vmatprep.subr.bf16.mxu0 0
    %1399 = vmatpush1.bf16.msra.mxu0 0
    %1400 = vmatprep.subr.bf16.mxu0 0
    %1401 = vmatpush1.bf16.msra.mxu0 0
    %1402 = vmatprep.subr.bf16.mxu0 0
    %1403 = vmatpush1.bf16.msra.mxu0 0
    %1404 = vmatprep.mubr.bf16.mxu0 0
    %1405 = vmatmul.mubr.bf16.gmra.mrb[0].mxu0 %v1371
    %v1406 = vpop.f32.mrb[0].mxu0
    %v1407 = vadd.f32 0.0, %v1406
    %v1408 = vpop.f32.mrb[0].mxu0
    %v1409 = vadd.f32 0.0, %v1408
    %v1410 = vpop.f32.mrb[0].mxu0
    %v1411 = vpop.f32.mrb[0].mxu0
    %1412 = vdwg.mxu0
    %1413 = vmatprep.subr.bf16.mxu0 0
    %1414 = vmatpush1.bf16.msra.mxu0 %v598
    %1415 = vmatprep.subr.bf16.mxu0 0
    %1416 = vmatpush1.bf16.msra.mxu0 %v601
    %1417 = vmatprep.subr.bf16.mxu0 0
    %1418 = vmatpush1.bf16.msra.mxu0 %v604
    %1419 = vmatprep.subr.bf16.mxu0 0
    %1420 = vmatpush1.bf16.msra.mxu0 %v607
    %1421 = vmatprep.subr.bf16.mxu0 0
    %1422 = vmatpush1.bf16.msra.mxu0 %v610
    %1423 = vmatprep.subr.bf16.mxu0 0
    %1424 = vmatpush1.bf16.msra.mxu0 %v613
    %1425 = vmatprep.subr.bf16.mxu0 0
    %1426 = vmatpush1.bf16.msra.mxu0 %v616
    %1427 = vmatprep.subr.bf16.mxu0 0
    %1428 = vmatpush1.bf16.msra.mxu0 %v619
    %1429 = vmatprep.subr.bf16.mxu0 0
    %1430 = vmatpush1.bf16.msra.mxu0 0
    %1431 = vmatprep.subr.bf16.mxu0 0
    %1432 = vmatpush1.bf16.msra.mxu0 0
    %1433 = vmatprep.subr.bf16.mxu0 0
    %1434 = vmatpush1.bf16.msra.mxu0 0
    %1435 = vmatprep.subr.bf16.mxu0 0
    %1436 = vmatpush1.bf16.msra.mxu0 0
    %1437 = vmatprep.subr.bf16.mxu0 0
    %1438 = vmatpush1.bf16.msra.mxu0 0
    %1439 = vmatprep.subr.bf16.mxu0 0
    %1440 = vmatpush1.bf16.msra.mxu0 0
    %1441 = vmatprep.subr.bf16.mxu0 0
    %1442 = vmatpush1.bf16.msra.mxu0 0
    %1443 = vmatprep.subr.bf16.mxu0 0
    %1444 = vmatpush1.bf16.msra.mxu0 0
    %1445 = vmatprep.mubr.bf16.mxu0 0
    %1446 = vmatmul.mubr.bf16.gmra.mrb[0].mxu0 %v1371
    %v1447 = vpop.f32.mrb[0].mxu0
    %v1448 = vadd.f32 0.0, %v1447
    %v1449 = vpop.f32.mrb[0].mxu0
    %v1450 = vpop.f32.mrb[0].mxu0
    %v1451 = vpop.f32.mrb[0].mxu0
    %1452 = vdwg.mxu0
    %v1453 = vadd.f32 %v406, %v1407
    %v1454 = vxor.u32 %v1453, 2147483648
    %v1455 = vmul.f32 %v1454, 1.442695
    %v1456 = vpow.pop %v1455
    %v1457 = vadd.f32 %v1456, 1.0
    %v1458 = vrcp.pop %v1457
    %v1459 = vmul.f32 1.0, %v1458
    %v1460 = vadd.f32 %v408, %v1409
    %v1461 = vxor.u32 %v1460, 2147483648
    %v1462 = vmul.f32 %v1461, 1.442695
    %v1463 = vpow.pop %v1462
    %v1464 = vadd.f32 %v1463, 1.0
    %v1465 = vrcp.pop %v1464
    %v1466 = vmul.f32 1.0, %v1465
    %v1467 = vadd.f32 %v1448, %v512
    %v1468 = vmul.f32 %v1459, %v1467
    %v1469 = vadd.f32 %v472, %v1468
    %v1470 = vtanh.pop %v1469
    %v1471 = vsub.f32 %v1369, %v1470
    %v1472 = vmul.f32 %v1466, %v1471
    %v1473 = vadd.f32 %v1470, %v1472
    %1474 = vst [vmem:[#allocation2 + $0x38] sm:$0xff] %v1473
    %1475 = vst [vmem:[#allocation15] sm:$0xff] %v1473
    %v1476 = vld [vmem:[#allocation2] sm:$0xff]
    %v1477 = vld [vmem:[#allocation2 + $0x8] sm:$0xff]
    %v1478 = vld [vmem:[#allocation2 + $0x10] sm:$0xff]
    %v1479 = vld [vmem:[#allocation2 + $0x18] sm:$0xff]
    %v1480 = vld [vmem:[#allocation2 + $0x20] sm:$0xff]
    %v1481 = vld [vmem:[#allocation2 + $0x28] sm:$0xff]
    %v1482 = vld [vmem:[#allocation2 + $0x30] sm:$0xff]
    %v1483 = vld [vmem:[#allocation2 + $0x38] sm:$0xff]
    %v1484 = vpack.c.bf16 %v1477, %v1476
    %v1485 = vpack.c.bf16 %v1479, %v1478
    %v1486 = vpack.c.bf16 %v1481, %v1480
    %v1487 = vpack.c.bf16 %v1483, %v1482
    %v1488 = vld [vmem:[#allocation9] sm:$0xff]
    %v1489 = vld [vmem:[#allocation9 + $0x8] sm:$0xf]
    %v1490 = vld [vmem:[#allocation9 + $0xc] sm:$0xff]
    %v1491 = vld [vmem:[#allocation9 + $0x14] sm:$0xf]
    %v1492 = vld [vmem:[#allocation9 + $0x18] sm:$0xff]
    %v1493 = vld [vmem:[#allocation9 + $0x20] sm:$0xf]
    %v1494 = vld [vmem:[#allocation9 + $0x24] sm:$0xff]
    %v1495 = vld [vmem:[#allocation9 + $0x2c] sm:$0xf]
    %v1496 = vld [vmem:[#allocation9 + $0x30] sm:$0xff]
    %v1497 = vld [vmem:[#allocation9 + $0x38] sm:$0xf]
    %v1498 = vld [vmem:[#allocation9 + $0x3c] sm:$0xff]
    %v1499 = vld [vmem:[#allocation9 + $0x44] sm:$0xf]
    %v1500 = vld [vmem:[#allocation9 + $0x48] sm:$0xff]
    %v1501 = vld [vmem:[#allocation9 + $0x50] sm:$0xf]
    %v1502 = vld [vmem:[#allocation9 + $0x54] sm:$0xff]
    %v1503 = vld [vmem:[#allocation9 + $0x5c] sm:$0xf]
    %v1504 = vld [vmem:[#allocation9 + $0x60] sm:$0xff]
    %v1505 = vld [vmem:[#allocation9 + $0x68] sm:$0xf]
    %v1506 = vld [vmem:[#allocation9 + $0x6c] sm:$0xff]
    %v1507 = vld [vmem:[#allocation9 + $0x74] sm:$0xf]
    %v1508 = vld [vmem:[#allocation9 + $0x78] sm:$0xff]
    %v1509 = vld [vmem:[#allocation9 + $0x80] sm:$0xf]
    %v1510 = vld [vmem:[#allocation9 + $0x84] sm:$0xff]
    %v1511 = vld [vmem:[#allocation9 + $0x8c] sm:$0xf]
    %v1512 = vld [vmem:[#allocation9 + $0x90] sm:$0xff]
    %v1513 = vld [vmem:[#allocation9 + $0x98] sm:$0xf]
    %v1514 = vld [vmem:[#allocation9 + $0x9c] sm:$0xff]
    %v1515 = vld [vmem:[#allocation9 + $0xa4] sm:$0xf]
    %v1516 = vld [vmem:[#allocation9 + $0xa8] sm:$0xff]
    %v1517 = vld [vmem:[#allocation9 + $0xb0] sm:$0xf]
    %v1518 = vld [vmem:[#allocation9 + $0xb4] sm:$0xff]
    %v1519 = vld [vmem:[#allocation9 + $0xbc] sm:$0xf]
    %v1520 = vld [vmem:[%s7] sm:$0x7]
    %v1522 = vlaneseq
    %v1523 = vshrl.u32 %v1522, 7
    %v1524 = vsub.s32 0, %v1523
    %v1525 = vrot.slane %v1520, %v1524
    %v1526 = vlaneseq
    %v1527 = vshrl.u32 %v1526, 7
    %v1528 = vsub.s32 1, %v1527
    %v1529 = vrot.slane %v1520, %v1528
    %v1530 = vlaneseq
    %v1531 = vshrl.u32 %v1530, 7
    %v1532 = vsub.s32 2, %v1531
    %v1533 = vrot.slane %v1520, %v1532
    %v1569 = vunpack.c.l.b16 %v1488
    %v1570 = vunpack.c.h.b16 %v1488
    %v1571 = vunpack.c.l.b16 %v1489
    %v1572 = vunpack.c.l.b16 %v1490
    %v1573 = vunpack.c.h.b16 %v1490
    %v1574 = vunpack.c.l.b16 %v1491
    %v1575 = vunpack.c.l.b16 %v1492
    %v1576 = vunpack.c.h.b16 %v1492
    %v1577 = vunpack.c.l.b16 %v1493
    %v1578 = vunpack.c.l.b16 %v1494
    %v1579 = vunpack.c.h.b16 %v1494
    %v1580 = vunpack.c.l.b16 %v1495
    %v1581 = vunpack.c.l.b16 %v1496
    %v1582 = vunpack.c.h.b16 %v1496
    %v1583 = vunpack.c.l.b16 %v1497
    %v1584 = vunpack.c.l.b16 %v1498
    %v1585 = vunpack.c.h.b16 %v1498
    %v1586 = vunpack.c.l.b16 %v1499
    %v1587 = vunpack.c.l.b16 %v1500
    %v1588 = vunpack.c.h.b16 %v1500
    %v1589 = vunpack.c.l.b16 %v1501
    %v1590 = vunpack.c.l.b16 %v1502
    %v1591 = vunpack.c.h.b16 %v1502
    %v1592 = vunpack.c.l.b16 %v1503
    %v1593 = vunpack.c.l.b16 %v1504
    %v1594 = vunpack.c.h.b16 %v1504
    %v1595 = vunpack.c.l.b16 %v1505
    %v1596 = vunpack.c.l.b16 %v1506
    %v1597 = vunpack.c.h.b16 %v1506
    %v1598 = vunpack.c.l.b16 %v1507
    %v1599 = vunpack.c.l.b16 %v1508
    %v1600 = vunpack.c.h.b16 %v1508
    %v1601 = vunpack.c.l.b16 %v1509
    %v1602 = vunpack.c.l.b16 %v1510
    %v1603 = vunpack.c.h.b16 %v1510
    %v1604 = vunpack.c.l.b16 %v1511
    %v1605 = vunpack.c.l.b16 %v1512
    %v1606 = vunpack.c.h.b16 %v1512
    %v1607 = vunpack.c.l.b16 %v1513
    %v1608 = vunpack.c.l.b16 %v1514
    %v1609 = vunpack.c.h.b16 %v1514
    %v1610 = vunpack.c.l.b16 %v1515
    %v1611 = vunpack.c.l.b16 %v1516
    %v1612 = vunpack.c.h.b16 %v1516
    %v1613 = vunpack.c.l.b16 %v1517
    %v1614 = vunpack.c.l.b16 %v1518
    %v1615 = vunpack.c.h.b16 %v1518
    %v1616 = vunpack.c.l.b16 %v1519
    %v1617 = vpack.c.b16 %v1572, %v1569
    %v1618 = vpack.c.b16 %v1573, %v1570
    %v1619 = vpack.c.b16 %v1574, %v1571
    %v1620 = vpack.c.b16 %v1578, %v1575
    %v1621 = vpack.c.b16 %v1579, %v1576
    %v1622 = vpack.c.b16 %v1580, %v1577
    %v1623 = vpack.c.b16 %v1584, %v1581
    %v1624 = vpack.c.b16 %v1585, %v1582
    %v1625 = vpack.c.b16 %v1586, %v1583
    %v1626 = vpack.c.b16 %v1590, %v1587
    %v1627 = vpack.c.b16 %v1591, %v1588
    %v1628 = vpack.c.b16 %v1592, %v1589
    %v1629 = vpack.c.b16 %v1596, %v1593
    %v1630 = vpack.c.b16 %v1597, %v1594
    %v1631 = vpack.c.b16 %v1598, %v1595
    %v1632 = vpack.c.b16 %v1602, %v1599
    %v1633 = vpack.c.b16 %v1603, %v1600
    %v1634 = vpack.c.b16 %v1604, %v1601
    %v1635 = vpack.c.b16 %v1608, %v1605
    %v1636 = vpack.c.b16 %v1609, %v1606
    %v1637 = vpack.c.b16 %v1610, %v1607
    %v1638 = vpack.c.b16 %v1614, %v1611
    %v1639 = vpack.c.b16 %v1615, %v1612
    %v1640 = vpack.c.b16 %v1616, %v1613
    %1665 = vmatprep.subr.bf16.mxu0 %v1618
    %1666 = vmatpush1.bf16.msra.mxu0 %v1617
    %1667 = vmatprep.subr.bf16.mxu0 %v1621
    %1668 = vmatpush1.bf16.msra.mxu0 %v1620
    %1669 = vmatprep.subr.bf16.mxu0 %v1624
    %1670 = vmatpush1.bf16.msra.mxu0 %v1623
    %1671 = vmatprep.subr.bf16.mxu0 %v1627
    %1672 = vmatpush1.bf16.msra.mxu0 %v1626
    %1673 = vmatprep.subr.bf16.mxu0 %v1630
    %1674 = vmatpush1.bf16.msra.mxu0 %v1629
    %1675 = vmatprep.subr.bf16.mxu0 %v1633
    %1676 = vmatpush1.bf16.msra.mxu0 %v1632
    %1677 = vmatprep.subr.bf16.mxu0 %v1636
    %1678 = vmatpush1.bf16.msra.mxu0 %v1635
    %1679 = vmatprep.subr.bf16.mxu0 %v1639
    %1680 = vmatpush1.bf16.msra.mxu0 %v1638
    %1681 = vmatprep.subr.bf16.mxu0 0
    %1682 = vmatpush1.bf16.msra.mxu0 0
    %1683 = vmatprep.subr.bf16.mxu0 0
    %1684 = vmatpush1.bf16.msra.mxu0 0
    %1685 = vmatprep.subr.bf16.mxu0 0
    %1686 = vmatpush1.bf16.msra.mxu0 0
    %1687 = vmatprep.subr.bf16.mxu0 0
    %1688 = vmatpush1.bf16.msra.mxu0 0
    %1689 = vmatprep.subr.bf16.mxu0 0
    %1690 = vmatpush1.bf16.msra.mxu0 0
    %1691 = vmatprep.subr.bf16.mxu0 0
    %1692 = vmatpush1.bf16.msra.mxu0 0
    %1693 = vmatprep.subr.bf16.mxu0 0
    %1694 = vmatpush1.bf16.msra.mxu0 0
    %1695 = vmatprep.subr.bf16.mxu0 0
    %1696 = vmatpush1.bf16.msra.mxu0 0
    %1697 = vmatprep.mubr.bf16.mxu0 0
    %1698 = vmatmul.mubr.bf16.gmra.mrb[0].mxu0 %v1484
    %v1699 = vpop.f32.mrb[0].mxu0
    %v1700 = vadd.f32 %v1525, %v1699
    %v1701 = vpop.f32.mrb[0].mxu0
    %v1702 = vadd.f32 %v1529, %v1701
    %v1703 = vpop.f32.mrb[0].mxu0
    %v1704 = vadd.f32 %v1525, %v1703
    %v1705 = vpop.f32.mrb[0].mxu0
    %v1706 = vadd.f32 %v1529, %v1705
    %1707 = vmatprep.mubr.bf16.mxu0 0
    %1708 = vmatmul.mubr.bf16.gmra.mrb[0].mxu0 %v1485
    %v1709 = vpop.f32.mrb[0].mxu0
    %v1710 = vadd.f32 %v1525, %v1709
    %v1711 = vpop.f32.mrb[0].mxu0
    %v1712 = vadd.f32 %v1529, %v1711
    %v1713 = vpop.f32.mrb[0].mxu0
    %v1714 = vadd.f32 %v1525, %v1713
    %v1715 = vpop.f32.mrb[0].mxu0
    %v1716 = vadd.f32 %v1529, %v1715
    %1717 = vmatprep.mubr.bf16.mxu0 0
    %1718 = vmatmul.mubr.bf16.gmra.mrb[0].mxu0 %v1486
    %v1719 = vpop.f32.mrb[0].mxu0
    %v1720 = vadd.f32 %v1525, %v1719
    %v1721 = vpop.f32.mrb[0].mxu0
    %v1722 = vadd.f32 %v1529, %v1721
    %v1723 = vpop.f32.mrb[0].mxu0
    %v1724 = vadd.f32 %v1525, %v1723
    %v1725 = vpop.f32.mrb[0].mxu0
    %v1726 = vadd.f32 %v1529, %v1725
    %1727 = vmatprep.mubr.bf16.mxu0 0
    %1728 = vmatmul.mubr.bf16.gmra.mrb[0].mxu0 %v1487
    %v1729 = vpop.f32.mrb[0].mxu0
    %v1730 = vadd.f32 %v1525, %v1729
    %v1731 = vpop.f32.mrb[0].mxu0
    %v1732 = vadd.f32 %v1529, %v1731
    %v1733 = vpop.f32.mrb[0].mxu0
    %v1734 = vadd.f32 %v1525, %v1733
    %v1735 = vpop.f32.mrb[0].mxu0
    %v1736 = vadd.f32 %v1529, %v1735
    %1737 = vdwg.mxu0
    %1738 = vmatprep.subr.bf16.mxu0 0
    %1739 = vmatpush1.bf16.msra.mxu0 %v1619
    %1740 = vmatprep.subr.bf16.mxu0 0
    %1741 = vmatpush1.bf16.msra.mxu0 %v1622
    %1742 = vmatprep.subr.bf16.mxu0 0
    %1743 = vmatpush1.bf16.msra.mxu0 %v1625
    %1744 = vmatprep.subr.bf16.mxu0 0
    %1745 = vmatpush1.bf16.msra.mxu0 %v1628
    %1746 = vmatprep.subr.bf16.mxu0 0
    %1747 = vmatpush1.bf16.msra.mxu0 %v1631
    %1748 = vmatprep.subr.bf16.mxu0 0
    %1749 = vmatpush1.bf16.msra.mxu0 %v1634
    %1750 = vmatprep.subr.bf16.mxu0 0
    %1751 = vmatpush1.bf16.msra.mxu0 %v1637
    %1752 = vmatprep.subr.bf16.mxu0 0
    %1753 = vmatpush1.bf16.msra.mxu0 %v1640
    %1754 = vmatprep.subr.bf16.mxu0 0
    %1755 = vmatpush1.bf16.msra.mxu0 0
    %1756 = vmatprep.subr.bf16.mxu0 0
    %1757 = vmatpush1.bf16.msra.mxu0 0
    %1758 = vmatprep.subr.bf16.mxu0 0
    %1759 = vmatpush1.bf16.msra.mxu0 0
    %1760 = vmatprep.subr.bf16.mxu0 0
    %1761 = vmatpush1.bf16.msra.mxu0 0
    %1762 = vmatprep.subr.bf16.mxu0 0
    %1763 = vmatpush1.bf16.msra.mxu0 0
    %1764 = vmatprep.subr.bf16.mxu0 0
    %1765 = vmatpush1.bf16.msra.mxu0 0
    %1766 = vmatprep.subr.bf16.mxu0 0
    %1767 = vmatpush1.bf16.msra.mxu0 0
    %1768 = vmatprep.subr.bf16.mxu0 0
    %1769 = vmatpush1.bf16.msra.mxu0 0
    %1770 = vmatprep.mubr.bf16.mxu0 0
    %1771 = vmatmul.mubr.bf16.gmra.mrb[0].mxu0 %v1484
    %v1772 = vpop.f32.mrb[0].mxu0
    %v1773 = vadd.f32 %v1533, %v1772
    %v1774 = vpop.f32.mrb[0].mxu0
    %v1775 = vpop.f32.mrb[0].mxu0
    %v1776 = vadd.f32 %v1533, %v1775
    %v1777 = vpop.f32.mrb[0].mxu0
    %1778 = vmatprep.mubr.bf16.mxu0 0
    %1779 = vmatmul.mubr.bf16.gmra.mrb[0].mxu0 %v1485
    %v1780 = vpop.f32.mrb[0].mxu0
    %v1781 = vadd.f32 %v1533, %v1780
    %v1782 = vpop.f32.mrb[0].mxu0
    %v1783 = vpop.f32.mrb[0].mxu0
    %v1784 = vadd.f32 %v1533, %v1783
    %v1785 = vpop.f32.mrb[0].mxu0
    %1786 = vmatprep.mubr.bf16.mxu0 0
    %1787 = vmatmul.mubr.bf16.gmra.mrb[0].mxu0 %v1486
    %v1788 = vpop.f32.mrb[0].mxu0
    %v1789 = vadd.f32 %v1533, %v1788
    %v1790 = vpop.f32.mrb[0].mxu0
    %v1791 = vpop.f32.mrb[0].mxu0
    %v1792 = vadd.f32 %v1533, %v1791
    %v1793 = vpop.f32.mrb[0].mxu0
    %1794 = vmatprep.mubr.bf16.mxu0 0
    %1795 = vmatmul.mubr.bf16.gmra.mrb[0].mxu0 %v1487
    %v1796 = vpop.f32.mrb[0].mxu0
    %v1797 = vadd.f32 %v1533, %v1796
    %v1798 = vpop.f32.mrb[0].mxu0
    %v1799 = vpop.f32.mrb[0].mxu0
    %v1800 = vadd.f32 %v1533, %v1799
    %v1801 = vpop.f32.mrb[0].mxu0
    %1802 = vdwg.mxu0
    %v1803 = vld [vmem:[#allocation11] sm:$0xff]
    %v1804 = vld [vmem:[#allocation11 + $0x8] sm:$0xf]
    %v1805 = vld [vmem:[#allocation11 + $0xc] sm:$0xff]
    %v1806 = vld [vmem:[#allocation11 + $0x14] sm:$0xf]
    %v1807 = vld [vmem:[#allocation11 + $0x18] sm:$0xff]
    %v1808 = vld [vmem:[#allocation11 + $0x20] sm:$0xf]
    %v1809 = vld [vmem:[#allocation11 + $0x24] sm:$0xff]
    %v1810 = vld [vmem:[#allocation11 + $0x2c] sm:$0xf]
    %v1811 = vld [vmem:[#allocation11 + $0x30] sm:$0xff]
    %v1812 = vld [vmem:[#allocation11 + $0x38] sm:$0xf]
    %v1813 = vld [vmem:[#allocation11 + $0x3c] sm:$0xff]
    %v1814 = vld [vmem:[#allocation11 + $0x44] sm:$0xf]
    %v1815 = vld [vmem:[#allocation11 + $0x48] sm:$0xff]
    %v1816 = vld [vmem:[#allocation11 + $0x50] sm:$0xf]
    %v1817 = vld [vmem:[#allocation11 + $0x54] sm:$0xff]
    %v1818 = vld [vmem:[#allocation11 + $0x5c] sm:$0xf]
    %v1819 = vld [vmem:[#allocation11 + $0x60] sm:$0xff]
    %v1820 = vld [vmem:[#allocation11 + $0x68] sm:$0xf]
    %v1821 = vld [vmem:[#allocation11 + $0x6c] sm:$0xff]
    %v1822 = vld [vmem:[#allocation11 + $0x74] sm:$0xf]
    %v1823 = vld [vmem:[#allocation11 + $0x78] sm:$0xff]
    %v1824 = vld [vmem:[#allocation11 + $0x80] sm:$0xf]
    %v1825 = vld [vmem:[#allocation11 + $0x84] sm:$0xff]
    %v1826 = vld [vmem:[#allocation11 + $0x8c] sm:$0xf]
    %v1827 = vld [vmem:[#allocation11 + $0x90] sm:$0xff]
    %v1828 = vld [vmem:[#allocation11 + $0x98] sm:$0xf]
    %v1829 = vld [vmem:[#allocation11 + $0x9c] sm:$0xff]
    %v1830 = vld [vmem:[#allocation11 + $0xa4] sm:$0xf]
    %v1831 = vld [vmem:[#allocation11 + $0xa8] sm:$0xff]
    %v1832 = vld [vmem:[#allocation11 + $0xb0] sm:$0xf]
    %v1833 = vld [vmem:[#allocation11 + $0xb4] sm:$0xff]
    %v1834 = vld [vmem:[#allocation11 + $0xbc] sm:$0xf]
    %v1835 = vld [vmem:[%s8] sm:$0x1]
    %v1837 = vlaneseq
    %v1838 = vshrl.u32 %v1837, 7
    %v1839 = vsub.s32 0, %v1838
    %v1840 = vrot.slane %v1835, %v1839
    %s1842 = scalar_lea.vmem %s11, 8
    %v1843 = vld [vmem:[%s1842] sm:$0xff]
    %v1844 = vpack.c.bf16 %v1843, %v1843
    %v1877 = vunpack.c.l.b16 %v1803
    %v1878 = vunpack.c.h.b16 %v1803
    %v1879 = vunpack.c.l.b16 %v1804
    %v1880 = vunpack.c.l.b16 %v1805
    %v1881 = vunpack.c.h.b16 %v1805
    %v1882 = vunpack.c.l.b16 %v1806
    %v1883 = vunpack.c.l.b16 %v1807
    %v1884 = vunpack.c.h.b16 %v1807
    %v1885 = vunpack.c.l.b16 %v1808
    %v1886 = vunpack.c.l.b16 %v1809
    %v1887 = vunpack.c.h.b16 %v1809
    %v1888 = vunpack.c.l.b16 %v1810
    %v1889 = vunpack.c.l.b16 %v1811
    %v1890 = vunpack.c.h.b16 %v1811
    %v1891 = vunpack.c.l.b16 %v1812
    %v1892 = vunpack.c.l.b16 %v1813
    %v1893 = vunpack.c.h.b16 %v1813
    %v1894 = vunpack.c.l.b16 %v1814
    %v1895 = vunpack.c.l.b16 %v1815
    %v1896 = vunpack.c.h.b16 %v1815
    %v1897 = vunpack.c.l.b16 %v1816
    %v1898 = vunpack.c.l.b16 %v1817
    %v1899 = vunpack.c.h.b16 %v1817
    %v1900 = vunpack.c.l.b16 %v1818
    %v1901 = vunpack.c.l.b16 %v1819
    %v1902 = vunpack.c.h.b16 %v1819
    %v1903 = vunpack.c.l.b16 %v1820
    %v1904 = vunpack.c.l.b16 %v1821
    %v1905 = vunpack.c.h.b16 %v1821
    %v1906 = vunpack.c.l.b16 %v1822
    %v1907 = vunpack.c.l.b16 %v1823
    %v1908 = vunpack.c.h.b16 %v1823
    %v1909 = vunpack.c.l.b16 %v1824
    %v1910 = vunpack.c.l.b16 %v1825
    %v1911 = vunpack.c.h.b16 %v1825
    %v1912 = vunpack.c.l.b16 %v1826
    %v1913 = vunpack.c.l.b16 %v1827
    %v1914 = vunpack.c.h.b16 %v1827
    %v1915 = vunpack.c.l.b16 %v1828
    %v1916 = vunpack.c.l.b16 %v1829
    %v1917 = vunpack.c.h.b16 %v1829
    %v1918 = vunpack.c.l.b16 %v1830
    %v1919 = vunpack.c.l.b16 %v1831
    %v1920 = vunpack.c.h.b16 %v1831
    %v1921 = vunpack.c.l.b16 %v1832
    %v1922 = vunpack.c.l.b16 %v1833
    %v1923 = vunpack.c.h.b16 %v1833
    %v1924 = vunpack.c.l.b16 %v1834
    %v1925 = vpack.c.b16 %v1880, %v1877
    %v1926 = vpack.c.b16 %v1881, %v1878
    %v1927 = vpack.c.b16 %v1882, %v1879
    %v1928 = vpack.c.b16 %v1886, %v1883
    %v1929 = vpack.c.b16 %v1887, %v1884
    %v1930 = vpack.c.b16 %v1888, %v1885
    %v1931 = vpack.c.b16 %v1892, %v1889
    %v1932 = vpack.c.b16 %v1893, %v1890
    %v1933 = vpack.c.b16 %v1894, %v1891
    %v1934 = vpack.c.b16 %v1898, %v1895
    %v1935 = vpack.c.b16 %v1899, %v1896
    %v1936 = vpack.c.b16 %v1900, %v1897
    %v1937 = vpack.c.b16 %v1904, %v1901
    %v1938 = vpack.c.b16 %v1905, %v1902
    %v1939 = vpack.c.b16 %v1906, %v1903
    %v1940 = vpack.c.b16 %v1910, %v1907
    %v1941 = vpack.c.b16 %v1911, %v1908
    %v1942 = vpack.c.b16 %v1912, %v1909
    %v1943 = vpack.c.b16 %v1916, %v1913
    %v1944 = vpack.c.b16 %v1917, %v1914
    %v1945 = vpack.c.b16 %v1918, %v1915
    %v1946 = vpack.c.b16 %v1922, %v1919
    %v1947 = vpack.c.b16 %v1923, %v1920
    %v1948 = vpack.c.b16 %v1924, %v1921
    %1973 = vmatprep.subr.bf16.mxu0 %v1926
    %1974 = vmatpush1.bf16.msra.mxu0 %v1925
    %1975 = vmatprep.subr.bf16.mxu0 %v1929
    %1976 = vmatpush1.bf16.msra.mxu0 %v1928
    %1977 = vmatprep.subr.bf16.mxu0 %v1932
    %1978 = vmatpush1.bf16.msra.mxu0 %v1931
    %1979 = vmatprep.subr.bf16.mxu0 %v1935
    %1980 = vmatpush1.bf16.msra.mxu0 %v1934
    %1981 = vmatprep.subr.bf16.mxu0 %v1938
    %1982 = vmatpush1.bf16.msra.mxu0 %v1937
    %1983 = vmatprep.subr.bf16.mxu0 %v1941
    %1984 = vmatpush1.bf16.msra.mxu0 %v1940
    %1985 = vmatprep.subr.bf16.mxu0 %v1944
    %1986 = vmatpush1.bf16.msra.mxu0 %v1943
    %1987 = vmatprep.subr.bf16.mxu0 %v1947
    %1988 = vmatpush1.bf16.msra.mxu0 %v1946
    %1989 = vmatprep.subr.bf16.mxu0 0
    %1990 = vmatpush1.bf16.msra.mxu0 0
    %1991 = vmatprep.subr.bf16.mxu0 0
    %1992 = vmatpush1.bf16.msra.mxu0 0
    %1993 = vmatprep.subr.bf16.mxu0 0
    %1994 = vmatpush1.bf16.msra.mxu0 0
    %1995 = vmatprep.subr.bf16.mxu0 0
    %1996 = vmatpush1.bf16.msra.mxu0 0
    %1997 = vmatprep.subr.bf16.mxu0 0
    %1998 = vmatpush1.bf16.msra.mxu0 0
    %1999 = vmatprep.subr.bf16.mxu0 0
    %2000 = vmatpush1.bf16.msra.mxu0 0
    %2001 = vmatprep.subr.bf16.mxu0 0
    %2002 = vmatpush1.bf16.msra.mxu0 0
    %2003 = vmatprep.subr.bf16.mxu0 0
    %2004 = vmatpush1.bf16.msra.mxu0 0
    %2005 = vmatprep.mubr.bf16.mxu0 0
    %2006 = vmatmul.mubr.bf16.gmra.mrb[0].mxu0 %v1844
    %v2007 = vpop.f32.mrb[0].mxu0
    %v2008 = vadd.f32 0.0, %v2007
    %v2009 = vpop.f32.mrb[0].mxu0
    %v2010 = vadd.f32 0.0, %v2009
    %v2011 = vpop.f32.mrb[0].mxu0
    %v2012 = vpop.f32.mrb[0].mxu0
    %2013 = vdwg.mxu0
    %2014 = vmatprep.subr.bf16.mxu0 0
    %2015 = vmatpush1.bf16.msra.mxu0 %v1927
    %2016 = vmatprep.subr.bf16.mxu0 0
    %2017 = vmatpush1.bf16.msra.mxu0 %v1930
    %2018 = vmatprep.subr.bf16.mxu0 0
    %2019 = vmatpush1.bf16.msra.mxu0 %v1933
    %2020 = vmatprep.subr.bf16.mxu0 0
    %2021 = vmatpush1.bf16.msra.mxu0 %v1936
    %2022 = vmatprep.subr.bf16.mxu0 0
    %2023 = vmatpush1.bf16.msra.mxu0 %v1939
    %2024 = vmatprep.subr.bf16.mxu0 0
    %2025 = vmatpush1.bf16.msra.mxu0 %v1942
    %2026 = vmatprep.subr.bf16.mxu0 0
    %2027 = vmatpush1.bf16.msra.mxu0 %v1945
    %2028 = vmatprep.subr.bf16.mxu0 0
    %2029 = vmatpush1.bf16.msra.mxu0 %v1948
    %2030 = vmatprep.subr.bf16.mxu0 0
    %2031 = vmatpush1.bf16.msra.mxu0 0
    %2032 = vmatprep.subr.bf16.mxu0 0
    %2033 = vmatpush1.bf16.msra.mxu0 0
    %2034 = vmatprep.subr.bf16.mxu0 0
    %2035 = vmatpush1.bf16.msra.mxu0 0
    %2036 = vmatprep.subr.bf16.mxu0 0
    %2037 = vmatpush1.bf16.msra.mxu0 0
    %2038 = vmatprep.subr.bf16.mxu0 0
    %2039 = vmatpush1.bf16.msra.mxu0 0
    %2040 = vmatprep.subr.bf16.mxu0 0
    %2041 = vmatpush1.bf16.msra.mxu0 0
    %2042 = vmatprep.subr.bf16.mxu0 0
    %2043 = vmatpush1.bf16.msra.mxu0 0
    %2044 = vmatprep.subr.bf16.mxu0 0
    %2045 = vmatpush1.bf16.msra.mxu0 0
    %2046 = vmatprep.mubr.bf16.mxu0 0
    %2047 = vmatmul.mubr.bf16.gmra.mrb[0].mxu0 %v1844
    %v2048 = vpop.f32.mrb[0].mxu0
    %v2049 = vadd.f32 0.0, %v2048
    %v2050 = vpop.f32.mrb[0].mxu0
    %v2051 = vpop.f32.mrb[0].mxu0
    %v2052 = vpop.f32.mrb[0].mxu0
    %2053 = vdwg.mxu0
    %v2054 = vadd.f32 %v1700, %v2008
    %v2055 = vxor.u32 %v2054, 2147483648
    %v2056 = vmul.f32 %v2055, 1.442695
    %v2057 = vpow.pop %v2056
    %v2058 = vadd.f32 %v2057, 1.0
    %v2059 = vrcp.pop %v2058
    %v2060 = vmul.f32 1.0, %v2059
    %v2061 = vadd.f32 %v1702, %v2010
    %v2062 = vxor.u32 %v2061, 2147483648
    %v2063 = vmul.f32 %v2062, 1.442695
    %v2064 = vpow.pop %v2063
    %v2065 = vadd.f32 %v2064, 1.0
    %v2066 = vrcp.pop %v2065
    %v2067 = vmul.f32 1.0, %v2066
    %v2068 = vadd.f32 %v2049, %v1840
    %v2069 = vmul.f32 %v2060, %v2068
    %v2070 = vadd.f32 %v1773, %v2069
    %v2071 = vtanh.pop %v2070
    %v2072 = vsub.f32 %v1843, %v2071
    %v2073 = vmul.f32 %v2067, %v2072
    %v2074 = vadd.f32 %v2071, %v2073
    %2075 = vst [vmem:[#allocation2] sm:$0xff] %v2074
    %v2076 = vpack.c.bf16 %v2074, %v2074
    %2077 = vmatprep.subr.bf16.mxu0 %v1926
    %2078 = vmatpush1.bf16.msra.mxu0 %v1925
    %2079 = vmatprep.subr.bf16.mxu0 %v1929
    %2080 = vmatpush1.bf16.msra.mxu0 %v1928
    %2081 = vmatprep.subr.bf16.mxu0 %v1932
    %2082 = vmatpush1.bf16.msra.mxu0 %v1931
    %2083 = vmatprep.subr.bf16.mxu0 %v1935
    %2084 = vmatpush1.bf16.msra.mxu0 %v1934
    %2085 = vmatprep.subr.bf16.mxu0 %v1938
    %2086 = vmatpush1.bf16.msra.mxu0 %v1937
    %2087 = vmatprep.subr.bf16.mxu0 %v1941
    %2088 = vmatpush1.bf16.msra.mxu0 %v1940
    %2089 = vmatprep.subr.bf16.mxu0 %v1944
    %2090 = vmatpush1.bf16.msra.mxu0 %v1943
    %2091 = vmatprep.subr.bf16.mxu0 %v1947
    %2092 = vmatpush1.bf16.msra.mxu0 %v1946
    %2093 = vmatprep.subr.bf16.mxu0 0
    %2094 = vmatpush1.bf16.msra.mxu0 0
    %2095 = vmatprep.subr.bf16.mxu0 0
    %2096 = vmatpush1.bf16.msra.mxu0 0
    %2097 = vmatprep.subr.bf16.mxu0 0
    %2098 = vmatpush1.bf16.msra.mxu0 0
    %2099 = vmatprep.subr.bf16.mxu0 0
    %2100 = vmatpush1.bf16.msra.mxu0 0
    %2101 = vmatprep.subr.bf16.mxu0 0
    %2102 = vmatpush1.bf16.msra.mxu0 0
    %2103 = vmatprep.subr.bf16.mxu0 0
    %2104 = vmatpush1.bf16.msra.mxu0 0
    %2105 = vmatprep.subr.bf16.mxu0 0
    %2106 = vmatpush1.bf16.msra.mxu0 0
    %2107 = vmatprep.subr.bf16.mxu0 0
    %2108 = vmatpush1.bf16.msra.mxu0 0
    %2109 = vmatprep.mubr.bf16.mxu0 0
    %2110 = vmatmul.mubr.bf16.gmra.mrb[0].mxu0 %v2076
    %v2111 = vpop.f32.mrb[0].mxu0
    %v2112 = vadd.f32 0.0, %v2111
    %v2113 = vpop.f32.mrb[0].mxu0
    %v2114 = vadd.f32 0.0, %v2113
    %v2115 = vpop.f32.mrb[0].mxu0
    %v2116 = vpop.f32.mrb[0].mxu0
    %2117 = vdwg.mxu0
    %2118 = vmatprep.subr.bf16.mxu0 0
    %2119 = vmatpush1.bf16.msra.mxu0 %v1927
    %2120 = vmatprep.subr.bf16.mxu0 0
    %2121 = vmatpush1.bf16.msra.mxu0 %v1930
    %2122 = vmatprep.subr.bf16.mxu0 0
    %2123 = vmatpush1.bf16.msra.mxu0 %v1933
    %2124 = vmatprep.subr.bf16.mxu0 0
    %2125 = vmatpush1.bf16.msra.mxu0 %v1936
    %2126 = vmatprep.subr.bf16.mxu0 0
    %2127 = vmatpush1.bf16.msra.mxu0 %v1939
    %2128 = vmatprep.subr.bf16.mxu0 0
    %2129 = vmatpush1.bf16.msra.mxu0 %v1942
    %2130 = vmatprep.subr.bf16.mxu0 0
    %2131 = vmatpush1.bf16.msra.mxu0 %v1945
    %2132 = vmatprep.subr.bf16.mxu0 0
    %2133 = vmatpush1.bf16.msra.mxu0 %v1948
    %2134 = vmatprep.subr.bf16.mxu0 0
    %2135 = vmatpush1.bf16.msra.mxu0 0
    %2136 = vmatprep.subr.bf16.mxu0 0
    %2137 = vmatpush1.bf16.msra.mxu0 0
    %2138 = vmatprep.subr.bf16.mxu0 0
    %2139 = vmatpush1.bf16.msra.mxu0 0
    %2140 = vmatprep.subr.bf16.mxu0 0
    %2141 = vmatpush1.bf16.msra.mxu0 0
    %2142 = vmatprep.subr.bf16.mxu0 0
    %2143 = vmatpush1.bf16.msra.mxu0 0
    %2144 = vmatprep.subr.bf16.mxu0 0
    %2145 = vmatpush1.bf16.msra.mxu0 0
    %2146 = vmatprep.subr.bf16.mxu0 0
    %2147 = vmatpush1.bf16.msra.mxu0 0
    %2148 = vmatprep.subr.bf16.mxu0 0
    %2149 = vmatpush1.bf16.msra.mxu0 0
    %2150 = vmatprep.mubr.bf16.mxu0 0
    %2151 = vmatmul.mubr.bf16.gmra.mrb[0].mxu0 %v2076
    %v2152 = vpop.f32.mrb[0].mxu0
    %v2153 = vadd.f32 0.0, %v2152
    %v2154 = vpop.f32.mrb[0].mxu0
    %v2155 = vpop.f32.mrb[0].mxu0
    %v2156 = vpop.f32.mrb[0].mxu0
    %2157 = vdwg.mxu0
    %v2158 = vadd.f32 %v1704, %v2112
    %v2159 = vxor.u32 %v2158, 2147483648
    %v2160 = vmul.f32 %v2159, 1.442695
    %v2161 = vpow.pop %v2160
    %v2162 = vadd.f32 %v2161, 1.0
    %v2163 = vrcp.pop %v2162
    %v2164 = vmul.f32 1.0, %v2163
    %v2165 = vadd.f32 %v1706, %v2114
    %v2166 = vxor.u32 %v2165, 2147483648
    %v2167 = vmul.f32 %v2166, 1.442695
    %v2168 = vpow.pop %v2167
    %v2169 = vadd.f32 %v2168, 1.0
    %v2170 = vrcp.pop %v2169
    %v2171 = vmul.f32 1.0, %v2170
    %v2172 = vadd.f32 %v2153, %v1840
    %v2173 = vmul.f32 %v2164, %v2172
    %v2174 = vadd.f32 %v1776, %v2173
    %v2175 = vtanh.pop %v2174
    %v2176 = vsub.f32 %v2074, %v2175
    %v2177 = vmul.f32 %v2171, %v2176
    %v2178 = vadd.f32 %v2175, %v2177
    %2179 = vst [vmem:[#allocation2 + $0x8] sm:$0xff] %v2178
    %v2180 = vpack.c.bf16 %v2178, %v2178
    %2181 = vmatprep.subr.bf16.mxu0 %v1926
    %2182 = vmatpush1.bf16.msra.mxu0 %v1925
    %2183 = vmatprep.subr.bf16.mxu0 %v1929
    %2184 = vmatpush1.bf16.msra.mxu0 %v1928
    %2185 = vmatprep.subr.bf16.mxu0 %v1932
    %2186 = vmatpush1.bf16.msra.mxu0 %v1931
    %2187 = vmatprep.subr.bf16.mxu0 %v1935
    %2188 = vmatpush1.bf16.msra.mxu0 %v1934
    %2189 = vmatprep.subr.bf16.mxu0 %v1938
    %2190 = vmatpush1.bf16.msra.mxu0 %v1937
    %2191 = vmatprep.subr.bf16.mxu0 %v1941
    %2192 = vmatpush1.bf16.msra.mxu0 %v1940
    %2193 = vmatprep.subr.bf16.mxu0 %v1944
    %2194 = vmatpush1.bf16.msra.mxu0 %v1943
    %2195 = vmatprep.subr.bf16.mxu0 %v1947
    %2196 = vmatpush1.bf16.msra.mxu0 %v1946
    %2197 = vmatprep.subr.bf16.mxu0 0
    %2198 = vmatpush1.bf16.msra.mxu0 0
    %2199 = vmatprep.subr.bf16.mxu0 0
    %2200 = vmatpush1.bf16.msra.mxu0 0
    %2201 = vmatprep.subr.bf16.mxu0 0
    %2202 = vmatpush1.bf16.msra.mxu0 0
    %2203 = vmatprep.subr.bf16.mxu0 0
    %2204 = vmatpush1.bf16.msra.mxu0 0
    %2205 = vmatprep.subr.bf16.mxu0 0
    %2206 = vmatpush1.bf16.msra.mxu0 0
    %2207 = vmatprep.subr.bf16.mxu0 0
    %2208 = vmatpush1.bf16.msra.mxu0 0
    %2209 = vmatprep.subr.bf16.mxu0 0
    %2210 = vmatpush1.bf16.msra.mxu0 0
    %2211 = vmatprep.subr.bf16.mxu0 0
    %2212 = vmatpush1.bf16.msra.mxu0 0
    %2213 = vmatprep.mubr.bf16.mxu0 0
    %2214 = vmatmul.mubr.bf16.gmra.mrb[0].mxu0 %v2180
    %v2215 = vpop.f32.mrb[0].mxu0
    %v2216 = vadd.f32 0.0, %v2215
    %v2217 = vpop.f32.mrb[0].mxu0
    %v2218 = vadd.f32 0.0, %v2217
    %v2219 = vpop.f32.mrb[0].mxu0
    %v2220 = vpop.f32.mrb[0].mxu0
    %2221 = vdwg.mxu0
    %2222 = vmatprep.subr.bf16.mxu0 0
    %2223 = vmatpush1.bf16.msra.mxu0 %v1927
    %2224 = vmatprep.subr.bf16.mxu0 0
    %2225 = vmatpush1.bf16.msra.mxu0 %v1930
    %2226 = vmatprep.subr.bf16.mxu0 0
    %2227 = vmatpush1.bf16.msra.mxu0 %v1933
    %2228 = vmatprep.subr.bf16.mxu0 0
    %2229 = vmatpush1.bf16.msra.mxu0 %v1936
    %2230 = vmatprep.subr.bf16.mxu0 0
    %2231 = vmatpush1.bf16.msra.mxu0 %v1939
    %2232 = vmatprep.subr.bf16.mxu0 0
    %2233 = vmatpush1.bf16.msra.mxu0 %v1942
    %2234 = vmatprep.subr.bf16.mxu0 0
    %2235 = vmatpush1.bf16.msra.mxu0 %v1945
    %2236 = vmatprep.subr.bf16.mxu0 0
    %2237 = vmatpush1.bf16.msra.mxu0 %v1948
    %2238 = vmatprep.subr.bf16.mxu0 0
    %2239 = vmatpush1.bf16.msra.mxu0 0
    %2240 = vmatprep.subr.bf16.mxu0 0
    %2241 = vmatpush1.bf16.msra.mxu0 0
    %2242 = vmatprep.subr.bf16.mxu0 0
    %2243 = vmatpush1.bf16.msra.mxu0 0
    %2244 = vmatprep.subr.bf16.mxu0 0
    %2245 = vmatpush1.bf16.msra.mxu0 0
    %2246 = vmatprep.subr.bf16.mxu0 0
    %2247 = vmatpush1.bf16.msra.mxu0 0
    %2248 = vmatprep.subr.bf16.mxu0 0
    %2249 = vmatpush1.bf16.msra.mxu0 0
    %2250 = vmatprep.subr.bf16.mxu0 0
    %2251 = vmatpush1.bf16.msra.mxu0 0
    %2252 = vmatprep.subr.bf16.mxu0 0
    %2253 = vmatpush1.bf16.msra.mxu0 0
    %2254 = vmatprep.mubr.bf16.mxu0 0
    %2255 = vmatmul.mubr.bf16.gmra.mrb[0].mxu0 %v2180
    %v2256 = vpop.f32.mrb[0].mxu0
    %v2257 = vadd.f32 0.0, %v2256
    %v2258 = vpop.f32.mrb[0].mxu0
    %v2259 = vpop.f32.mrb[0].mxu0
    %v2260 = vpop.f32.mrb[0].mxu0
    %2261 = vdwg.mxu0
    %v2262 = vadd.f32 %v1710, %v2216
    %v2263 = vxor.u32 %v2262, 2147483648
    %v2264 = vmul.f32 %v2263, 1.442695
    %v2265 = vpow.pop %v2264
    %v2266 = vadd.f32 %v2265, 1.0
    %v2267 = vrcp.pop %v2266
    %v2268 = vmul.f32 1.0, %v2267
    %v2269 = vadd.f32 %v1712, %v2218
    %v2270 = vxor.u32 %v2269, 2147483648
    %v2271 = vmul.f32 %v2270, 1.442695
    %v2272 = vpow.pop %v2271
    %v2273 = vadd.f32 %v2272, 1.0
    %v2274 = vrcp.pop %v2273
    %v2275 = vmul.f32 1.0, %v2274
    %v2276 = vadd.f32 %v2257, %v1840
    %v2277 = vmul.f32 %v2268, %v2276
    %v2278 = vadd.f32 %v1781, %v2277
    %v2279 = vtanh.pop %v2278
    %v2280 = vsub.f32 %v2178, %v2279
    %v2281 = vmul.f32 %v2275, %v2280
    %v2282 = vadd.f32 %v2279, %v2281
    %2283 = vst [vmem:[#allocation2 + $0x10] sm:$0xff] %v2282
    %v2284 = vpack.c.bf16 %v2282, %v2282
    %2285 = vmatprep.subr.bf16.mxu0 %v1926
    %2286 = vmatpush1.bf16.msra.mxu0 %v1925
    %2287 = vmatprep.subr.bf16.mxu0 %v1929
    %2288 = vmatpush1.bf16.msra.mxu0 %v1928
    %2289 = vmatprep.subr.bf16.mxu0 %v1932
    %2290 = vmatpush1.bf16.msra.mxu0 %v1931
    %2291 = vmatprep.subr.bf16.mxu0 %v1935
    %2292 = vmatpush1.bf16.msra.mxu0 %v1934
    %2293 = vmatprep.subr.bf16.mxu0 %v1938
    %2294 = vmatpush1.bf16.msra.mxu0 %v1937
    %2295 = vmatprep.subr.bf16.mxu0 %v1941
    %2296 = vmatpush1.bf16.msra.mxu0 %v1940
    %2297 = vmatprep.subr.bf16.mxu0 %v1944
    %2298 = vmatpush1.bf16.msra.mxu0 %v1943
    %2299 = vmatprep.subr.bf16.mxu0 %v1947
    %2300 = vmatpush1.bf16.msra.mxu0 %v1946
    %2301 = vmatprep.subr.bf16.mxu0 0
    %2302 = vmatpush1.bf16.msra.mxu0 0
    %2303 = vmatprep.subr.bf16.mxu0 0
    %2304 = vmatpush1.bf16.msra.mxu0 0
    %2305 = vmatprep.subr.bf16.mxu0 0
    %2306 = vmatpush1.bf16.msra.mxu0 0
    %2307 = vmatprep.subr.bf16.mxu0 0
    %2308 = vmatpush1.bf16.msra.mxu0 0
    %2309 = vmatprep.subr.bf16.mxu0 0
    %2310 = vmatpush1.bf16.msra.mxu0 0
    %2311 = vmatprep.subr.bf16.mxu0 0
    %2312 = vmatpush1.bf16.msra.mxu0 0
    %2313 = vmatprep.subr.bf16.mxu0 0
    %2314 = vmatpush1.bf16.msra.mxu0 0
    %2315 = vmatprep.subr.bf16.mxu0 0
    %2316 = vmatpush1.bf16.msra.mxu0 0
    %2317 = vmatprep.mubr.bf16.mxu0 0
    %2318 = vmatmul.mubr.bf16.gmra.mrb[0].mxu0 %v2284
    %v2319 = vpop.f32.mrb[0].mxu0
    %v2320 = vadd.f32 0.0, %v2319
    %v2321 = vpop.f32.mrb[0].mxu0
    %v2322 = vadd.f32 0.0, %v2321
    %v2323 = vpop.f32.mrb[0].mxu0
    %v2324 = vpop.f32.mrb[0].mxu0
    %2325 = vdwg.mxu0
    %2326 = vmatprep.subr.bf16.mxu0 0
    %2327 = vmatpush1.bf16.msra.mxu0 %v1927
    %2328 = vmatprep.subr.bf16.mxu0 0
    %2329 = vmatpush1.bf16.msra.mxu0 %v1930
    %2330 = vmatprep.subr.bf16.mxu0 0
    %2331 = vmatpush1.bf16.msra.mxu0 %v1933
    %2332 = vmatprep.subr.bf16.mxu0 0
    %2333 = vmatpush1.bf16.msra.mxu0 %v1936
    %2334 = vmatprep.subr.bf16.mxu0 0
    %2335 = vmatpush1.bf16.msra.mxu0 %v1939
    %2336 = vmatprep.subr.bf16.mxu0 0
    %2337 = vmatpush1.bf16.msra.mxu0 %v1942
    %2338 = vmatprep.subr.bf16.mxu0 0
    %2339 = vmatpush1.bf16.msra.mxu0 %v1945
    %2340 = vmatprep.subr.bf16.mxu0 0
    %2341 = vmatpush1.bf16.msra.mxu0 %v1948
    %2342 = vmatprep.subr.bf16.mxu0 0
    %2343 = vmatpush1.bf16.msra.mxu0 0
    %2344 = vmatprep.subr.bf16.mxu0 0
    %2345 = vmatpush1.bf16.msra.mxu0 0
    %2346 = vmatprep.subr.bf16.mxu0 0
    %2347 = vmatpush1.bf16.msra.mxu0 0
    %2348 = vmatprep.subr.bf16.mxu0 0
    %2349 = vmatpush1.bf16.msra.mxu0 0
    %2350 = vmatprep.subr.bf16.mxu0 0
    %2351 = vmatpush1.bf16.msra.mxu0 0
    %2352 = vmatprep.subr.bf16.mxu0 0
    %2353 = vmatpush1.bf16.msra.mxu0 0
    %2354 = vmatprep.subr.bf16.mxu0 0
    %2355 = vmatpush1.bf16.msra.mxu0 0
    %2356 = vmatprep.subr.bf16.mxu0 0
    %2357 = vmatpush1.bf16.msra.mxu0 0
    %2358 = vmatprep.mubr.bf16.mxu0 0
    %2359 = vmatmul.mubr.bf16.gmra.mrb[0].mxu0 %v2284
    %v2360 = vpop.f32.mrb[0].mxu0
    %v2361 = vadd.f32 0.0, %v2360
    %v2362 = vpop.f32.mrb[0].mxu0
    %v2363 = vpop.f32.mrb[0].mxu0
    %v2364 = vpop.f32.mrb[0].mxu0
    %2365 = vdwg.mxu0
    %v2366 = vadd.f32 %v1714, %v2320
    %v2367 = vxor.u32 %v2366, 2147483648
    %v2368 = vmul.f32 %v2367, 1.442695
    %v2369 = vpow.pop %v2368
    %v2370 = vadd.f32 %v2369, 1.0
    %v2371 = vrcp.pop %v2370
    %v2372 = vmul.f32 1.0, %v2371
    %v2373 = vadd.f32 %v1716, %v2322
    %v2374 = vxor.u32 %v2373, 2147483648
    %v2375 = vmul.f32 %v2374, 1.442695
    %v2376 = vpow.pop %v2375
    %v2377 = vadd.f32 %v2376, 1.0
    %v2378 = vrcp.pop %v2377
    %v2379 = vmul.f32 1.0, %v2378
    %v2380 = vadd.f32 %v2361, %v1840
    %v2381 = vmul.f32 %v2372, %v2380
    %v2382 = vadd.f32 %v1784, %v2381
    %v2383 = vtanh.pop %v2382
    %v2384 = vsub.f32 %v2282, %v2383
    %v2385 = vmul.f32 %v2379, %v2384
    %v2386 = vadd.f32 %v2383, %v2385
    %2387 = vst [vmem:[#allocation2 + $0x18] sm:$0xff] %v2386
    %v2388 = vpack.c.bf16 %v2386, %v2386
    %2389 = vmatprep.subr.bf16.mxu0 %v1926
    %2390 = vmatpush1.bf16.msra.mxu0 %v1925
    %2391 = vmatprep.subr.bf16.mxu0 %v1929
    %2392 = vmatpush1.bf16.msra.mxu0 %v1928
    %2393 = vmatprep.subr.bf16.mxu0 %v1932
    %2394 = vmatpush1.bf16.msra.mxu0 %v1931
    %2395 = vmatprep.subr.bf16.mxu0 %v1935
    %2396 = vmatpush1.bf16.msra.mxu0 %v1934
    %2397 = vmatprep.subr.bf16.mxu0 %v1938
    %2398 = vmatpush1.bf16.msra.mxu0 %v1937
    %2399 = vmatprep.subr.bf16.mxu0 %v1941
    %2400 = vmatpush1.bf16.msra.mxu0 %v1940
    %2401 = vmatprep.subr.bf16.mxu0 %v1944
    %2402 = vmatpush1.bf16.msra.mxu0 %v1943
    %2403 = vmatprep.subr.bf16.mxu0 %v1947
    %2404 = vmatpush1.bf16.msra.mxu0 %v1946
    %2405 = vmatprep.subr.bf16.mxu0 0
    %2406 = vmatpush1.bf16.msra.mxu0 0
    %2407 = vmatprep.subr.bf16.mxu0 0
    %2408 = vmatpush1.bf16.msra.mxu0 0
    %2409 = vmatprep.subr.bf16.mxu0 0
    %2410 = vmatpush1.bf16.msra.mxu0 0
    %2411 = vmatprep.subr.bf16.mxu0 0
    %2412 = vmatpush1.bf16.msra.mxu0 0
    %2413 = vmatprep.subr.bf16.mxu0 0
    %2414 = vmatpush1.bf16.msra.mxu0 0
    %2415 = vmatprep.subr.bf16.mxu0 0
    %2416 = vmatpush1.bf16.msra.mxu0 0
    %2417 = vmatprep.subr.bf16.mxu0 0
    %2418 = vmatpush1.bf16.msra.mxu0 0
    %2419 = vmatprep.subr.bf16.mxu0 0
    %2420 = vmatpush1.bf16.msra.mxu0 0
    %2421 = vmatprep.mubr.bf16.mxu0 0
    %2422 = vmatmul.mubr.bf16.gmra.mrb[0].mxu0 %v2388
    %v2423 = vpop.f32.mrb[0].mxu0
    %v2424 = vadd.f32 0.0, %v2423
    %v2425 = vpop.f32.mrb[0].mxu0
    %v2426 = vadd.f32 0.0, %v2425
    %v2427 = vpop.f32.mrb[0].mxu0
    %v2428 = vpop.f32.mrb[0].mxu0
    %2429 = vdwg.mxu0
    %2430 = vmatprep.subr.bf16.mxu0 0
    %2431 = vmatpush1.bf16.msra.mxu0 %v1927
    %2432 = vmatprep.subr.bf16.mxu0 0
    %2433 = vmatpush1.bf16.msra.mxu0 %v1930
    %2434 = vmatprep.subr.bf16.mxu0 0
    %2435 = vmatpush1.bf16.msra.mxu0 %v1933
    %2436 = vmatprep.subr.bf16.mxu0 0
    %2437 = vmatpush1.bf16.msra.mxu0 %v1936
    %2438 = vmatprep.subr.bf16.mxu0 0
    %2439 = vmatpush1.bf16.msra.mxu0 %v1939
    %2440 = vmatprep.subr.bf16.mxu0 0
    %2441 = vmatpush1.bf16.msra.mxu0 %v1942
    %2442 = vmatprep.subr.bf16.mxu0 0
    %2443 = vmatpush1.bf16.msra.mxu0 %v1945
    %2444 = vmatprep.subr.bf16.mxu0 0
    %2445 = vmatpush1.bf16.msra.mxu0 %v1948
    %2446 = vmatprep.subr.bf16.mxu0 0
    %2447 = vmatpush1.bf16.msra.mxu0 0
    %2448 = vmatprep.subr.bf16.mxu0 0
    %2449 = vmatpush1.bf16.msra.mxu0 0
    %2450 = vmatprep.subr.bf16.mxu0 0
    %2451 = vmatpush1.bf16.msra.mxu0 0
    %2452 = vmatprep.subr.bf16.mxu0 0
    %2453 = vmatpush1.bf16.msra.mxu0 0
    %2454 = vmatprep.subr.bf16.mxu0 0
    %2455 = vmatpush1.bf16.msra.mxu0 0
    %2456 = vmatprep.subr.bf16.mxu0 0
    %2457 = vmatpush1.bf16.msra.mxu0 0
    %2458 = vmatprep.subr.bf16.mxu0 0
    %2459 = vmatpush1.bf16.msra.mxu0 0
    %2460 = vmatprep.subr.bf16.mxu0 0
    %2461 = vmatpush1.bf16.msra.mxu0 0
    %2462 = vmatprep.mubr.bf16.mxu0 0
    %2463 = vmatmul.mubr.bf16.gmra.mrb[0].mxu0 %v2388
    %v2464 = vpop.f32.mrb[0].mxu0
    %v2465 = vadd.f32 0.0, %v2464
    %v2466 = vpop.f32.mrb[0].mxu0
    %v2467 = vpop.f32.mrb[0].mxu0
    %v2468 = vpop.f32.mrb[0].mxu0
    %2469 = vdwg.mxu0
    %v2470 = vadd.f32 %v1720, %v2424
    %v2471 = vxor.u32 %v2470, 2147483648
    %v2472 = vmul.f32 %v2471, 1.442695
    %v2473 = vpow.pop %v2472
    %v2474 = vadd.f32 %v2473, 1.0
    %v2475 = vrcp.pop %v2474
    %v2476 = vmul.f32 1.0, %v2475
    %v2477 = vadd.f32 %v1722, %v2426
    %v2478 = vxor.u32 %v2477, 2147483648
    %v2479 = vmul.f32 %v2478, 1.442695
    %v2480 = vpow.pop %v2479
    %v2481 = vadd.f32 %v2480, 1.0
    %v2482 = vrcp.pop %v2481
    %v2483 = vmul.f32 1.0, %v2482
    %v2484 = vadd.f32 %v2465, %v1840
    %v2485 = vmul.f32 %v2476, %v2484
    %v2486 = vadd.f32 %v1789, %v2485
    %v2487 = vtanh.pop %v2486
    %v2488 = vsub.f32 %v2386, %v2487
    %v2489 = vmul.f32 %v2483, %v2488
    %v2490 = vadd.f32 %v2487, %v2489
    %2491 = vst [vmem:[#allocation2 + $0x20] sm:$0xff] %v2490
    %v2492 = vpack.c.bf16 %v2490, %v2490
    %2493 = vmatprep.subr.bf16.mxu0 %v1926
    %2494 = vmatpush1.bf16.msra.mxu0 %v1925
    %2495 = vmatprep.subr.bf16.mxu0 %v1929
    %2496 = vmatpush1.bf16.msra.mxu0 %v1928
    %2497 = vmatprep.subr.bf16.mxu0 %v1932
    %2498 = vmatpush1.bf16.msra.mxu0 %v1931
    %2499 = vmatprep.subr.bf16.mxu0 %v1935
    %2500 = vmatpush1.bf16.msra.mxu0 %v1934
    %2501 = vmatprep.subr.bf16.mxu0 %v1938
    %2502 = vmatpush1.bf16.msra.mxu0 %v1937
    %2503 = vmatprep.subr.bf16.mxu0 %v1941
    %2504 = vmatpush1.bf16.msra.mxu0 %v1940
    %2505 = vmatprep.subr.bf16.mxu0 %v1944
    %2506 = vmatpush1.bf16.msra.mxu0 %v1943
    %2507 = vmatprep.subr.bf16.mxu0 %v1947
    %2508 = vmatpush1.bf16.msra.mxu0 %v1946
    %2509 = vmatprep.subr.bf16.mxu0 0
    %2510 = vmatpush1.bf16.msra.mxu0 0
    %2511 = vmatprep.subr.bf16.mxu0 0
    %2512 = vmatpush1.bf16.msra.mxu0 0
    %2513 = vmatprep.subr.bf16.mxu0 0
    %2514 = vmatpush1.bf16.msra.mxu0 0
    %2515 = vmatprep.subr.bf16.mxu0 0
    %2516 = vmatpush1.bf16.msra.mxu0 0
    %2517 = vmatprep.subr.bf16.mxu0 0
    %2518 = vmatpush1.bf16.msra.mxu0 0
    %2519 = vmatprep.subr.bf16.mxu0 0
    %2520 = vmatpush1.bf16.msra.mxu0 0
    %2521 = vmatprep.subr.bf16.mxu0 0
    %2522 = vmatpush1.bf16.msra.mxu0 0
    %2523 = vmatprep.subr.bf16.mxu0 0
    %2524 = vmatpush1.bf16.msra.mxu0 0
    %2525 = vmatprep.mubr.bf16.mxu0 0
    %2526 = vmatmul.mubr.bf16.gmra.mrb[0].mxu0 %v2492
    %v2527 = vpop.f32.mrb[0].mxu0
    %v2528 = vadd.f32 0.0, %v2527
    %v2529 = vpop.f32.mrb[0].mxu0
    %v2530 = vadd.f32 0.0, %v2529
    %v2531 = vpop.f32.mrb[0].mxu0
    %v2532 = vpop.f32.mrb[0].mxu0
    %2533 = vdwg.mxu0
    %2534 = vmatprep.subr.bf16.mxu0 0
    %2535 = vmatpush1.bf16.msra.mxu0 %v1927
    %2536 = vmatprep.subr.bf16.mxu0 0
    %2537 = vmatpush1.bf16.msra.mxu0 %v1930
    %2538 = vmatprep.subr.bf16.mxu0 0
    %2539 = vmatpush1.bf16.msra.mxu0 %v1933
    %2540 = vmatprep.subr.bf16.mxu0 0
    %2541 = vmatpush1.bf16.msra.mxu0 %v1936
    %2542 = vmatprep.subr.bf16.mxu0 0
    %2543 = vmatpush1.bf16.msra.mxu0 %v1939
    %2544 = vmatprep.subr.bf16.mxu0 0
    %2545 = vmatpush1.bf16.msra.mxu0 %v1942
    %2546 = vmatprep.subr.bf16.mxu0 0
    %2547 = vmatpush1.bf16.msra.mxu0 %v1945
    %2548 = vmatprep.subr.bf16.mxu0 0
    %2549 = vmatpush1.bf16.msra.mxu0 %v1948
    %2550 = vmatprep.subr.bf16.mxu0 0
    %2551 = vmatpush1.bf16.msra.mxu0 0
    %2552 = vmatprep.subr.bf16.mxu0 0
    %2553 = vmatpush1.bf16.msra.mxu0 0
    %2554 = vmatprep.subr.bf16.mxu0 0
    %2555 = vmatpush1.bf16.msra.mxu0 0
    %2556 = vmatprep.subr.bf16.mxu0 0
    %2557 = vmatpush1.bf16.msra.mxu0 0
    %2558 = vmatprep.subr.bf16.mxu0 0
    %2559 = vmatpush1.bf16.msra.mxu0 0
    %2560 = vmatprep.subr.bf16.mxu0 0
    %2561 = vmatpush1.bf16.msra.mxu0 0
    %2562 = vmatprep.subr.bf16.mxu0 0
    %2563 = vmatpush1.bf16.msra.mxu0 0
    %2564 = vmatprep.subr.bf16.mxu0 0
    %2565 = vmatpush1.bf16.msra.mxu0 0
    %2566 = vmatprep.mubr.bf16.mxu0 0
    %2567 = vmatmul.mubr.bf16.gmra.mrb[0].mxu0 %v2492
    %v2568 = vpop.f32.mrb[0].mxu0
    %v2569 = vadd.f32 0.0, %v2568
    %v2570 = vpop.f32.mrb[0].mxu0
    %v2571 = vpop.f32.mrb[0].mxu0
    %v2572 = vpop.f32.mrb[0].mxu0
    %2573 = vdwg.mxu0
    %v2574 = vadd.f32 %v1724, %v2528
    %v2575 = vxor.u32 %v2574, 2147483648
    %v2576 = vmul.f32 %v2575, 1.442695
    %v2577 = vpow.pop %v2576
    %v2578 = vadd.f32 %v2577, 1.0
    %v2579 = vrcp.pop %v2578
    %v2580 = vmul.f32 1.0, %v2579
    %v2581 = vadd.f32 %v1726, %v2530
    %v2582 = vxor.u32 %v2581, 2147483648
    %v2583 = vmul.f32 %v2582, 1.442695
    %v2584 = vpow.pop %v2583
    %v2585 = vadd.f32 %v2584, 1.0
    %v2586 = vrcp.pop %v2585
    %v2587 = vmul.f32 1.0, %v2586
    %v2588 = vadd.f32 %v2569, %v1840
    %v2589 = vmul.f32 %v2580, %v2588
    %v2590 = vadd.f32 %v1792, %v2589
    %v2591 = vtanh.pop %v2590
    %v2592 = vsub.f32 %v2490, %v2591
    %v2593 = vmul.f32 %v2587, %v2592
    %v2594 = vadd.f32 %v2591, %v2593
    %2595 = vst [vmem:[#allocation2 + $0x28] sm:$0xff] %v2594
    %v2596 = vpack.c.bf16 %v2594, %v2594
    %2597 = vmatprep.subr.bf16.mxu0 %v1926
    %2598 = vmatpush1.bf16.msra.mxu0 %v1925
    %2599 = vmatprep.subr.bf16.mxu0 %v1929
    %2600 = vmatpush1.bf16.msra.mxu0 %v1928
    %2601 = vmatprep.subr.bf16.mxu0 %v1932
    %2602 = vmatpush1.bf16.msra.mxu0 %v1931
    %2603 = vmatprep.subr.bf16.mxu0 %v1935
    %2604 = vmatpush1.bf16.msra.mxu0 %v1934
    %2605 = vmatprep.subr.bf16.mxu0 %v1938
    %2606 = vmatpush1.bf16.msra.mxu0 %v1937
    %2607 = vmatprep.subr.bf16.mxu0 %v1941
    %2608 = vmatpush1.bf16.msra.mxu0 %v1940
    %2609 = vmatprep.subr.bf16.mxu0 %v1944
    %2610 = vmatpush1.bf16.msra.mxu0 %v1943
    %2611 = vmatprep.subr.bf16.mxu0 %v1947
    %2612 = vmatpush1.bf16.msra.mxu0 %v1946
    %2613 = vmatprep.subr.bf16.mxu0 0
    %2614 = vmatpush1.bf16.msra.mxu0 0
    %2615 = vmatprep.subr.bf16.mxu0 0
    %2616 = vmatpush1.bf16.msra.mxu0 0
    %2617 = vmatprep.subr.bf16.mxu0 0
    %2618 = vmatpush1.bf16.msra.mxu0 0
    %2619 = vmatprep.subr.bf16.mxu0 0
    %2620 = vmatpush1.bf16.msra.mxu0 0
    %2621 = vmatprep.subr.bf16.mxu0 0
    %2622 = vmatpush1.bf16.msra.mxu0 0
    %2623 = vmatprep.subr.bf16.mxu0 0
    %2624 = vmatpush1.bf16.msra.mxu0 0
    %2625 = vmatprep.subr.bf16.mxu0 0
    %2626 = vmatpush1.bf16.msra.mxu0 0
    %2627 = vmatprep.subr.bf16.mxu0 0
    %2628 = vmatpush1.bf16.msra.mxu0 0
    %2629 = vmatprep.mubr.bf16.mxu0 0
    %2630 = vmatmul.mubr.bf16.gmra.mrb[0].mxu0 %v2596
    %v2631 = vpop.f32.mrb[0].mxu0
    %v2632 = vadd.f32 0.0, %v2631
    %v2633 = vpop.f32.mrb[0].mxu0
    %v2634 = vadd.f32 0.0, %v2633
    %v2635 = vpop.f32.mrb[0].mxu0
    %v2636 = vpop.f32.mrb[0].mxu0
    %2637 = vdwg.mxu0
    %2638 = vmatprep.subr.bf16.mxu0 0
    %2639 = vmatpush1.bf16.msra.mxu0 %v1927
    %2640 = vmatprep.subr.bf16.mxu0 0
    %2641 = vmatpush1.bf16.msra.mxu0 %v1930
    %2642 = vmatprep.subr.bf16.mxu0 0
    %2643 = vmatpush1.bf16.msra.mxu0 %v1933
    %2644 = vmatprep.subr.bf16.mxu0 0
    %2645 = vmatpush1.bf16.msra.mxu0 %v1936
    %2646 = vmatprep.subr.bf16.mxu0 0
    %2647 = vmatpush1.bf16.msra.mxu0 %v1939
    %2648 = vmatprep.subr.bf16.mxu0 0
    %2649 = vmatpush1.bf16.msra.mxu0 %v1942
    %2650 = vmatprep.subr.bf16.mxu0 0
    %2651 = vmatpush1.bf16.msra.mxu0 %v1945
    %2652 = vmatprep.subr.bf16.mxu0 0
    %2653 = vmatpush1.bf16.msra.mxu0 %v1948
    %2654 = vmatprep.subr.bf16.mxu0 0
    %2655 = vmatpush1.bf16.msra.mxu0 0
    %2656 = vmatprep.subr.bf16.mxu0 0
    %2657 = vmatpush1.bf16.msra.mxu0 0
    %2658 = vmatprep.subr.bf16.mxu0 0
    %2659 = vmatpush1.bf16.msra.mxu0 0
    %2660 = vmatprep.subr.bf16.mxu0 0
    %2661 = vmatpush1.bf16.msra.mxu0 0
    %2662 = vmatprep.subr.bf16.mxu0 0
    %2663 = vmatpush1.bf16.msra.mxu0 0
    %2664 = vmatprep.subr.bf16.mxu0 0
    %2665 = vmatpush1.bf16.msra.mxu0 0
    %2666 = vmatprep.subr.bf16.mxu0 0
    %2667 = vmatpush1.bf16.msra.mxu0 0
    %2668 = vmatprep.subr.bf16.mxu0 0
    %2669 = vmatpush1.bf16.msra.mxu0 0
    %2670 = vmatprep.mubr.bf16.mxu0 0
    %2671 = vmatmul.mubr.bf16.gmra.mrb[0].mxu0 %v2596
    %v2672 = vpop.f32.mrb[0].mxu0
    %v2673 = vadd.f32 0.0, %v2672
    %v2674 = vpop.f32.mrb[0].mxu0
    %v2675 = vpop.f32.mrb[0].mxu0
    %v2676 = vpop.f32.mrb[0].mxu0
    %2677 = vdwg.mxu0
    %v2678 = vadd.f32 %v1730, %v2632
    %v2679 = vxor.u32 %v2678, 2147483648
    %v2680 = vmul.f32 %v2679, 1.442695
    %v2681 = vpow.pop %v2680
    %v2682 = vadd.f32 %v2681, 1.0
    %v2683 = vrcp.pop %v2682
    %v2684 = vmul.f32 1.0, %v2683
    %v2685 = vadd.f32 %v1732, %v2634
    %v2686 = vxor.u32 %v2685, 2147483648
    %v2687 = vmul.f32 %v2686, 1.442695
    %v2688 = vpow.pop %v2687
    %v2689 = vadd.f32 %v2688, 1.0
    %v2690 = vrcp.pop %v2689
    %v2691 = vmul.f32 1.0, %v2690
    %v2692 = vadd.f32 %v2673, %v1840
    %v2693 = vmul.f32 %v2684, %v2692
    %v2694 = vadd.f32 %v1797, %v2693
    %v2695 = vtanh.pop %v2694
    %v2696 = vsub.f32 %v2594, %v2695
    %v2697 = vmul.f32 %v2691, %v2696
    %v2698 = vadd.f32 %v2695, %v2697
    %2699 = vst [vmem:[#allocation2 + $0x30] sm:$0xff] %v2698
    %v2700 = vpack.c.bf16 %v2698, %v2698
    %2701 = vmatprep.subr.bf16.mxu0 %v1926
    %2702 = vmatpush1.bf16.msra.mxu0 %v1925
    %2703 = vmatprep.subr.bf16.mxu0 %v1929
    %2704 = vmatpush1.bf16.msra.mxu0 %v1928
    %2705 = vmatprep.subr.bf16.mxu0 %v1932
    %2706 = vmatpush1.bf16.msra.mxu0 %v1931
    %2707 = vmatprep.subr.bf16.mxu0 %v1935
    %2708 = vmatpush1.bf16.msra.mxu0 %v1934
    %2709 = vmatprep.subr.bf16.mxu0 %v1938
    %2710 = vmatpush1.bf16.msra.mxu0 %v1937
    %2711 = vmatprep.subr.bf16.mxu0 %v1941
    %2712 = vmatpush1.bf16.msra.mxu0 %v1940
    %2713 = vmatprep.subr.bf16.mxu0 %v1944
    %2714 = vmatpush1.bf16.msra.mxu0 %v1943
    %2715 = vmatprep.subr.bf16.mxu0 %v1947
    %2716 = vmatpush1.bf16.msra.mxu0 %v1946
    %2717 = vmatprep.subr.bf16.mxu0 0
    %2718 = vmatpush1.bf16.msra.mxu0 0
    %2719 = vmatprep.subr.bf16.mxu0 0
    %2720 = vmatpush1.bf16.msra.mxu0 0
    %2721 = vmatprep.subr.bf16.mxu0 0
    %2722 = vmatpush1.bf16.msra.mxu0 0
    %2723 = vmatprep.subr.bf16.mxu0 0
    %2724 = vmatpush1.bf16.msra.mxu0 0
    %2725 = vmatprep.subr.bf16.mxu0 0
    %2726 = vmatpush1.bf16.msra.mxu0 0
    %2727 = vmatprep.subr.bf16.mxu0 0
    %2728 = vmatpush1.bf16.msra.mxu0 0
    %2729 = vmatprep.subr.bf16.mxu0 0
    %2730 = vmatpush1.bf16.msra.mxu0 0
    %2731 = vmatprep.subr.bf16.mxu0 0
    %2732 = vmatpush1.bf16.msra.mxu0 0
    %2733 = vmatprep.mubr.bf16.mxu0 0
    %2734 = vmatmul.mubr.bf16.gmra.mrb[0].mxu0 %v2700
    %v2735 = vpop.f32.mrb[0].mxu0
    %v2736 = vadd.f32 0.0, %v2735
    %v2737 = vpop.f32.mrb[0].mxu0
    %v2738 = vadd.f32 0.0, %v2737
    %v2739 = vpop.f32.mrb[0].mxu0
    %v2740 = vpop.f32.mrb[0].mxu0
    %2741 = vdwg.mxu0
    %2742 = vmatprep.subr.bf16.mxu0 0
    %2743 = vmatpush1.bf16.msra.mxu0 %v1927
    %2744 = vmatprep.subr.bf16.mxu0 0
    %2745 = vmatpush1.bf16.msra.mxu0 %v1930
    %2746 = vmatprep.subr.bf16.mxu0 0
    %2747 = vmatpush1.bf16.msra.mxu0 %v1933
    %2748 = vmatprep.subr.bf16.mxu0 0
    %2749 = vmatpush1.bf16.msra.mxu0 %v1936
    %2750 = vmatprep.subr.bf16.mxu0 0
    %2751 = vmatpush1.bf16.msra.mxu0 %v1939
    %2752 = vmatprep.subr.bf16.mxu0 0
    %2753 = vmatpush1.bf16.msra.mxu0 %v1942
    %2754 = vmatprep.subr.bf16.mxu0 0
    %2755 = vmatpush1.bf16.msra.mxu0 %v1945
    %2756 = vmatprep.subr.bf16.mxu0 0
    %2757 = vmatpush1.bf16.msra.mxu0 %v1948
    %2758 = vmatprep.subr.bf16.mxu0 0
    %2759 = vmatpush1.bf16.msra.mxu0 0
    %2760 = vmatprep.subr.bf16.mxu0 0
    %2761 = vmatpush1.bf16.msra.mxu0 0
    %2762 = vmatprep.subr.bf16.mxu0 0
    %2763 = vmatpush1.bf16.msra.mxu0 0
    %2764 = vmatprep.subr.bf16.mxu0 0
    %2765 = vmatpush1.bf16.msra.mxu0 0
    %2766 = vmatprep.subr.bf16.mxu0 0
    %2767 = vmatpush1.bf16.msra.mxu0 0
    %2768 = vmatprep.subr.bf16.mxu0 0
    %2769 = vmatpush1.bf16.msra.mxu0 0
    %2770 = vmatprep.subr.bf16.mxu0 0
    %2771 = vmatpush1.bf16.msra.mxu0 0
    %2772 = vmatprep.subr.bf16.mxu0 0
    %2773 = vmatpush1.bf16.msra.mxu0 0
    %2774 = vmatprep.mubr.bf16.mxu0 0
    %2775 = vmatmul.mubr.bf16.gmra.mrb[0].mxu0 %v2700
    %v2776 = vpop.f32.mrb[0].mxu0
    %v2777 = vadd.f32 0.0, %v2776
    %v2778 = vpop.f32.mrb[0].mxu0
    %v2779 = vpop.f32.mrb[0].mxu0
    %v2780 = vpop.f32.mrb[0].mxu0
    %2781 = vdwg.mxu0
    %v2782 = vadd.f32 %v1734, %v2736
    %v2783 = vxor.u32 %v2782, 2147483648
    %v2784 = vmul.f32 %v2783, 1.442695
    %v2785 = vpow.pop %v2784
    %v2786 = vadd.f32 %v2785, 1.0
    %v2787 = vrcp.pop %v2786
    %v2788 = vmul.f32 1.0, %v2787
    %v2789 = vadd.f32 %v1736, %v2738
    %v2790 = vxor.u32 %v2789, 2147483648
    %v2791 = vmul.f32 %v2790, 1.442695
    %v2792 = vpow.pop %v2791
    %v2793 = vadd.f32 %v2792, 1.0
    %v2794 = vrcp.pop %v2793
    %v2795 = vmul.f32 1.0, %v2794
    %v2796 = vadd.f32 %v2777, %v1840
    %v2797 = vmul.f32 %v2788, %v2796
    %v2798 = vadd.f32 %v1800, %v2797
    %v2799 = vtanh.pop %v2798
    %v2800 = vsub.f32 %v2698, %v2799
    %v2801 = vmul.f32 %v2795, %v2800
    %v2802 = vadd.f32 %v2799, %v2801
    %2803 = vst [vmem:[#allocation2 + $0x38] sm:$0xff] %v2802
    %s2804 = scalar_lea.vmem [#allocation15], 8
    %2805 = vst [vmem:[%s2804] sm:$0xff] %v2802
    %v2806 = vld [vmem:[#allocation2] sm:$0xff]
    %v2807 = vld [vmem:[#allocation2 + $0x8] sm:$0xff]
    %v2808 = vld [vmem:[#allocation2 + $0x10] sm:$0xff]
    %v2809 = vld [vmem:[#allocation2 + $0x18] sm:$0xff]
    %v2810 = vld [vmem:[#allocation2 + $0x20] sm:$0xff]
    %v2811 = vld [vmem:[#allocation2 + $0x28] sm:$0xff]
    %v2812 = vld [vmem:[#allocation2 + $0x30] sm:$0xff]
    %v2813 = vld [vmem:[#allocation2 + $0x38] sm:$0xff]
    %v2814 = vpack.c.bf16 %v2807, %v2806
    %v2815 = vpack.c.bf16 %v2809, %v2808
    %v2816 = vpack.c.bf16 %v2811, %v2810
    %v2817 = vpack.c.bf16 %v2813, %v2812
    %v2818 = vld [vmem:[#allocation12] sm:$0xf]
    %v2819 = vld [vmem:[#allocation12 + $0x4] sm:$0xf]
    %v2820 = vld [vmem:[#allocation12 + $0x8] sm:$0xf]
    %v2821 = vld [vmem:[#allocation12 + $0xc] sm:$0xf]
    %v2822 = vld [vmem:[#allocation12 + $0x10] sm:$0xf]
    %v2823 = vld [vmem:[#allocation12 + $0x14] sm:$0xf]
    %v2824 = vld [vmem:[#allocation12 + $0x18] sm:$0xf]
    %v2825 = vld [vmem:[#allocation12 + $0x1c] sm:$0xf]
    %v2826 = vld [vmem:[#allocation12 + $0x20] sm:$0xf]
    %v2827 = vld [vmem:[#allocation12 + $0x24] sm:$0xf]
    %v2828 = vld [vmem:[#allocation12 + $0x28] sm:$0xf]
    %v2829 = vld [vmem:[#allocation12 + $0x2c] sm:$0xf]
    %v2830 = vld [vmem:[#allocation12 + $0x30] sm:$0xf]
    %v2831 = vld [vmem:[#allocation12 + $0x34] sm:$0xf]
    %v2832 = vld [vmem:[#allocation12 + $0x38] sm:$0xf]
    %v2833 = vld [vmem:[#allocation12 + $0x3c] sm:$0xf]
    %v2834 = vld [vmem:[%s10] sm:$0x1]
    %v2836 = vlaneseq
    %v2837 = vshrl.u32 %v2836, 7
    %v2838 = vsub.s32 0, %v2837
    %v2839 = vrot.slane %v2834, %v2838
    %v2857 = vunpack.c.l.b16 %v2818
    %v2858 = vunpack.c.l.b16 %v2819
    %v2859 = vunpack.c.l.b16 %v2820
    %v2860 = vunpack.c.l.b16 %v2821
    %v2861 = vunpack.c.l.b16 %v2822
    %v2862 = vunpack.c.l.b16 %v2823
    %v2863 = vunpack.c.l.b16 %v2824
    %v2864 = vunpack.c.l.b16 %v2825
    %v2865 = vunpack.c.l.b16 %v2826
    %v2866 = vunpack.c.l.b16 %v2827
    %v2867 = vunpack.c.l.b16 %v2828
    %v2868 = vunpack.c.l.b16 %v2829
    %v2869 = vunpack.c.l.b16 %v2830
    %v2870 = vunpack.c.l.b16 %v2831
    %v2871 = vunpack.c.l.b16 %v2832
    %v2872 = vunpack.c.l.b16 %v2833
    %v2873 = vpack.c.b16 %v2858, %v2857
    %v2874 = vpack.c.b16 %v2860, %v2859
    %v2875 = vpack.c.b16 %v2862, %v2861
    %v2876 = vpack.c.b16 %v2864, %v2863
    %v2877 = vpack.c.b16 %v2866, %v2865
    %v2878 = vpack.c.b16 %v2868, %v2867
    %v2879 = vpack.c.b16 %v2870, %v2869
    %v2880 = vpack.c.b16 %v2872, %v2871
    %2889 = vmatprep.subr.bf16.mxu0 0
    %2890 = vmatpush1.bf16.msra.mxu0 %v2873
    %2891 = vmatprep.subr.bf16.mxu0 0
    %2892 = vmatpush1.bf16.msra.mxu0 %v2874
    %2893 = vmatprep.subr.bf16.mxu0 0
    %2894 = vmatpush1.bf16.msra.mxu0 %v2875
    %2895 = vmatprep.subr.bf16.mxu0 0
    %2896 = vmatpush1.bf16.msra.mxu0 %v2876
    %2897 = vmatprep.subr.bf16.mxu0 0
    %2898 = vmatpush1.bf16.msra.mxu0 %v2877
    %2899 = vmatprep.subr.bf16.mxu0 0
    %2900 = vmatpush1.bf16.msra.mxu0 %v2878
    %2901 = vmatprep.subr.bf16.mxu0 0
    %2902 = vmatpush1.bf16.msra.mxu0 %v2879
    %2903 = vmatprep.subr.bf16.mxu0 0
    %2904 = vmatpush1.bf16.msra.mxu0 %v2880
    %2905 = vmatprep.subr.bf16.mxu0 0
    %2906 = vmatpush1.bf16.msra.mxu0 0
    %2907 = vmatprep.subr.bf16.mxu0 0
    %2908 = vmatpush1.bf16.msra.mxu0 0
    %2909 = vmatprep.subr.bf16.mxu0 0
    %2910 = vmatpush1.bf16.msra.mxu0 0
    %2911 = vmatprep.subr.bf16.mxu0 0
    %2912 = vmatpush1.bf16.msra.mxu0 0
    %2913 = vmatprep.subr.bf16.mxu0 0
    %2914 = vmatpush1.bf16.msra.mxu0 0
    %2915 = vmatprep.subr.bf16.mxu0 0
    %2916 = vmatpush1.bf16.msra.mxu0 0
    %2917 = vmatprep.subr.bf16.mxu0 0
    %2918 = vmatpush1.bf16.msra.mxu0 0
    %2919 = vmatprep.subr.bf16.mxu0 0
    %2920 = vmatpush1.bf16.msra.mxu0 0
    %2921 = vmatprep.mubr.bf16.mxu0 0
    %2922 = vmatmul.mubr.bf16.gmra.mrb[0].mxu0 %v2814
    %v2923 = vpop.f32.mrb[0].mxu0
    %v2924 = vadd.f32 %v2839, %v2923
    %v2925 = vpop.f32.mrb[0].mxu0
    %v2926 = vpop.f32.mrb[0].mxu0
    %v2927 = vadd.f32 %v2839, %v2926
    %v2928 = vpop.f32.mrb[0].mxu0
    %2929 = vmatprep.mubr.bf16.mxu0 0
    %2930 = vmatmul.mubr.bf16.gmra.mrb[0].mxu0 %v2815
    %v2931 = vpop.f32.mrb[0].mxu0
    %v2932 = vadd.f32 %v2839, %v2931
    %v2933 = vpop.f32.mrb[0].mxu0
    %v2934 = vpop.f32.mrb[0].mxu0
    %v2935 = vadd.f32 %v2839, %v2934
    %v2936 = vpop.f32.mrb[0].mxu0
    %2937 = vmatprep.mubr.bf16.mxu0 0
    %2938 = vmatmul.mubr.bf16.gmra.mrb[0].mxu0 %v2816
    %v2939 = vpop.f32.mrb[0].mxu0
    %v2940 = vadd.f32 %v2839, %v2939
    %v2941 = vpop.f32.mrb[0].mxu0
    %v2942 = vpop.f32.mrb[0].mxu0
    %v2943 = vadd.f32 %v2839, %v2942
    %v2944 = vpop.f32.mrb[0].mxu0
    %2945 = vmatprep.mubr.bf16.mxu0 0
    %2946 = vmatmul.mubr.bf16.gmra.mrb[0].mxu0 %v2817
    %v2947 = vpop.f32.mrb[0].mxu0
    %v2948 = vadd.f32 %v2839, %v2947
    %v2949 = vpop.f32.mrb[0].mxu0
    %v2950 = vpop.f32.mrb[0].mxu0
    %v2951 = vadd.f32 %v2839, %v2950
    %v2952 = vpop.f32.mrb[0].mxu0
    %2953 = vdwg.mxu0
    %2954 = vst [vmem:[#allocation14] sm:$0xff] %v2924
    %2955 = vst [vmem:[#allocation14 + $0x8] sm:$0xff] %v2927
    %2956 = vst [vmem:[#allocation14 + $0x10] sm:$0xff] %v2932
    %2957 = vst [vmem:[#allocation14 + $0x18] sm:$0xff] %v2935
    %2958 = vst [vmem:[#allocation14 + $0x20] sm:$0xff] %v2940
    %2959 = vst [vmem:[#allocation14 + $0x28] sm:$0xff] %v2943
    %2960 = vst [vmem:[#allocation14 + $0x30] sm:$0xff] %v2948
    %2961 = vst [vmem:[#allocation14 + $0x38] sm:$0xff] %v2951
    // Predicated region
    $region74: #{tpu_custom_call.1} parent=1 // pred_check
      _
    $region75: #{tpu_custom_call.1} parent=1 // pred_check_branch
      %2963 = sbr.rel (0) target = $region77
    $region76: #{tpu_custom_call.1} parent=1 // pred_region
      %s2965 = ssub.s32 1024, 1024
      %2966 = vsyncadd [#allocation5], %s2965
      %s2967 = sshll.u32 [#allocation14], 4
      %s2968 = int_to_ptr.vmem [resolvable:$true] %s2967
      %2973 = dma.vmem_to_hbm [thread:$0]  %s2968, 1024, %s12, [#allocation5], 128, 128, 8
    $region77: #{tpu_custom_call.1} parent=1 // pred_fallthru
      _
    // Predicated region
    $region78: #{tpu_custom_call.1} parent=1 // pred_check
      _
    $region79: #{tpu_custom_call.1} parent=1 // pred_check_branch
      %2975 = sbr.rel (0) target = $region81
    $region80: #{tpu_custom_call.1} parent=1 // pred_region
      %s2977 = ssub.s32 256, 256
      %2978 = vsyncadd [#allocation16], %s2977
      %s2979 = sshll.u32 [#allocation15], 4
      %s2980 = int_to_ptr.vmem [resolvable:$true] %s2979
      %2985 = dma.vmem_to_hbm [thread:$0]  %s2980, 256, %s13, [#allocation16], 128, 128, 8
    $region81: #{tpu_custom_call.1} parent=1 // pred_fallthru
      _
    // Predicated region
    $region82: #{tpu_custom_call.1} parent=1 // pred_check
      _
    $region83: #{tpu_custom_call.1} parent=1 // pred_check_branch
      %2987 = sbr.rel (0) target = $region85
    $region84: #{tpu_custom_call.1} parent=1 // pred_region
      %2988 = dma.done [#allocation5], 1024
    $region85: #{tpu_custom_call.1} parent=1 // pred_fallthru
      _
    // Predicated region
    $region86: #{tpu_custom_call.1} parent=1 // pred_check
      _
    $region87: #{tpu_custom_call.1} parent=1 // pred_check_branch
      %2990 = sbr.rel (0) target = $region89
    $region88: #{tpu_custom_call.1} parent=1 // pred_region
      %2991 = dma.done [#allocation16], 256
    $region89: #{tpu_custom_call.1} parent=1 // pred_fallthru
      _
    %2992 = vsyncpa [#allocation4], 1
    %2993 = vsyncpa [#allocation7], 1
    %2994 = vsyncpa [#allocation10], 1
    %2995 = vsyncpa [#allocation13], 1
    %2996 = vsyncpa [#allocation5], 1
    %2997 = vsyncpa [#allocation16], 1

</llo_original>
